<compile_context>
chip_gen: v6e
topology: v6e:2x2x1
jax: 0.10.0
libtpu: 0.0.40
codegen_flags: <defaults>
</compile_context>

<pallas_src>
import functools

import jax
import jax.numpy as jnp
from jax import lax
from jax.experimental import pallas as pl
from jax.experimental.pallas import tpu as pltpu


def _round_up(x, m):
    return ((x + m - 1) // m) * m


# ----------------------------------------------------------------------------- #
# Pallas kernel: `Tt` GRU steps of one direction per grid step.
#   grid = (direction, time_block)   direction = "parallel", time = "arbitrary"
# ----------------------------------------------------------------------------- #
def _bidir_gru_kernel(
    xproj_ref,   # (Tt, Bp, 3Hp) f32   x @ W_ih^T + b_ih + b_hh[r|z]  (this block/dir)
    wh_ref,      # (1, Hp, 3Hp)  bf16  fused recurrent weights (columns: r | z | n)
    bhn_ref,     # (1, 1, Hp)    f32   b_hh[n]  (r/z recurrent biases folded into xproj)
    out_ref,     # (Tt, Bp, Hp)        hidden state at every timestep of the block
    h_scratch,   # (Bp, Hp) f32        recurrent state, carried across time blocks
):
    d = pl.program_id(0)    # 0 = forward, 1 = backward
    tb = pl.program_id(1)   # time-block index within this direction's sweep

    @pl.when(tb == 0)
    def _():
        h_scratch[...] = jnp.zeros_like(h_scratch)

    Tt, Bp, Hp = out_ref.shape
    wh = wh_ref[0]                                          # (Hp, 3Hp) bf16, once/step
    bhn = jnp.broadcast_to(bhn_ref[0], (Bp, Hp))            # hoisted broadcast (Bp, Hp)

    def step(local, h):
        gx = xproj_ref[local]                               # (Bp, 3Hp) f32, static index
        gh = jnp.dot(h.astype(jnp.bfloat16), wh,            # bf16 MXU operands,
                     preferred_element_type=jnp.float32)    # f32 accumulation
        r = jax.nn.sigmoid(gx[:, 0:Hp] + gh[:, 0:Hp])
        z = jax.nn.sigmoid(gx[:, Hp:2 * Hp] + gh[:, Hp:2 * Hp])
        n = jnp.tanh(gx[:, 2 * Hp:3 * Hp] + r * (gh[:, 2 * Hp:3 * Hp] + bhn))
        h_new = (1.0 - z) * n + z * h                       # gate math stays f32 (v5e)
        out_ref[local] = h_new.astype(out_ref.dtype)
        return h_new

    def sweep(reverse):
        # Statically unrolled loop with constant indices -> static, aligned vld/vst.
        # TODO(synk): for production B*Hp tiles, cap the unroll (chunk Tt) to bound
        # vreg pressure / spills.
        h = h_scratch[...]
        order = range(Tt - 1, -1, -1) if reverse else range(Tt)
        for local in order:
            h = step(local, h)
        h_scratch[...] = h

    @pl.when(d == 0)
    def _():
        sweep(False)

    @pl.when(d == 1)
    def _():
        sweep(True)


def bidir_gru_pallas(xproj, wh, bhn, *, time_block, out_dtype=jnp.float32):
    """xproj: (T, Bp, 6Hp) f32, wh: (2, Hp, 3Hp) bf16, bhn: (2, 1, Hp) f32
       -> out: (T, Bp, 2Hp) where [..., :Hp] is forward, [..., Hp:] is backward."""
    T, Bp, G2 = xproj.shape
    Hp = wh.shape[1]
    G = 3 * Hp
    assert G2 == 2 * G and T % time_block == 0
    Tt = time_block
    nT = T // Tt

    def tmap(d, t):
        # forward visits time blocks 0..nT-1, backward visits nT-1..0
        return t + d * (nT - 1 - 2 * t)

    grid_spec = pltpu.PrefetchScalarGridSpec(
        num_scalar_prefetch=0,
        grid=(2, nT),
        in_specs=[
            # direction selected via the last block index (d) -> no wrapper transpose
            pl.BlockSpec((Tt, Bp, G), lambda d, t: (tmap(d, t), 0, d)),
            # TODO(synk): pipeline_mode=pl.Buffered(1) for these direction-constant
            # specs to halve their VMEM footprint on v7x (64 MiB budget).
            pl.BlockSpec((1, Hp, G), lambda d, t: (d, 0, 0)),
            pl.BlockSpec((1, 1, Hp), lambda d, t: (d, 0, 0)),
        ],
        # output lands directly in the (T, Bp, 2Hp) fwd|bwd layout (lane-dense stores)
        out_specs=pl.BlockSpec((Tt, Bp, Hp), lambda d, t: (tmap(d, t), 0, d)),
        scratch_shapes=[pltpu.VMEM((Bp, Hp), jnp.float32)],
    )
    return pl.pallas_call(
        _bidir_gru_kernel,
        out_shape=jax.ShapeDtypeStruct((T, Bp, 2 * Hp), out_dtype),
        grid_spec=grid_spec,
        compiler_params=pltpu.CompilerParams(
            # direction axis independent; time axis is a true recurrence.
            # TODO(synk): on v7x use pltpu.CORE_PARALLEL on the direction axis to shard
            # the two chains across the 2 TensorCores; on 1-TC chips (v5e/v6e) consider
            # interleaving both directions inside one grid step instead.
            dimension_semantics=("parallel", "arbitrary"),
        ),
    )(xproj, wh, bhn)


# ----------------------------------------------------------------------------- #
# Weight preparation: gate-aligned padding (H -> Hp multiple of 128), bias folding.
# ----------------------------------------------------------------------------- #
def _pad_gate_cols(w, H, Hp):
    """w: (..., 3H) -> (..., 3Hp), zero-padding each gate chunk (r|z|n) to Hp."""
    if Hp == H:
        return w
    pad = [(0, 0)] * (w.ndim - 1) + [(0, Hp - H)]
    return jnp.concatenate(
        [jnp.pad(w[..., g * H:(g + 1) * H], pad) for g in range(3)], axis=-1)


def _pad_hidden_rows(w, H, Hp):
    """w: (2H, C) -> (2Hp, C): fwd features at rows 0:H, bwd at rows Hp:Hp+H."""
    if Hp == H:
        return w
    C = w.shape[1]
    out = jnp.zeros((2 * Hp, C), w.dtype)
    out = out.at[0:H, :].set(w[0:H])
    out = out.at[Hp:Hp + H, :].set(w[H:2 * H])
    return out


def _prep_layer_weights(p_f, p_b, H, Hp, first_layer):
    def one_dir(p):
        wi_t = _pad_gate_cols(p["Wih"].T, H, Hp)            # (in, 3Hp)
        if not first_layer:
            wi_t = _pad_hidden_rows(wi_t, H, Hp)            # (2Hp, 3Hp)
        # fold b_hh[r], b_hh[z] into the hoisted bias (b_hh[n] must stay in-kernel)
        bi = p["bih"] + jnp.concatenate(
            [p["bhh"][:H], p["bhh"][H:2 * H], jnp.zeros((H,), p["bhh"].dtype)])
        bi = _pad_gate_cols(bi[None, :], H, Hp)[0]          # (3Hp,)
        wh_t = _pad_gate_cols(p["Whh"].T, H, Hp)            # (H, 3Hp)
        wh_t = jnp.pad(wh_t, ((0, Hp - H), (0, 0)))         # (Hp, 3Hp)
        bhn = jnp.pad(p["bhh"][2 * H:3 * H], (0, Hp - H))   # (Hp,)
        return wi_t, bi, wh_t, bhn

    wi_f, bi_f, wh_f, bhn_f = one_dir(p_f)
    wi_b, bi_b, wh_b, bhn_b = one_dir(p_b)
    wi = jnp.concatenate([wi_f, wi_b], axis=1)              # (in_pad, 6Hp)
    bi = jnp.concatenate([bi_f, bi_b], axis=0)              # (6Hp,)
    wh = jnp.stack([wh_f, wh_b], axis=0)                    # (2, Hp, 3Hp)
    bhn = jnp.stack([bhn_f[None, :], bhn_b[None, :]], axis=0)  # (2, 1, Hp)
    return wi, bi, wh, bhn


# ----------------------------------------------------------------------------- #
# Parameter construction (deterministic, PyTorch-style shapes & init ranges).
# ----------------------------------------------------------------------------- #
def init_encoder_params(key, vocab_size, emb_dim, hidden_size, num_layers):
    params = {}
    key, ek = jax.random.split(key)
    params["embedding"] = jax.random.normal(ek, (vocab_size, emb_dim), jnp.float32)

    k = 1.0 / jnp.sqrt(jnp.float32(hidden_size))
    gru = []
    for layer in range(num_layers):
        in_dim = emb_dim if layer == 0 else 2 * hidden_size
        dirs = []
        for _ in range(2):  # forward, backward
            key, k1, k2, k3, k4 = jax.random.split(key, 5)
            dirs.append({
                "Wih": jax.random.uniform(k1, (3 * hidden_size, in_dim), jnp.float32, -k, k),
                "Whh": jax.random.uniform(k2, (3 * hidden_size, hidden_size), jnp.float32, -k, k),
                "bih": jax.random.uniform(k3, (3 * hidden_size,), jnp.float32, -k, k),
                "bhh": jax.random.uniform(k4, (3 * hidden_size,), jnp.float32, -k, k),
            })
        gru.append(dirs)
    params["gru"] = gru
    return params


# ----------------------------------------------------------------------------- #
# Encoder forward (Pallas-backed).
# ----------------------------------------------------------------------------- #
def encoder_forward_pallas(params, tokens, hidden_size, num_layers, time_block=8):
    H = hidden_size
    Hp = _round_up(H, 128)          # lane-align gate chunks
    B, T = tokens.shape
    Bp = _round_up(B, 8)            # sublane-align batch
    Tt = min(time_block, T)
    T_pad = _round_up(T, Tt)

    # Embedding lookup (gather) + dropout (p=0 -> identity) -- plain-JAX glue.
    # TODO(synk): inter-layer dropout (p=0 in this config) omitted as identity.
    emb = jnp.take(params["embedding"], tokens, axis=0)          # (B, T, E)
    x = jnp.transpose(emb, (1, 0, 2)).astype(jnp.float32)        # time-major (T, B, E)
    if Bp > B:
        x = jnp.pad(x, ((0, 0), (0, Bp - B), (0, 0)))            # (T, Bp, E)

    finals = []
    out_pad = None
    for layer in range(num_layers):
        p_f, p_b = params["gru"][layer]
        wi, bi, wh, bhn = _prep_layer_weights(p_f, p_b, H, Hp, first_layer=(layer == 0))

        # Hoisted input projection: ONE bf16 matmul for both directions, all steps.
        # Result stays f32 in a (T, Bp, 6Hp) slab -- no transpose, no extra HBM pass.
        # TODO(synk): store this slab (and the kernel output) in bf16 for production
        # shapes (v7x 64 MiB VMEM); kept f32 here for the exact tail-padding trick.
        gx = jnp.dot(x.astype(jnp.bfloat16), wi.astype(jnp.bfloat16),
                     preferred_element_type=jnp.float32) + bi     # (T, Bp, 6Hp) f32

        # Tail padding (T % Tt != 0): rows crafted so h == 0 stays EXACTLY 0 through
        # padded steps (r = sigmoid(0) = 0.5, gx_n = -0.5*b_hh_n cancels r*b_hh_n),
        # so the backward chain -- which meets the padding first -- is unaffected.
        if T_pad > T:
            zeros2 = jnp.zeros((2 * Hp,), jnp.float32)
            pad_row = jnp.concatenate(
                [zeros2, -0.5 * bhn[0, 0], zeros2, -0.5 * bhn[1, 0]], axis=0)
            gx = jnp.concatenate(
                [gx, jnp.broadcast_to(pad_row, (T_pad - T, Bp, 6 * Hp))], axis=0)

        out_pad = bidir_gru_pallas(gx, wh.astype(jnp.bfloat16), bhn,
                                   time_block=Tt)[:T]             # (T, Bp, 2Hp)

        # Final hidden: forward = hidden at last real step, backward = hidden at step 0.
        finals.append(jnp.concatenate(
            [out_pad[T - 1, :B, :H], out_pad[0, :B, Hp:Hp + H]], axis=-1))

        # Next layer consumes the padded layout directly (its input weights have zero
        # rows at the padded positions) -- no compaction / extra HBM pass between layers.
        x = out_pad

    out_f = out_pad[:, :B, :H]
    out_b = out_pad[:, :B, Hp:Hp + H]
    output = jnp.transpose(jnp.concatenate([out_f, out_b], axis=-1), (1, 0, 2))  # (B,T,2H)
    hidden = jnp.stack(finals, axis=0)                                           # (L,B,2H)
    return output, hidden


# ----------------------------------------------------------------------------- #
# Pure-JAX reference (lax.scan) with the SAME precision choice (bf16 MXU operands,
# f32 accumulation) so the kernel logic can be checked with a tight tolerance.
# ----------------------------------------------------------------------------- #
def gru_dir_ref(x_tbe, p, H, reverse):
    Wih_T = p["Wih"].T.astype(jnp.bfloat16)
    Whh_T = p["Whh"].T.astype(jnp.bfloat16)
    bih, bhh = p["bih"], p["bhh"]
    B = x_tbe.shape[1]

    def step(h, x):
        gx = jnp.dot(x.astype(jnp.bfloat16), Wih_T,
                     preferred_element_type=jnp.float32) + bih
        gh = jnp.dot(h.astype(jnp.bfloat16), Whh_T,
                     preferred_element_type=jnp.float32) + bhh
        r = jax.nn.sigmoid(gx[:, :H] + gh[:, :H])
        z = jax.nn.sigmoid(gx[:, H:2 * H] + gh[:, H:2 * H])
        n = jnp.tanh(gx[:, 2 * H:] + r * gh[:, 2 * H:])
        h_new = (1.0 - z) * n + z * h
        return h_new, h_new

    xs = x_tbe[::-1] if reverse else x_tbe
    h0 = jnp.zeros((B, H), jnp.float32)
    h_last, ys = lax.scan(step, h0, xs)
    if reverse:
        ys = ys[::-1]
    return ys, h_last


def encoder_forward_ref(params, tokens, hidden_size, num_layers):
    emb = jnp.take(params["embedding"], tokens, axis=0)
    x = jnp.transpose(emb, (1, 0, 2)).astype(jnp.float32)
    finals = []
    for layer in range(num_layers):
        of, hf = gru_dir_ref(x, params["gru"][layer][0], hidden_size, False)
        ob, hb = gru_dir_ref(x, params["gru"][layer][1], hidden_size, True)
        x = jnp.concatenate([of, ob], axis=-1)
        finals.append(jnp.concatenate([hf, hb], axis=-1))
    return jnp.transpose(x, (1, 0, 2)), jnp.stack(finals, axis=0)


# ----------------------------------------------------------------------------- #
if __name__ == "__main__":
    configs = [
        # single layer, T divisible by the time block
        dict(vocab_size=50, emb_dim=16, hidden_size=32, num_layers=1,
             batch_size=4, seq_len=8, time_block=8),
        # multi-layer + ragged T (exercises the padded/masked tail) + multi-block carry
        dict(vocab_size=50, emb_dim=16, hidden_size=32, num_layers=2,
             batch_size=4, seq_len=7, time_block=4),
    ]

    key = jax.random.PRNGKey(0)
    for cfg in configs:
        key, pkey, tkey = jax.random.split(key, 3)
        params = init_encoder_params(pkey, cfg["vocab_size"], cfg["emb_dim"],
                                     cfg["hidden_size"], cfg["num_layers"])
        tokens = jax.random.randint(tkey, (cfg["batch_size"], cfg["seq_len"]),
                                    0, cfg["vocab_size"], jnp.int32)

        fwd = jax.jit(functools.partial(
            encoder_forward_pallas,
            hidden_size=cfg["hidden_size"], num_layers=cfg["num_layers"],
            time_block=cfg["time_block"]))
        output, hidden = fwd(params, tokens)
        jax.block_until_ready((output, hidden))

        out_ref, hid_ref = encoder_forward_ref(
            params, tokens, cfg["hidden_size"], cfg["num_layers"])
        assert output.shape == (cfg["batch_size"], cfg["seq_len"], 2 * cfg["hidden_size"])
        assert hidden.shape == (cfg["num_layers"], cfg["batch_size"], 2 * cfg["hidden_size"])
        assert jnp.allclose(output, out_ref, atol=2e-3, rtol=2e-3), \
            float(jnp.max(jnp.abs(output - out_ref)))
        assert jnp.allclose(hidden, hid_ref, atol=2e-3, rtol=2e-3), \
            float(jnp.max(jnp.abs(hidden - hid_ref)))

    print("KERNEL_OK")
</pallas_src>

<mosaic_0001>
module attributes {stable_mosaic.version = 11 : i64} {
  func.func @_bidir_gru_kernel(%arg0: i32, %arg1: i32, %arg2: memref<8x8x384xf32, #tpu.memory_space<vmem>>, %arg3: memref<1x128x384xbf16, #tpu.memory_space<vmem>>, %arg4: memref<1x1x128xf32, #tpu.memory_space<vmem>>, %arg5: memref<8x8x128xf32, #tpu.memory_space<vmem>>, %arg6: memref<8x128xf32, #tpu.memory_space<vmem>>) attributes {dimension_semantics = [#tpu.dimension_semantics<parallel>, #tpu.dimension_semantics<arbitrary>], iteration_bounds = array<i64: 2, 1>, scalar_prefetch = 0 : i64, scratch_operands = 1 : i64, tpu.core_type = #tpu.core_type<tc>, window_params = [{transform_indices = @transform_0, window_bounds = array<i64: 8, 8, 384>}, {transform_indices = @transform_1, window_bounds = array<i64: 1, 128, 384>}, {transform_indices = @transform_2, window_bounds = array<i64: 1, 1, 128>}, {transform_indices = @transform_3, window_bounds = array<i64: 8, 8, 128>}]} {
    %c0_i32 = arith.constant 0 : i32
    %0 = arith.cmpi eq, %arg1, %c0_i32 : i32
    %1 = arith.extui %0 : i1 to i32
    %c0_i32_0 = arith.constant 0 : i32
    %2 = arith.cmpi ne, %1, %c0_i32_0 : i32
    scf.if %2 {
      %cst = arith.constant 0.000000e+00 : f32
      %15 = vector.broadcast %cst : f32 to vector<8x128xf32>
      %c0_9 = arith.constant 0 : index
      %c0_10 = arith.constant 0 : index
      %16 = vector.load %arg6[%c0_9, %c0_10] : memref<8x128xf32, #tpu.memory_space<vmem>>, vector<8x128xf32>
      tpu.vector_store %arg6[%c0_9, %c0_10], %15 {strides = array<i32>} : memref<8x128xf32, #tpu.memory_space<vmem>>, vector<8x128xf32>,
    } else {
    }
    %c0 = arith.constant 0 : index
    %c0_1 = arith.constant 0 : index
    %c0_2 = arith.constant 0 : index
    %3 = vector.load %arg3[%c0, %c0_1, %c0_2] : memref<1x128x384xbf16, #tpu.memory_space<vmem>>, vector<1x128x384xbf16>
    %4 = vector.shape_cast %3 : vector<1x128x384xbf16> to vector<128x384xbf16>
    %c0_3 = arith.constant 0 : index
    %c0_4 = arith.constant 0 : index
    %c0_5 = arith.constant 0 : index
    %5 = vector.load %arg4[%c0_3, %c0_4, %c0_5] : memref<1x1x128xf32, #tpu.memory_space<vmem>>, vector<1x1x128xf32>
    %6 = vector.shape_cast %5 : vector<1x1x128xf32> to vector<1x128xf32>
    %7 = vector.shape_cast %6 : vector<1x128xf32> to vector<1x128xf32>
    %8 = vector.broadcast %7 : vector<1x128xf32> to vector<8x128xf32>
    %c0_i32_6 = arith.constant 0 : i32
    %9 = arith.cmpi eq, %arg0, %c0_i32_6 : i32
    %10 = arith.extui %9 : i1 to i32
    %c0_i32_7 = arith.constant 0 : i32
    %11 = arith.cmpi ne, %10, %c0_i32_7 : i32
    scf.if %11 {
      %c0_9 = arith.constant 0 : index
      %c0_10 = arith.constant 0 : index
      %15 = vector.load %arg6[%c0_9, %c0_10] : memref<8x128xf32, #tpu.memory_space<vmem>>, vector<8x128xf32>
      %c0_11 = arith.constant 0 : index
      %c0_12 = arith.constant 0 : index
      %c0_13 = arith.constant 0 : index
      %16 = vector.load %arg2[%c0_11, %c0_12, %c0_13] : memref<8x8x384xf32, #tpu.memory_space<vmem>>, vector<1x8x384xf32>
      %17 = vector.shape_cast %16 : vector<1x8x384xf32> to vector<8x384xf32>
      %18 = arith.truncf %15 : vector<8x128xf32> to vector<8x128xbf16>
      %cst = arith.constant dense<0.000000e+00> : vector<8x384xf32>
      %19 = tpu.matmul %18, %4, %cst {dimension_numbers = #tpu.dot_dimension_numbers<[1], [0], [0], [1], [0, 0, 1, 1], [], []>} : vector<8x128xbf16>, vector<128x384xbf16>, vector<8x384xf32> -> vector<8x384xf32>
      %20 = vector.extract_strided_slice %17 {offsets = [0, 0], sizes = [8, 128], strides = [1, 1]} : vector<8x384xf32> to vector<8x128xf32>
      %21 = vector.extract_strided_slice %19 {offsets = [0, 0], sizes = [8, 128], strides = [1, 1]} : vector<8x384xf32> to vector<8x128xf32>
      %22 = arith.addf %20, %21 : vector<8x128xf32>
      %23 = arith.negf %22 : vector<8x128xf32>
      %24 = math.exp %23 : vector<8x128xf32>
      %cst_14 = arith.constant 1.000000e+00 : f32
      %25 = vector.broadcast %cst_14 : f32 to vector<8x128xf32>
      %26 = arith.addf %25, %24 : vector<8x128xf32>
      %27 = arith.divf %25, %26 : vector<8x128xf32>
      %28 = vector.extract_strided_slice %17 {offsets = [0, 128], sizes = [8, 128], strides = [1, 1]} : vector<8x384xf32> to vector<8x128xf32>
      %29 = vector.extract_strided_slice %19 {offsets = [0, 128], sizes = [8, 128], strides = [1, 1]} : vector<8x384xf32> to vector<8x128xf32>
      %30 = arith.addf %28, %29 : vector<8x128xf32>
      %31 = arith.negf %30 : vector<8x128xf32>
      %32 = math.exp %31 : vector<8x128xf32>
      %cst_15 = arith.constant 1.000000e+00 : f32
      %33 = vector.broadcast %cst_15 : f32 to vector<8x128xf32>
      %34 = arith.addf %33, %32 : vector<8x128xf32>
      %35 = arith.divf %33, %34 : vector<8x128xf32>
      %36 = vector.extract_strided_slice %17 {offsets = [0, 256], sizes = [8, 128], strides = [1, 1]} : vector<8x384xf32> to vector<8x128xf32>
      %37 = vector.extract_strided_slice %19 {offsets = [0, 256], sizes = [8, 128], strides = [1, 1]} : vector<8x384xf32> to vector<8x128xf32>
      %38 = arith.addf %37, %8 : vector<8x128xf32>
      %39 = arith.mulf %27, %38 : vector<8x128xf32>
      %40 = arith.addf %36, %39 : vector<8x128xf32>
      %41 = math.tanh %40 : vector<8x128xf32>
      %cst_16 = arith.constant 1.000000e+00 : f32
      %42 = vector.broadcast %cst_16 : f32 to vector<8x128xf32>
      %43 = arith.subf %42, %35 : vector<8x128xf32>
      %44 = arith.mulf %43, %41 : vector<8x128xf32>
      %45 = arith.mulf %35, %15 : vector<8x128xf32>
      %46 = arith.addf %44, %45 : vector<8x128xf32>
      %c0_17 = arith.constant 0 : index
      %c0_18 = arith.constant 0 : index
      %c0_19 = arith.constant 0 : index
      %47 = vector.load %arg5[%c0_17, %c0_18, %c0_19] : memref<8x8x128xf32, #tpu.memory_space<vmem>>, vector<1x8x128xf32>
      %48 = vector.shape_cast %47 : vector<1x8x128xf32> to vector<8x128xf32>
      %49 = vector.shape_cast %46 : vector<8x128xf32> to vector<1x8x128xf32>
      tpu.vector_store %arg5[%c0_17, %c0_18, %c0_19], %49 {strides = array<i32>} : memref<8x8x128xf32, #tpu.memory_space<vmem>>, vector<1x8x128xf32>,
      %c1 = arith.constant 1 : index
      %c0_20 = arith.constant 0 : index
      %c0_21 = arith.constant 0 : index
      %50 = vector.load %arg2[%c1, %c0_20, %c0_21] : memref<8x8x384xf32, #tpu.memory_space<vmem>>, vector<1x8x384xf32>
      %51 = vector.shape_cast %50 : vector<1x8x384xf32> to vector<8x384xf32>
      %52 = arith.truncf %46 : vector<8x128xf32> to vector<8x128xbf16>
      %cst_22 = arith.constant dense<0.000000e+00> : vector<8x384xf32>
      %53 = tpu.matmul %52, %4, %cst_22 {dimension_numbers = #tpu.dot_dimension_numbers<[1], [0], [0], [1], [0, 0, 1, 1], [], []>} : vector<8x128xbf16>, vector<128x384xbf16>, vector<8x384xf32> -> vector<8x384xf32>
      %54 = vector.extract_strided_slice %51 {offsets = [0, 0], sizes = [8, 128], strides = [1, 1]} : vector<8x384xf32> to vector<8x128xf32>
      %55 = vector.extract_strided_slice %53 {offsets = [0, 0], sizes = [8, 128], strides = [1, 1]} : vector<8x384xf32> to vector<8x128xf32>
      %56 = arith.addf %54, %55 : vector<8x128xf32>
      %57 = arith.negf %56 : vector<8x128xf32>
      %58 = math.exp %57 : vector<8x128xf32>
      %cst_23 = arith.constant 1.000000e+00 : f32
      %59 = vector.broadcast %cst_23 : f32 to vector<8x128xf32>
      %60 = arith.addf %59, %58 : vector<8x128xf32>
      %61 = arith.divf %59, %60 : vector<8x128xf32>
      %62 = vector.extract_strided_slice %51 {offsets = [0, 128], sizes = [8, 128], strides = [1, 1]} : vector<8x384xf32> to vector<8x128xf32>
      %63 = vector.extract_strided_slice %53 {offsets = [0, 128], sizes = [8, 128], strides = [1, 1]} : vector<8x384xf32> to vector<8x128xf32>
      %64 = arith.addf %62, %63 : vector<8x128xf32>
      %65 = arith.negf %64 : vector<8x128xf32>
      %66 = math.exp %65 : vector<8x128xf32>
      %cst_24 = arith.constant 1.000000e+00 : f32
      %67 = vector.broadcast %cst_24 : f32 to vector<8x128xf32>
      %68 = arith.addf %67, %66 : vector<8x128xf32>
      %69 = arith.divf %67, %68 : vector<8x128xf32>
      %70 = vector.extract_strided_slice %51 {offsets = [0, 256], sizes = [8, 128], strides = [1, 1]} : vector<8x384xf32> to vector<8x128xf32>
      %71 = vector.extract_strided_slice %53 {offsets = [0, 256], sizes = [8, 128], strides = [1, 1]} : vector<8x384xf32> to vector<8x128xf32>
      %72 = arith.addf %71, %8 : vector<8x128xf32>
      %73 = arith.mulf %61, %72 : vector<8x128xf32>
      %74 = arith.addf %70, %73 : vector<8x128xf32>
      %75 = math.tanh %74 : vector<8x128xf32>
      %cst_25 = arith.constant 1.000000e+00 : f32
      %76 = vector.broadcast %cst_25 : f32 to vector<8x128xf32>
      %77 = arith.subf %76, %69 : vector<8x128xf32>
      %78 = arith.mulf %77, %75 : vector<8x128xf32>
      %79 = arith.mulf %69, %46 : vector<8x128xf32>
      %80 = arith.addf %78, %79 : vector<8x128xf32>
      %c1_26 = arith.constant 1 : index
      %c0_27 = arith.constant 0 : index
      %c0_28 = arith.constant 0 : index
      %81 = vector.load %arg5[%c1_26, %c0_27, %c0_28] : memref<8x8x128xf32, #tpu.memory_space<vmem>>, vector<1x8x128xf32>
      %82 = vector.shape_cast %81 : vector<1x8x128xf32> to vector<8x128xf32>
      %83 = vector.shape_cast %80 : vector<8x128xf32> to vector<1x8x128xf32>
      tpu.vector_store %arg5[%c1_26, %c0_27, %c0_28], %83 {strides = array<i32>} : memref<8x8x128xf32, #tpu.memory_space<vmem>>, vector<1x8x128xf32>,
      %c2 = arith.constant 2 : index
      %c0_29 = arith.constant 0 : index
      %c0_30 = arith.constant 0 : index
      %84 = vector.load %arg2[%c2, %c0_29, %c0_30] : memref<8x8x384xf32, #tpu.memory_space<vmem>>, vector<1x8x384xf32>
      %85 = vector.shape_cast %84 : vector<1x8x384xf32> to vector<8x384xf32>
      %86 = arith.truncf %80 : vector<8x128xf32> to vector<8x128xbf16>
      %cst_31 = arith.constant dense<0.000000e+00> : vector<8x384xf32>
      %87 = tpu.matmul %86, %4, %cst_31 {dimension_numbers = #tpu.dot_dimension_numbers<[1], [0], [0], [1], [0, 0, 1, 1], [], []>} : vector<8x128xbf16>, vector<128x384xbf16>, vector<8x384xf32> -> vector<8x384xf32>
      %88 = vector.extract_strided_slice %85 {offsets = [0, 0], sizes = [8, 128], strides = [1, 1]} : vector<8x384xf32> to vector<8x128xf32>
      %89 = vector.extract_strided_slice %87 {offsets = [0, 0], sizes = [8, 128], strides = [1, 1]} : vector<8x384xf32> to vector<8x128xf32>
      %90 = arith.addf %88, %89 : vector<8x128xf32>
      %91 = arith.negf %90 : vector<8x128xf32>
      %92 = math.exp %91 : vector<8x128xf32>
      %cst_32 = arith.constant 1.000000e+00 : f32
      %93 = vector.broadcast %cst_32 : f32 to vector<8x128xf32>
      %94 = arith.addf %93, %92 : vector<8x128xf32>
      %95 = arith.divf %93, %94 : vector<8x128xf32>
      %96 = vector.extract_strided_slice %85 {offsets = [0, 128], sizes = [8, 128], strides = [1, 1]} : vector<8x384xf32> to vector<8x128xf32>
      %97 = vector.extract_strided_slice %87 {offsets = [0, 128], sizes = [8, 128], strides = [1, 1]} : vector<8x384xf32> to vector<8x128xf32>
      %98 = arith.addf %96, %97 : vector<8x128xf32>
      %99 = arith.negf %98 : vector<8x128xf32>
      %100 = math.exp %99 : vector<8x128xf32>
      %cst_33 = arith.constant 1.000000e+00 : f32
      %101 = vector.broadcast %cst_33 : f32 to vector<8x128xf32>
      %102 = arith.addf %101, %100 : vector<8x128xf32>
      %103 = arith.divf %101, %102 : vector<8x128xf32>
      %104 = vector.extract_strided_slice %85 {offsets = [0, 256], sizes = [8, 128], strides = [1, 1]} : vector<8x384xf32> to vector<8x128xf32>
      %105 = vector.extract_strided_slice %87 {offsets = [0, 256], sizes = [8, 128], strides = [1, 1]} : vector<8x384xf32> to vector<8x128xf32>
      %106 = arith.addf %105, %8 : vector<8x128xf32>
      %107 = arith.mulf %95, %106 : vector<8x128xf32>
      %108 = arith.addf %104, %107 : vector<8x128xf32>
      %109 = math.tanh %108 : vector<8x128xf32>
      %cst_34 = arith.constant 1.000000e+00 : f32
      %110 = vector.broadcast %cst_34 : f32 to vector<8x128xf32>
      %111 = arith.subf %110, %103 : vector<8x128xf32>
      %112 = arith.mulf %111, %109 : vector<8x128xf32>
      %113 = arith.mulf %103, %80 : vector<8x128xf32>
      %114 = arith.addf %112, %113 : vector<8x128xf32>
      %c2_35 = arith.constant 2 : index
      %c0_36 = arith.constant 0 : index
      %c0_37 = arith.constant 0 : index
      %115 = vector.load %arg5[%c2_35, %c0_36, %c0_37] : memref<8x8x128xf32, #tpu.memory_space<vmem>>, vector<1x8x128xf32>
      %116 = vector.shape_cast %115 : vector<1x8x128xf32> to vector<8x128xf32>
      %117 = vector.shape_cast %114 : vector<8x128xf32> to vector<1x8x128xf32>
      tpu.vector_store %arg5[%c2_35, %c0_36, %c0_37], %117 {strides = array<i32>} : memref<8x8x128xf32, #tpu.memory_space<vmem>>, vector<1x8x128xf32>,
      %c3 = arith.constant 3 : index
      %c0_38 = arith.constant 0 : index
      %c0_39 = arith.constant 0 : index
      %118 = vector.load %arg2[%c3, %c0_38, %c0_39] : memref<8x8x384xf32, #tpu.memory_space<vmem>>, vector<1x8x384xf32>
      %119 = vector.shape_cast %118 : vector<1x8x384xf32> to vector<8x384xf32>
      %120 = arith.truncf %114 : vector<8x128xf32> to vector<8x128xbf16>
      %cst_40 = arith.constant dense<0.000000e+00> : vector<8x384xf32>
      %121 = tpu.matmul %120, %4, %cst_40 {dimension_numbers = #tpu.dot_dimension_numbers<[1], [0], [0], [1], [0, 0, 1, 1], [], []>} : vector<8x128xbf16>, vector<128x384xbf16>, vector<8x384xf32> -> vector<8x384xf32>
      %122 = vector.extract_strided_slice %119 {offsets = [0, 0], sizes = [8, 128], strides = [1, 1]} : vector<8x384xf32> to vector<8x128xf32>
      %123 = vector.extract_strided_slice %121 {offsets = [0, 0], sizes = [8, 128], strides = [1, 1]} : vector<8x384xf32> to vector<8x128xf32>
      %124 = arith.addf %122, %123 : vector<8x128xf32>
      %125 = arith.negf %124 : vector<8x128xf32>
      %126 = math.exp %125 : vector<8x128xf32>
      %cst_41 = arith.constant 1.000000e+00 : f32
      %127 = vector.broadcast %cst_41 : f32 to vector<8x128xf32>
      %128 = arith.addf %127, %126 : vector<8x128xf32>
      %129 = arith.divf %127, %128 : vector<8x128xf32>
      %130 = vector.extract_strided_slice %119 {offsets = [0, 128], sizes = [8, 128], strides = [1, 1]} : vector<8x384xf32> to vector<8x128xf32>
      %131 = vector.extract_strided_slice %121 {offsets = [0, 128], sizes = [8, 128], strides = [1, 1]} : vector<8x384xf32> to vector<8x128xf32>
      %132 = arith.addf %130, %131 : vector<8x128xf32>
      %133 = arith.negf %132 : vector<8x128xf32>
      %134 = math.exp %133 : vector<8x128xf32>
      %cst_42 = arith.constant 1.000000e+00 : f32
      %135 = vector.broadcast %cst_42 : f32 to vector<8x128xf32>
      %136 = arith.addf %135, %134 : vector<8x128xf32>
      %137 = arith.divf %135, %136 : vector<8x128xf32>
      %138 = vector.extract_strided_slice %119 {offsets = [0, 256], sizes = [8, 128], strides = [1, 1]} : vector<8x384xf32> to vector<8x128xf32>
      %139 = vector.extract_strided_slice %121 {offsets = [0, 256], sizes = [8, 128], strides = [1, 1]} : vector<8x384xf32> to vector<8x128xf32>
      %140 = arith.addf %139, %8 : vector<8x128xf32>
      %141 = arith.mulf %129, %140 : vector<8x128xf32>
      %142 = arith.addf %138, %141 : vector<8x128xf32>
      %143 = math.tanh %142 : vector<8x128xf32>
      %cst_43 = arith.constant 1.000000e+00 : f32
      %144 = vector.broadcast %cst_43 : f32 to vector<8x128xf32>
      %145 = arith.subf %144, %137 : vector<8x128xf32>
      %146 = arith.mulf %145, %143 : vector<8x128xf32>
      %147 = arith.mulf %137, %114 : vector<8x128xf32>
      %148 = arith.addf %146, %147 : vector<8x128xf32>
      %c3_44 = arith.constant 3 : index
      %c0_45 = arith.constant 0 : index
      %c0_46 = arith.constant 0 : index
      %149 = vector.load %arg5[%c3_44, %c0_45, %c0_46] : memref<8x8x128xf32, #tpu.memory_space<vmem>>, vector<1x8x128xf32>
      %150 = vector.shape_cast %149 : vector<1x8x128xf32> to vector<8x128xf32>
      %151 = vector.shape_cast %148 : vector<8x128xf32> to vector<1x8x128xf32>
      tpu.vector_store %arg5[%c3_44, %c0_45, %c0_46], %151 {strides = array<i32>} : memref<8x8x128xf32, #tpu.memory_space<vmem>>, vector<1x8x128xf32>,
      %c4 = arith.constant 4 : index
      %c0_47 = arith.constant 0 : index
      %c0_48 = arith.constant 0 : index
      %152 = vector.load %arg2[%c4, %c0_47, %c0_48] : memref<8x8x384xf32, #tpu.memory_space<vmem>>, vector<1x8x384xf32>
      %153 = vector.shape_cast %152 : vector<1x8x384xf32> to vector<8x384xf32>
      %154 = arith.truncf %148 : vector<8x128xf32> to vector<8x128xbf16>
      %cst_49 = arith.constant dense<0.000000e+00> : vector<8x384xf32>
      %155 = tpu.matmul %154, %4, %cst_49 {dimension_numbers = #tpu.dot_dimension_numbers<[1], [0], [0], [1], [0, 0, 1, 1], [], []>} : vector<8x128xbf16>, vector<128x384xbf16>, vector<8x384xf32> -> vector<8x384xf32>
      %156 = vector.extract_strided_slice %153 {offsets = [0, 0], sizes = [8, 128], strides = [1, 1]} : vector<8x384xf32> to vector<8x128xf32>
      %157 = vector.extract_strided_slice %155 {offsets = [0, 0], sizes = [8, 128], strides = [1, 1]} : vector<8x384xf32> to vector<8x128xf32>
      %158 = arith.addf %156, %157 : vector<8x128xf32>
      %159 = arith.negf %158 : vector<8x128xf32>
      %160 = math.exp %159 : vector<8x128xf32>
      %cst_50 = arith.constant 1.000000e+00 : f32
      %161 = vector.broadcast %cst_50 : f32 to vector<8x128xf32>
      %162 = arith.addf %161, %160 : vector<8x128xf32>
      %163 = arith.divf %161, %162 : vector<8x128xf32>
      %164 = vector.extract_strided_slice %153 {offsets = [0, 128], sizes = [8, 128], strides = [1, 1]} : vector<8x384xf32> to vector<8x128xf32>
      %165 = vector.extract_strided_slice %155 {offsets = [0, 128], sizes = [8, 128], strides = [1, 1]} : vector<8x384xf32> to vector<8x128xf32>
      %166 = arith.addf %164, %165 : vector<8x128xf32>
      %167 = arith.negf %166 : vector<8x128xf32>
      %168 = math.exp %167 : vector<8x128xf32>
      %cst_51 = arith.constant 1.000000e+00 : f32
      %169 = vector.broadcast %cst_51 : f32 to vector<8x128xf32>
      %170 = arith.addf %169, %168 : vector<8x128xf32>
      %171 = arith.divf %169, %170 : vector<8x128xf32>
      %172 = vector.extract_strided_slice %153 {offsets = [0, 256], sizes = [8, 128], strides = [1, 1]} : vector<8x384xf32> to vector<8x128xf32>
      %173 = vector.extract_strided_slice %155 {offsets = [0, 256], sizes = [8, 128], strides = [1, 1]} : vector<8x384xf32> to vector<8x128xf32>
      %174 = arith.addf %173, %8 : vector<8x128xf32>
      %175 = arith.mulf %163, %174 : vector<8x128xf32>
      %176 = arith.addf %172, %175 : vector<8x128xf32>
      %177 = math.tanh %176 : vector<8x128xf32>
      %cst_52 = arith.constant 1.000000e+00 : f32
      %178 = vector.broadcast %cst_52 : f32 to vector<8x128xf32>
      %179 = arith.subf %178, %171 : vector<8x128xf32>
      %180 = arith.mulf %179, %177 : vector<8x128xf32>
      %181 = arith.mulf %171, %148 : vector<8x128xf32>
      %182 = arith.addf %180, %181 : vector<8x128xf32>
      %c4_53 = arith.constant 4 : index
      %c0_54 = arith.constant 0 : index
      %c0_55 = arith.constant 0 : index
      %183 = vector.load %arg5[%c4_53, %c0_54, %c0_55] : memref<8x8x128xf32, #tpu.memory_space<vmem>>, vector<1x8x128xf32>
      %184 = vector.shape_cast %183 : vector<1x8x128xf32> to vector<8x128xf32>
      %185 = vector.shape_cast %182 : vector<8x128xf32> to vector<1x8x128xf32>
      tpu.vector_store %arg5[%c4_53, %c0_54, %c0_55], %185 {strides = array<i32>} : memref<8x8x128xf32, #tpu.memory_space<vmem>>, vector<1x8x128xf32>,
      %c5 = arith.constant 5 : index
      %c0_56 = arith.constant 0 : index
      %c0_57 = arith.constant 0 : index
      %186 = vector.load %arg2[%c5, %c0_56, %c0_57] : memref<8x8x384xf32, #tpu.memory_space<vmem>>, vector<1x8x384xf32>
      %187 = vector.shape_cast %186 : vector<1x8x384xf32> to vector<8x384xf32>
      %188 = arith.truncf %182 : vector<8x128xf32> to vector<8x128xbf16>
      %cst_58 = arith.constant dense<0.000000e+00> : vector<8x384xf32>
      %189 = tpu.matmul %188, %4, %cst_58 {dimension_numbers = #tpu.dot_dimension_numbers<[1], [0], [0], [1], [0, 0, 1, 1], [], []>} : vector<8x128xbf16>, vector<128x384xbf16>, vector<8x384xf32> -> vector<8x384xf32>
      %190 = vector.extract_strided_slice %187 {offsets = [0, 0], sizes = [8, 128], strides = [1, 1]} : vector<8x384xf32> to vector<8x128xf32>
      %191 = vector.extract_strided_slice %189 {offsets = [0, 0], sizes = [8, 128], strides = [1, 1]} : vector<8x384xf32> to vector<8x128xf32>
      %192 = arith.addf %190, %191 : vector<8x128xf32>
      %193 = arith.negf %192 : vector<8x128xf32>
      %194 = math.exp %193 : vector<8x128xf32>
      %cst_59 = arith.constant 1.000000e+00 : f32
      %195 = vector.broadcast %cst_59 : f32 to vector<8x128xf32>
      %196 = arith.addf %195, %194 : vector<8x128xf32>
      %197 = arith.divf %195, %196 : vector<8x128xf32>
      %198 = vector.extract_strided_slice %187 {offsets = [0, 128], sizes = [8, 128], strides = [1, 1]} : vector<8x384xf32> to vector<8x128xf32>
      %199 = vector.extract_strided_slice %189 {offsets = [0, 128], sizes = [8, 128], strides = [1, 1]} : vector<8x384xf32> to vector<8x128xf32>
      %200 = arith.addf %198, %199 : vector<8x128xf32>
      %201 = arith.negf %200 : vector<8x128xf32>
      %202 = math.exp %201 : vector<8x128xf32>
      %cst_60 = arith.constant 1.000000e+00 : f32
      %203 = vector.broadcast %cst_60 : f32 to vector<8x128xf32>
      %204 = arith.addf %203, %202 : vector<8x128xf32>
      %205 = arith.divf %203, %204 : vector<8x128xf32>
      %206 = vector.extract_strided_slice %187 {offsets = [0, 256], sizes = [8, 128], strides = [1, 1]} : vector<8x384xf32> to vector<8x128xf32>
      %207 = vector.extract_strided_slice %189 {offsets = [0, 256], sizes = [8, 128], strides = [1, 1]} : vector<8x384xf32> to vector<8x128xf32>
      %208 = arith.addf %207, %8 : vector<8x128xf32>
      %209 = arith.mulf %197, %208 : vector<8x128xf32>
      %210 = arith.addf %206, %209 : vector<8x128xf32>
      %211 = math.tanh %210 : vector<8x128xf32>
      %cst_61 = arith.constant 1.000000e+00 : f32
      %212 = vector.broadcast %cst_61 : f32 to vector<8x128xf32>
      %213 = arith.subf %212, %205 : vector<8x128xf32>
      %214 = arith.mulf %213, %211 : vector<8x128xf32>
      %215 = arith.mulf %205, %182 : vector<8x128xf32>
      %216 = arith.addf %214, %215 : vector<8x128xf32>
      %c5_62 = arith.constant 5 : index
      %c0_63 = arith.constant 0 : index
      %c0_64 = arith.constant 0 : index
      %217 = vector.load %arg5[%c5_62, %c0_63, %c0_64] : memref<8x8x128xf32, #tpu.memory_space<vmem>>, vector<1x8x128xf32>
      %218 = vector.shape_cast %217 : vector<1x8x128xf32> to vector<8x128xf32>
      %219 = vector.shape_cast %216 : vector<8x128xf32> to vector<1x8x128xf32>
      tpu.vector_store %arg5[%c5_62, %c0_63, %c0_64], %219 {strides = array<i32>} : memref<8x8x128xf32, #tpu.memory_space<vmem>>, vector<1x8x128xf32>,
      %c6 = arith.constant 6 : index
      %c0_65 = arith.constant 0 : index
      %c0_66 = arith.constant 0 : index
      %220 = vector.load %arg2[%c6, %c0_65, %c0_66] : memref<8x8x384xf32, #tpu.memory_space<vmem>>, vector<1x8x384xf32>
      %221 = vector.shape_cast %220 : vector<1x8x384xf32> to vector<8x384xf32>
      %222 = arith.truncf %216 : vector<8x128xf32> to vector<8x128xbf16>
      %cst_67 = arith.constant dense<0.000000e+00> : vector<8x384xf32>
      %223 = tpu.matmul %222, %4, %cst_67 {dimension_numbers = #tpu.dot_dimension_numbers<[1], [0], [0], [1], [0, 0, 1, 1], [], []>} : vector<8x128xbf16>, vector<128x384xbf16>, vector<8x384xf32> -> vector<8x384xf32>
      %224 = vector.extract_strided_slice %221 {offsets = [0, 0], sizes = [8, 128], strides = [1, 1]} : vector<8x384xf32> to vector<8x128xf32>
      %225 = vector.extract_strided_slice %223 {offsets = [0, 0], sizes = [8, 128], strides = [1, 1]} : vector<8x384xf32> to vector<8x128xf32>
      %226 = arith.addf %224, %225 : vector<8x128xf32>
      %227 = arith.negf %226 : vector<8x128xf32>
      %228 = math.exp %227 : vector<8x128xf32>
      %cst_68 = arith.constant 1.000000e+00 : f32
      %229 = vector.broadcast %cst_68 : f32 to vector<8x128xf32>
      %230 = arith.addf %229, %228 : vector<8x128xf32>
      %231 = arith.divf %229, %230 : vector<8x128xf32>
      %232 = vector.extract_strided_slice %221 {offsets = [0, 128], sizes = [8, 128], strides = [1, 1]} : vector<8x384xf32> to vector<8x128xf32>
      %233 = vector.extract_strided_slice %223 {offsets = [0, 128], sizes = [8, 128], strides = [1, 1]} : vector<8x384xf32> to vector<8x128xf32>
      %234 = arith.addf %232, %233 : vector<8x128xf32>
      %235 = arith.negf %234 : vector<8x128xf32>
      %236 = math.exp %235 : vector<8x128xf32>
      %cst_69 = arith.constant 1.000000e+00 : f32
      %237 = vector.broadcast %cst_69 : f32 to vector<8x128xf32>
      %238 = arith.addf %237, %236 : vector<8x128xf32>
      %239 = arith.divf %237, %238 : vector<8x128xf32>
      %240 = vector.extract_strided_slice %221 {offsets = [0, 256], sizes = [8, 128], strides = [1, 1]} : vector<8x384xf32> to vector<8x128xf32>
      %241 = vector.extract_strided_slice %223 {offsets = [0, 256], sizes = [8, 128], strides = [1, 1]} : vector<8x384xf32> to vector<8x128xf32>
      %242 = arith.addf %241, %8 : vector<8x128xf32>
      %243 = arith.mulf %231, %242 : vector<8x128xf32>
      %244 = arith.addf %240, %243 : vector<8x128xf32>
      %245 = math.tanh %244 : vector<8x128xf32>
      %cst_70 = arith.constant 1.000000e+00 : f32
      %246 = vector.broadcast %cst_70 : f32 to vector<8x128xf32>
      %247 = arith.subf %246, %239 : vector<8x128xf32>
      %248 = arith.mulf %247, %245 : vector<8x128xf32>
      %249 = arith.mulf %239, %216 : vector<8x128xf32>
      %250 = arith.addf %248, %249 : vector<8x128xf32>
      %c6_71 = arith.constant 6 : index
      %c0_72 = arith.constant 0 : index
      %c0_73 = arith.constant 0 : index
      %251 = vector.load %arg5[%c6_71, %c0_72, %c0_73] : memref<8x8x128xf32, #tpu.memory_space<vmem>>, vector<1x8x128xf32>
      %252 = vector.shape_cast %251 : vector<1x8x128xf32> to vector<8x128xf32>
      %253 = vector.shape_cast %250 : vector<8x128xf32> to vector<1x8x128xf32>
      tpu.vector_store %arg5[%c6_71, %c0_72, %c0_73], %253 {strides = array<i32>} : memref<8x8x128xf32, #tpu.memory_space<vmem>>, vector<1x8x128xf32>,
      %c7 = arith.constant 7 : index
      %c0_74 = arith.constant 0 : index
      %c0_75 = arith.constant 0 : index
      %254 = vector.load %arg2[%c7, %c0_74, %c0_75] : memref<8x8x384xf32, #tpu.memory_space<vmem>>, vector<1x8x384xf32>
      %255 = vector.shape_cast %254 : vector<1x8x384xf32> to vector<8x384xf32>
      %256 = arith.truncf %250 : vector<8x128xf32> to vector<8x128xbf16>
      %cst_76 = arith.constant dense<0.000000e+00> : vector<8x384xf32>
      %257 = tpu.matmul %256, %4, %cst_76 {dimension_numbers = #tpu.dot_dimension_numbers<[1], [0], [0], [1], [0, 0, 1, 1], [], []>} : vector<8x128xbf16>, vector<128x384xbf16>, vector<8x384xf32> -> vector<8x384xf32>
      %258 = vector.extract_strided_slice %255 {offsets = [0, 0], sizes = [8, 128], strides = [1, 1]} : vector<8x384xf32> to vector<8x128xf32>
      %259 = vector.extract_strided_slice %257 {offsets = [0, 0], sizes = [8, 128], strides = [1, 1]} : vector<8x384xf32> to vector<8x128xf32>
      %260 = arith.addf %258, %259 : vector<8x128xf32>
      %261 = arith.negf %260 : vector<8x128xf32>
      %262 = math.exp %261 : vector<8x128xf32>
      %cst_77 = arith.constant 1.000000e+00 : f32
      %263 = vector.broadcast %cst_77 : f32 to vector<8x128xf32>
      %264 = arith.addf %263, %262 : vector<8x128xf32>
      %265 = arith.divf %263, %264 : vector<8x128xf32>
      %266 = vector.extract_strided_slice %255 {offsets = [0, 128], sizes = [8, 128], strides = [1, 1]} : vector<8x384xf32> to vector<8x128xf32>
      %267 = vector.extract_strided_slice %257 {offsets = [0, 128], sizes = [8, 128], strides = [1, 1]} : vector<8x384xf32> to vector<8x128xf32>
      %268 = arith.addf %266, %267 : vector<8x128xf32>
      %269 = arith.negf %268 : vector<8x128xf32>
      %270 = math.exp %269 : vector<8x128xf32>
      %cst_78 = arith.constant 1.000000e+00 : f32
      %271 = vector.broadcast %cst_78 : f32 to vector<8x128xf32>
      %272 = arith.addf %271, %270 : vector<8x128xf32>
      %273 = arith.divf %271, %272 : vector<8x128xf32>
      %274 = vector.extract_strided_slice %255 {offsets = [0, 256], sizes = [8, 128], strides = [1, 1]} : vector<8x384xf32> to vector<8x128xf32>
      %275 = vector.extract_strided_slice %257 {offsets = [0, 256], sizes = [8, 128], strides = [1, 1]} : vector<8x384xf32> to vector<8x128xf32>
      %276 = arith.addf %275, %8 : vector<8x128xf32>
      %277 = arith.mulf %265, %276 : vector<8x128xf32>
      %278 = arith.addf %274, %277 : vector<8x128xf32>
      %279 = math.tanh %278 : vector<8x128xf32>
      %cst_79 = arith.constant 1.000000e+00 : f32
      %280 = vector.broadcast %cst_79 : f32 to vector<8x128xf32>
      %281 = arith.subf %280, %273 : vector<8x128xf32>
      %282 = arith.mulf %281, %279 : vector<8x128xf32>
      %283 = arith.mulf %273, %250 : vector<8x128xf32>
      %284 = arith.addf %282, %283 : vector<8x128xf32>
      %c7_80 = arith.constant 7 : index
      %c0_81 = arith.constant 0 : index
      %c0_82 = arith.constant 0 : index
      %285 = vector.load %arg5[%c7_80, %c0_81, %c0_82] : memref<8x8x128xf32, #tpu.memory_space<vmem>>, vector<1x8x128xf32>
      %286 = vector.shape_cast %285 : vector<1x8x128xf32> to vector<8x128xf32>
      %287 = vector.shape_cast %284 : vector<8x128xf32> to vector<1x8x128xf32>
      tpu.vector_store %arg5[%c7_80, %c0_81, %c0_82], %287 {strides = array<i32>} : memref<8x8x128xf32, #tpu.memory_space<vmem>>, vector<1x8x128xf32>,
      %c0_83 = arith.constant 0 : index
      %c0_84 = arith.constant 0 : index
      %288 = vector.load %arg6[%c0_83, %c0_84] : memref<8x128xf32, #tpu.memory_space<vmem>>, vector<8x128xf32>
      tpu.vector_store %arg6[%c0_83, %c0_84], %284 {strides = array<i32>} : memref<8x128xf32, #tpu.memory_space<vmem>>, vector<8x128xf32>,
    } else {
    }
    %c1_i32 = arith.constant 1 : i32
    %12 = arith.cmpi eq, %arg0, %c1_i32 : i32
    %13 = arith.extui %12 : i1 to i32
    %c0_i32_8 = arith.constant 0 : i32
    %14 = arith.cmpi ne, %13, %c0_i32_8 : i32
    scf.if %14 {
      %c0_9 = arith.constant 0 : index
      %c0_10 = arith.constant 0 : index
      %15 = vector.load %arg6[%c0_9, %c0_10] : memref<8x128xf32, #tpu.memory_space<vmem>>, vector<8x128xf32>
      %c7 = arith.constant 7 : index
      %c0_11 = arith.constant 0 : index
      %c0_12 = arith.constant 0 : index
      %16 = vector.load %arg2[%c7, %c0_11, %c0_12] : memref<8x8x384xf32, #tpu.memory_space<vmem>>, vector<1x8x384xf32>
      %17 = vector.shape_cast %16 : vector<1x8x384xf32> to vector<8x384xf32>
      %18 = arith.truncf %15 : vector<8x128xf32> to vector<8x128xbf16>
      %cst = arith.constant dense<0.000000e+00> : vector<8x384xf32>
      %19 = tpu.matmul %18, %4, %cst {dimension_numbers = #tpu.dot_dimension_numbers<[1], [0], [0], [1], [0, 0, 1, 1], [], []>} : vector<8x128xbf16>, vector<128x384xbf16>, vector<8x384xf32> -> vector<8x384xf32>
      %20 = vector.extract_strided_slice %17 {offsets = [0, 0], sizes = [8, 128], strides = [1, 1]} : vector<8x384xf32> to vector<8x128xf32>
      %21 = vector.extract_strided_slice %19 {offsets = [0, 0], sizes = [8, 128], strides = [1, 1]} : vector<8x384xf32> to vector<8x128xf32>
      %22 = arith.addf %20, %21 : vector<8x128xf32>
      %23 = arith.negf %22 : vector<8x128xf32>
      %24 = math.exp %23 : vector<8x128xf32>
      %cst_13 = arith.constant 1.000000e+00 : f32
      %25 = vector.broadcast %cst_13 : f32 to vector<8x128xf32>
      %26 = arith.addf %25, %24 : vector<8x128xf32>
      %27 = arith.divf %25, %26 : vector<8x128xf32>
      %28 = vector.extract_strided_slice %17 {offsets = [0, 128], sizes = [8, 128], strides = [1, 1]} : vector<8x384xf32> to vector<8x128xf32>
      %29 = vector.extract_strided_slice %19 {offsets = [0, 128], sizes = [8, 128], strides = [1, 1]} : vector<8x384xf32> to vector<8x128xf32>
      %30 = arith.addf %28, %29 : vector<8x128xf32>
      %31 = arith.negf %30 : vector<8x128xf32>
      %32 = math.exp %31 : vector<8x128xf32>
      %cst_14 = arith.constant 1.000000e+00 : f32
      %33 = vector.broadcast %cst_14 : f32 to vector<8x128xf32>
      %34 = arith.addf %33, %32 : vector<8x128xf32>
      %35 = arith.divf %33, %34 : vector<8x128xf32>
      %36 = vector.extract_strided_slice %17 {offsets = [0, 256], sizes = [8, 128], strides = [1, 1]} : vector<8x384xf32> to vector<8x128xf32>
      %37 = vector.extract_strided_slice %19 {offsets = [0, 256], sizes = [8, 128], strides = [1, 1]} : vector<8x384xf32> to vector<8x128xf32>
      %38 = arith.addf %37, %8 : vector<8x128xf32>
      %39 = arith.mulf %27, %38 : vector<8x128xf32>
      %40 = arith.addf %36, %39 : vector<8x128xf32>
      %41 = math.tanh %40 : vector<8x128xf32>
      %cst_15 = arith.constant 1.000000e+00 : f32
      %42 = vector.broadcast %cst_15 : f32 to vector<8x128xf32>
      %43 = arith.subf %42, %35 : vector<8x128xf32>
      %44 = arith.mulf %43, %41 : vector<8x128xf32>
      %45 = arith.mulf %35, %15 : vector<8x128xf32>
      %46 = arith.addf %44, %45 : vector<8x128xf32>
      %c7_16 = arith.constant 7 : index
      %c0_17 = arith.constant 0 : index
      %c0_18 = arith.constant 0 : index
      %47 = vector.load %arg5[%c7_16, %c0_17, %c0_18] : memref<8x8x128xf32, #tpu.memory_space<vmem>>, vector<1x8x128xf32>
      %48 = vector.shape_cast %47 : vector<1x8x128xf32> to vector<8x128xf32>
      %49 = vector.shape_cast %46 : vector<8x128xf32> to vector<1x8x128xf32>
      tpu.vector_store %arg5[%c7_16, %c0_17, %c0_18], %49 {strides = array<i32>} : memref<8x8x128xf32, #tpu.memory_space<vmem>>, vector<1x8x128xf32>,
      %c6 = arith.constant 6 : index
      %c0_19 = arith.constant 0 : index
      %c0_20 = arith.constant 0 : index
      %50 = vector.load %arg2[%c6, %c0_19, %c0_20] : memref<8x8x384xf32, #tpu.memory_space<vmem>>, vector<1x8x384xf32>
      %51 = vector.shape_cast %50 : vector<1x8x384xf32> to vector<8x384xf32>
      %52 = arith.truncf %46 : vector<8x128xf32> to vector<8x128xbf16>
      %cst_21 = arith.constant dense<0.000000e+00> : vector<8x384xf32>
      %53 = tpu.matmul %52, %4, %cst_21 {dimension_numbers = #tpu.dot_dimension_numbers<[1], [0], [0], [1], [0, 0, 1, 1], [], []>} : vector<8x128xbf16>, vector<128x384xbf16>, vector<8x384xf32> -> vector<8x384xf32>
      %54 = vector.extract_strided_slice %51 {offsets = [0, 0], sizes = [8, 128], strides = [1, 1]} : vector<8x384xf32> to vector<8x128xf32>
      %55 = vector.extract_strided_slice %53 {offsets = [0, 0], sizes = [8, 128], strides = [1, 1]} : vector<8x384xf32> to vector<8x128xf32>
      %56 = arith.addf %54, %55 : vector<8x128xf32>
      %57 = arith.negf %56 : vector<8x128xf32>
      %58 = math.exp %57 : vector<8x128xf32>
      %cst_22 = arith.constant 1.000000e+00 : f32
      %59 = vector.broadcast %cst_22 : f32 to vector<8x128xf32>
      %60 = arith.addf %59, %58 : vector<8x128xf32>
      %61 = arith.divf %59, %60 : vector<8x128xf32>
      %62 = vector.extract_strided_slice %51 {offsets = [0, 128], sizes = [8, 128], strides = [1, 1]} : vector<8x384xf32> to vector<8x128xf32>
      %63 = vector.extract_strided_slice %53 {offsets = [0, 128], sizes = [8, 128], strides = [1, 1]} : vector<8x384xf32> to vector<8x128xf32>
      %64 = arith.addf %62, %63 : vector<8x128xf32>
      %65 = arith.negf %64 : vector<8x128xf32>
      %66 = math.exp %65 : vector<8x128xf32>
      %cst_23 = arith.constant 1.000000e+00 : f32
      %67 = vector.broadcast %cst_23 : f32 to vector<8x128xf32>
      %68 = arith.addf %67, %66 : vector<8x128xf32>
      %69 = arith.divf %67, %68 : vector<8x128xf32>
      %70 = vector.extract_strided_slice %51 {offsets = [0, 256], sizes = [8, 128], strides = [1, 1]} : vector<8x384xf32> to vector<8x128xf32>
      %71 = vector.extract_strided_slice %53 {offsets = [0, 256], sizes = [8, 128], strides = [1, 1]} : vector<8x384xf32> to vector<8x128xf32>
      %72 = arith.addf %71, %8 : vector<8x128xf32>
      %73 = arith.mulf %61, %72 : vector<8x128xf32>
      %74 = arith.addf %70, %73 : vector<8x128xf32>
      %75 = math.tanh %74 : vector<8x128xf32>
      %cst_24 = arith.constant 1.000000e+00 : f32
      %76 = vector.broadcast %cst_24 : f32 to vector<8x128xf32>
      %77 = arith.subf %76, %69 : vector<8x128xf32>
      %78 = arith.mulf %77, %75 : vector<8x128xf32>
      %79 = arith.mulf %69, %46 : vector<8x128xf32>
      %80 = arith.addf %78, %79 : vector<8x128xf32>
      %c6_25 = arith.constant 6 : index
      %c0_26 = arith.constant 0 : index
      %c0_27 = arith.constant 0 : index
      %81 = vector.load %arg5[%c6_25, %c0_26, %c0_27] : memref<8x8x128xf32, #tpu.memory_space<vmem>>, vector<1x8x128xf32>
      %82 = vector.shape_cast %81 : vector<1x8x128xf32> to vector<8x128xf32>
      %83 = vector.shape_cast %80 : vector<8x128xf32> to vector<1x8x128xf32>
      tpu.vector_store %arg5[%c6_25, %c0_26, %c0_27], %83 {strides = array<i32>} : memref<8x8x128xf32, #tpu.memory_space<vmem>>, vector<1x8x128xf32>,
      %c5 = arith.constant 5 : index
      %c0_28 = arith.constant 0 : index
      %c0_29 = arith.constant 0 : index
      %84 = vector.load %arg2[%c5, %c0_28, %c0_29] : memref<8x8x384xf32, #tpu.memory_space<vmem>>, vector<1x8x384xf32>
      %85 = vector.shape_cast %84 : vector<1x8x384xf32> to vector<8x384xf32>
      %86 = arith.truncf %80 : vector<8x128xf32> to vector<8x128xbf16>
      %cst_30 = arith.constant dense<0.000000e+00> : vector<8x384xf32>
      %87 = tpu.matmul %86, %4, %cst_30 {dimension_numbers = #tpu.dot_dimension_numbers<[1], [0], [0], [1], [0, 0, 1, 1], [], []>} : vector<8x128xbf16>, vector<128x384xbf16>, vector<8x384xf32> -> vector<8x384xf32>
      %88 = vector.extract_strided_slice %85 {offsets = [0, 0], sizes = [8, 128], strides = [1, 1]} : vector<8x384xf32> to vector<8x128xf32>
      %89 = vector.extract_strided_slice %87 {offsets = [0, 0], sizes = [8, 128], strides = [1, 1]} : vector<8x384xf32> to vector<8x128xf32>
      %90 = arith.addf %88, %89 : vector<8x128xf32>
      %91 = arith.negf %90 : vector<8x128xf32>
      %92 = math.exp %91 : vector<8x128xf32>
      %cst_31 = arith.constant 1.000000e+00 : f32
      %93 = vector.broadcast %cst_31 : f32 to vector<8x128xf32>
      %94 = arith.addf %93, %92 : vector<8x128xf32>
      %95 = arith.divf %93, %94 : vector<8x128xf32>
      %96 = vector.extract_strided_slice %85 {offsets = [0, 128], sizes = [8, 128], strides = [1, 1]} : vector<8x384xf32> to vector<8x128xf32>
      %97 = vector.extract_strided_slice %87 {offsets = [0, 128], sizes = [8, 128], strides = [1, 1]} : vector<8x384xf32> to vector<8x128xf32>
      %98 = arith.addf %96, %97 : vector<8x128xf32>
      %99 = arith.negf %98 : vector<8x128xf32>
      %100 = math.exp %99 : vector<8x128xf32>
      %cst_32 = arith.constant 1.000000e+00 : f32
      %101 = vector.broadcast %cst_32 : f32 to vector<8x128xf32>
      %102 = arith.addf %101, %100 : vector<8x128xf32>
      %103 = arith.divf %101, %102 : vector<8x128xf32>
      %104 = vector.extract_strided_slice %85 {offsets = [0, 256], sizes = [8, 128], strides = [1, 1]} : vector<8x384xf32> to vector<8x128xf32>
      %105 = vector.extract_strided_slice %87 {offsets = [0, 256], sizes = [8, 128], strides = [1, 1]} : vector<8x384xf32> to vector<8x128xf32>
      %106 = arith.addf %105, %8 : vector<8x128xf32>
      %107 = arith.mulf %95, %106 : vector<8x128xf32>
      %108 = arith.addf %104, %107 : vector<8x128xf32>
      %109 = math.tanh %108 : vector<8x128xf32>
      %cst_33 = arith.constant 1.000000e+00 : f32
      %110 = vector.broadcast %cst_33 : f32 to vector<8x128xf32>
      %111 = arith.subf %110, %103 : vector<8x128xf32>
      %112 = arith.mulf %111, %109 : vector<8x128xf32>
      %113 = arith.mulf %103, %80 : vector<8x128xf32>
      %114 = arith.addf %112, %113 : vector<8x128xf32>
      %c5_34 = arith.constant 5 : index
      %c0_35 = arith.constant 0 : index
      %c0_36 = arith.constant 0 : index
      %115 = vector.load %arg5[%c5_34, %c0_35, %c0_36] : memref<8x8x128xf32, #tpu.memory_space<vmem>>, vector<1x8x128xf32>
      %116 = vector.shape_cast %115 : vector<1x8x128xf32> to vector<8x128xf32>
      %117 = vector.shape_cast %114 : vector<8x128xf32> to vector<1x8x128xf32>
      tpu.vector_store %arg5[%c5_34, %c0_35, %c0_36], %117 {strides = array<i32>} : memref<8x8x128xf32, #tpu.memory_space<vmem>>, vector<1x8x128xf32>,
      %c4 = arith.constant 4 : index
      %c0_37 = arith.constant 0 : index
      %c0_38 = arith.constant 0 : index
      %118 = vector.load %arg2[%c4, %c0_37, %c0_38] : memref<8x8x384xf32, #tpu.memory_space<vmem>>, vector<1x8x384xf32>
      %119 = vector.shape_cast %118 : vector<1x8x384xf32> to vector<8x384xf32>
      %120 = arith.truncf %114 : vector<8x128xf32> to vector<8x128xbf16>
      %cst_39 = arith.constant dense<0.000000e+00> : vector<8x384xf32>
      %121 = tpu.matmul %120, %4, %cst_39 {dimension_numbers = #tpu.dot_dimension_numbers<[1], [0], [0], [1], [0, 0, 1, 1], [], []>} : vector<8x128xbf16>, vector<128x384xbf16>, vector<8x384xf32> -> vector<8x384xf32>
      %122 = vector.extract_strided_slice %119 {offsets = [0, 0], sizes = [8, 128], strides = [1, 1]} : vector<8x384xf32> to vector<8x128xf32>
      %123 = vector.extract_strided_slice %121 {offsets = [0, 0], sizes = [8, 128], strides = [1, 1]} : vector<8x384xf32> to vector<8x128xf32>
      %124 = arith.addf %122, %123 : vector<8x128xf32>
      %125 = arith.negf %124 : vector<8x128xf32>
      %126 = math.exp %125 : vector<8x128xf32>
      %cst_40 = arith.constant 1.000000e+00 : f32
      %127 = vector.broadcast %cst_40 : f32 to vector<8x128xf32>
      %128 = arith.addf %127, %126 : vector<8x128xf32>
      %129 = arith.divf %127, %128 : vector<8x128xf32>
      %130 = vector.extract_strided_slice %119 {offsets = [0, 128], sizes = [8, 128], strides = [1, 1]} : vector<8x384xf32> to vector<8x128xf32>
      %131 = vector.extract_strided_slice %121 {offsets = [0, 128], sizes = [8, 128], strides = [1, 1]} : vector<8x384xf32> to vector<8x128xf32>
      %132 = arith.addf %130, %131 : vector<8x128xf32>
      %133 = arith.negf %132 : vector<8x128xf32>
      %134 = math.exp %133 : vector<8x128xf32>
      %cst_41 = arith.constant 1.000000e+00 : f32
      %135 = vector.broadcast %cst_41 : f32 to vector<8x128xf32>
      %136 = arith.addf %135, %134 : vector<8x128xf32>
      %137 = arith.divf %135, %136 : vector<8x128xf32>
      %138 = vector.extract_strided_slice %119 {offsets = [0, 256], sizes = [8, 128], strides = [1, 1]} : vector<8x384xf32> to vector<8x128xf32>
      %139 = vector.extract_strided_slice %121 {offsets = [0, 256], sizes = [8, 128], strides = [1, 1]} : vector<8x384xf32> to vector<8x128xf32>
      %140 = arith.addf %139, %8 : vector<8x128xf32>
      %141 = arith.mulf %129, %140 : vector<8x128xf32>
      %142 = arith.addf %138, %141 : vector<8x128xf32>
      %143 = math.tanh %142 : vector<8x128xf32>
      %cst_42 = arith.constant 1.000000e+00 : f32
      %144 = vector.broadcast %cst_42 : f32 to vector<8x128xf32>
      %145 = arith.subf %144, %137 : vector<8x128xf32>
      %146 = arith.mulf %145, %143 : vector<8x128xf32>
      %147 = arith.mulf %137, %114 : vector<8x128xf32>
      %148 = arith.addf %146, %147 : vector<8x128xf32>
      %c4_43 = arith.constant 4 : index
      %c0_44 = arith.constant 0 : index
      %c0_45 = arith.constant 0 : index
      %149 = vector.load %arg5[%c4_43, %c0_44, %c0_45] : memref<8x8x128xf32, #tpu.memory_space<vmem>>, vector<1x8x128xf32>
      %150 = vector.shape_cast %149 : vector<1x8x128xf32> to vector<8x128xf32>
      %151 = vector.shape_cast %148 : vector<8x128xf32> to vector<1x8x128xf32>
      tpu.vector_store %arg5[%c4_43, %c0_44, %c0_45], %151 {strides = array<i32>} : memref<8x8x128xf32, #tpu.memory_space<vmem>>, vector<1x8x128xf32>,
      %c3 = arith.constant 3 : index
      %c0_46 = arith.constant 0 : index
      %c0_47 = arith.constant 0 : index
      %152 = vector.load %arg2[%c3, %c0_46, %c0_47] : memref<8x8x384xf32, #tpu.memory_space<vmem>>, vector<1x8x384xf32>
      %153 = vector.shape_cast %152 : vector<1x8x384xf32> to vector<8x384xf32>
      %154 = arith.truncf %148 : vector<8x128xf32> to vector<8x128xbf16>
      %cst_48 = arith.constant dense<0.000000e+00> : vector<8x384xf32>
      %155 = tpu.matmul %154, %4, %cst_48 {dimension_numbers = #tpu.dot_dimension_numbers<[1], [0], [0], [1], [0, 0, 1, 1], [], []>} : vector<8x128xbf16>, vector<128x384xbf16>, vector<8x384xf32> -> vector<8x384xf32>
      %156 = vector.extract_strided_slice %153 {offsets = [0, 0], sizes = [8, 128], strides = [1, 1]} : vector<8x384xf32> to vector<8x128xf32>
      %157 = vector.extract_strided_slice %155 {offsets = [0, 0], sizes = [8, 128], strides = [1, 1]} : vector<8x384xf32> to vector<8x128xf32>
      %158 = arith.addf %156, %157 : vector<8x128xf32>
      %159 = arith.negf %158 : vector<8x128xf32>
      %160 = math.exp %159 : vector<8x128xf32>
      %cst_49 = arith.constant 1.000000e+00 : f32
      %161 = vector.broadcast %cst_49 : f32 to vector<8x128xf32>
      %162 = arith.addf %161, %160 : vector<8x128xf32>
      %163 = arith.divf %161, %162 : vector<8x128xf32>
      %164 = vector.extract_strided_slice %153 {offsets = [0, 128], sizes = [8, 128], strides = [1, 1]} : vector<8x384xf32> to vector<8x128xf32>
      %165 = vector.extract_strided_slice %155 {offsets = [0, 128], sizes = [8, 128], strides = [1, 1]} : vector<8x384xf32> to vector<8x128xf32>
      %166 = arith.addf %164, %165 : vector<8x128xf32>
      %167 = arith.negf %166 : vector<8x128xf32>
      %168 = math.exp %167 : vector<8x128xf32>
      %cst_50 = arith.constant 1.000000e+00 : f32
      %169 = vector.broadcast %cst_50 : f32 to vector<8x128xf32>
      %170 = arith.addf %169, %168 : vector<8x128xf32>
      %171 = arith.divf %169, %170 : vector<8x128xf32>
      %172 = vector.extract_strided_slice %153 {offsets = [0, 256], sizes = [8, 128], strides = [1, 1]} : vector<8x384xf32> to vector<8x128xf32>
      %173 = vector.extract_strided_slice %155 {offsets = [0, 256], sizes = [8, 128], strides = [1, 1]} : vector<8x384xf32> to vector<8x128xf32>
      %174 = arith.addf %173, %8 : vector<8x128xf32>
      %175 = arith.mulf %163, %174 : vector<8x128xf32>
      %176 = arith.addf %172, %175 : vector<8x128xf32>
      %177 = math.tanh %176 : vector<8x128xf32>
      %cst_51 = arith.constant 1.000000e+00 : f32
      %178 = vector.broadcast %cst_51 : f32 to vector<8x128xf32>
      %179 = arith.subf %178, %171 : vector<8x128xf32>
      %180 = arith.mulf %179, %177 : vector<8x128xf32>
      %181 = arith.mulf %171, %148 : vector<8x128xf32>
      %182 = arith.addf %180, %181 : vector<8x128xf32>
      %c3_52 = arith.constant 3 : index
      %c0_53 = arith.constant 0 : index
      %c0_54 = arith.constant 0 : index
      %183 = vector.load %arg5[%c3_52, %c0_53, %c0_54] : memref<8x8x128xf32, #tpu.memory_space<vmem>>, vector<1x8x128xf32>
      %184 = vector.shape_cast %183 : vector<1x8x128xf32> to vector<8x128xf32>
      %185 = vector.shape_cast %182 : vector<8x128xf32> to vector<1x8x128xf32>
      tpu.vector_store %arg5[%c3_52, %c0_53, %c0_54], %185 {strides = array<i32>} : memref<8x8x128xf32, #tpu.memory_space<vmem>>, vector<1x8x128xf32>,
      %c2 = arith.constant 2 : index
      %c0_55 = arith.constant 0 : index
      %c0_56 = arith.constant 0 : index
      %186 = vector.load %arg2[%c2, %c0_55, %c0_56] : memref<8x8x384xf32, #tpu.memory_space<vmem>>, vector<1x8x384xf32>
      %187 = vector.shape_cast %186 : vector<1x8x384xf32> to vector<8x384xf32>
      %188 = arith.truncf %182 : vector<8x128xf32> to vector<8x128xbf16>
      %cst_57 = arith.constant dense<0.000000e+00> : vector<8x384xf32>
      %189 = tpu.matmul %188, %4, %cst_57 {dimension_numbers = #tpu.dot_dimension_numbers<[1], [0], [0], [1], [0, 0, 1, 1], [], []>} : vector<8x128xbf16>, vector<128x384xbf16>, vector<8x384xf32> -> vector<8x384xf32>
      %190 = vector.extract_strided_slice %187 {offsets = [0, 0], sizes = [8, 128], strides = [1, 1]} : vector<8x384xf32> to vector<8x128xf32>
      %191 = vector.extract_strided_slice %189 {offsets = [0, 0], sizes = [8, 128], strides = [1, 1]} : vector<8x384xf32> to vector<8x128xf32>
      %192 = arith.addf %190, %191 : vector<8x128xf32>
      %193 = arith.negf %192 : vector<8x128xf32>
      %194 = math.exp %193 : vector<8x128xf32>
      %cst_58 = arith.constant 1.000000e+00 : f32
      %195 = vector.broadcast %cst_58 : f32 to vector<8x128xf32>
      %196 = arith.addf %195, %194 : vector<8x128xf32>
      %197 = arith.divf %195, %196 : vector<8x128xf32>
      %198 = vector.extract_strided_slice %187 {offsets = [0, 128], sizes = [8, 128], strides = [1, 1]} : vector<8x384xf32> to vector<8x128xf32>
      %199 = vector.extract_strided_slice %189 {offsets = [0, 128], sizes = [8, 128], strides = [1, 1]} : vector<8x384xf32> to vector<8x128xf32>
      %200 = arith.addf %198, %199 : vector<8x128xf32>
      %201 = arith.negf %200 : vector<8x128xf32>
      %202 = math.exp %201 : vector<8x128xf32>
      %cst_59 = arith.constant 1.000000e+00 : f32
      %203 = vector.broadcast %cst_59 : f32 to vector<8x128xf32>
      %204 = arith.addf %203, %202 : vector<8x128xf32>
      %205 = arith.divf %203, %204 : vector<8x128xf32>
      %206 = vector.extract_strided_slice %187 {offsets = [0, 256], sizes = [8, 128], strides = [1, 1]} : vector<8x384xf32> to vector<8x128xf32>
      %207 = vector.extract_strided_slice %189 {offsets = [0, 256], sizes = [8, 128], strides = [1, 1]} : vector<8x384xf32> to vector<8x128xf32>
      %208 = arith.addf %207, %8 : vector<8x128xf32>
      %209 = arith.mulf %197, %208 : vector<8x128xf32>
      %210 = arith.addf %206, %209 : vector<8x128xf32>
      %211 = math.tanh %210 : vector<8x128xf32>
      %cst_60 = arith.constant 1.000000e+00 : f32
      %212 = vector.broadcast %cst_60 : f32 to vector<8x128xf32>
      %213 = arith.subf %212, %205 : vector<8x128xf32>
      %214 = arith.mulf %213, %211 : vector<8x128xf32>
      %215 = arith.mulf %205, %182 : vector<8x128xf32>
      %216 = arith.addf %214, %215 : vector<8x128xf32>
      %c2_61 = arith.constant 2 : index
      %c0_62 = arith.constant 0 : index
      %c0_63 = arith.constant 0 : index
      %217 = vector.load %arg5[%c2_61, %c0_62, %c0_63] : memref<8x8x128xf32, #tpu.memory_space<vmem>>, vector<1x8x128xf32>
      %218 = vector.shape_cast %217 : vector<1x8x128xf32> to vector<8x128xf32>
      %219 = vector.shape_cast %216 : vector<8x128xf32> to vector<1x8x128xf32>
      tpu.vector_store %arg5[%c2_61, %c0_62, %c0_63], %219 {strides = array<i32>} : memref<8x8x128xf32, #tpu.memory_space<vmem>>, vector<1x8x128xf32>,
      %c1 = arith.constant 1 : index
      %c0_64 = arith.constant 0 : index
      %c0_65 = arith.constant 0 : index
      %220 = vector.load %arg2[%c1, %c0_64, %c0_65] : memref<8x8x384xf32, #tpu.memory_space<vmem>>, vector<1x8x384xf32>
      %221 = vector.shape_cast %220 : vector<1x8x384xf32> to vector<8x384xf32>
      %222 = arith.truncf %216 : vector<8x128xf32> to vector<8x128xbf16>
      %cst_66 = arith.constant dense<0.000000e+00> : vector<8x384xf32>
      %223 = tpu.matmul %222, %4, %cst_66 {dimension_numbers = #tpu.dot_dimension_numbers<[1], [0], [0], [1], [0, 0, 1, 1], [], []>} : vector<8x128xbf16>, vector<128x384xbf16>, vector<8x384xf32> -> vector<8x384xf32>
      %224 = vector.extract_strided_slice %221 {offsets = [0, 0], sizes = [8, 128], strides = [1, 1]} : vector<8x384xf32> to vector<8x128xf32>
      %225 = vector.extract_strided_slice %223 {offsets = [0, 0], sizes = [8, 128], strides = [1, 1]} : vector<8x384xf32> to vector<8x128xf32>
      %226 = arith.addf %224, %225 : vector<8x128xf32>
      %227 = arith.negf %226 : vector<8x128xf32>
      %228 = math.exp %227 : vector<8x128xf32>
      %cst_67 = arith.constant 1.000000e+00 : f32
      %229 = vector.broadcast %cst_67 : f32 to vector<8x128xf32>
      %230 = arith.addf %229, %228 : vector<8x128xf32>
      %231 = arith.divf %229, %230 : vector<8x128xf32>
      %232 = vector.extract_strided_slice %221 {offsets = [0, 128], sizes = [8, 128], strides = [1, 1]} : vector<8x384xf32> to vector<8x128xf32>
      %233 = vector.extract_strided_slice %223 {offsets = [0, 128], sizes = [8, 128], strides = [1, 1]} : vector<8x384xf32> to vector<8x128xf32>
      %234 = arith.addf %232, %233 : vector<8x128xf32>
      %235 = arith.negf %234 : vector<8x128xf32>
      %236 = math.exp %235 : vector<8x128xf32>
      %cst_68 = arith.constant 1.000000e+00 : f32
      %237 = vector.broadcast %cst_68 : f32 to vector<8x128xf32>
      %238 = arith.addf %237, %236 : vector<8x128xf32>
      %239 = arith.divf %237, %238 : vector<8x128xf32>
      %240 = vector.extract_strided_slice %221 {offsets = [0, 256], sizes = [8, 128], strides = [1, 1]} : vector<8x384xf32> to vector<8x128xf32>
      %241 = vector.extract_strided_slice %223 {offsets = [0, 256], sizes = [8, 128], strides = [1, 1]} : vector<8x384xf32> to vector<8x128xf32>
      %242 = arith.addf %241, %8 : vector<8x128xf32>
      %243 = arith.mulf %231, %242 : vector<8x128xf32>
      %244 = arith.addf %240, %243 : vector<8x128xf32>
      %245 = math.tanh %244 : vector<8x128xf32>
      %cst_69 = arith.constant 1.000000e+00 : f32
      %246 = vector.broadcast %cst_69 : f32 to vector<8x128xf32>
      %247 = arith.subf %246, %239 : vector<8x128xf32>
      %248 = arith.mulf %247, %245 : vector<8x128xf32>
      %249 = arith.mulf %239, %216 : vector<8x128xf32>
      %250 = arith.addf %248, %249 : vector<8x128xf32>
      %c1_70 = arith.constant 1 : index
      %c0_71 = arith.constant 0 : index
      %c0_72 = arith.constant 0 : index
      %251 = vector.load %arg5[%c1_70, %c0_71, %c0_72] : memref<8x8x128xf32, #tpu.memory_space<vmem>>, vector<1x8x128xf32>
      %252 = vector.shape_cast %251 : vector<1x8x128xf32> to vector<8x128xf32>
      %253 = vector.shape_cast %250 : vector<8x128xf32> to vector<1x8x128xf32>
      tpu.vector_store %arg5[%c1_70, %c0_71, %c0_72], %253 {strides = array<i32>} : memref<8x8x128xf32, #tpu.memory_space<vmem>>, vector<1x8x128xf32>,
      %c0_73 = arith.constant 0 : index
      %c0_74 = arith.constant 0 : index
      %c0_75 = arith.constant 0 : index
      %254 = vector.load %arg2[%c0_73, %c0_74, %c0_75] : memref<8x8x384xf32, #tpu.memory_space<vmem>>, vector<1x8x384xf32>
      %255 = vector.shape_cast %254 : vector<1x8x384xf32> to vector<8x384xf32>
      %256 = arith.truncf %250 : vector<8x128xf32> to vector<8x128xbf16>
      %cst_76 = arith.constant dense<0.000000e+00> : vector<8x384xf32>
      %257 = tpu.matmul %256, %4, %cst_76 {dimension_numbers = #tpu.dot_dimension_numbers<[1], [0], [0], [1], [0, 0, 1, 1], [], []>} : vector<8x128xbf16>, vector<128x384xbf16>, vector<8x384xf32> -> vector<8x384xf32>
      %258 = vector.extract_strided_slice %255 {offsets = [0, 0], sizes = [8, 128], strides = [1, 1]} : vector<8x384xf32> to vector<8x128xf32>
      %259 = vector.extract_strided_slice %257 {offsets = [0, 0], sizes = [8, 128], strides = [1, 1]} : vector<8x384xf32> to vector<8x128xf32>
      %260 = arith.addf %258, %259 : vector<8x128xf32>
      %261 = arith.negf %260 : vector<8x128xf32>
      %262 = math.exp %261 : vector<8x128xf32>
      %cst_77 = arith.constant 1.000000e+00 : f32
      %263 = vector.broadcast %cst_77 : f32 to vector<8x128xf32>
      %264 = arith.addf %263, %262 : vector<8x128xf32>
      %265 = arith.divf %263, %264 : vector<8x128xf32>
      %266 = vector.extract_strided_slice %255 {offsets = [0, 128], sizes = [8, 128], strides = [1, 1]} : vector<8x384xf32> to vector<8x128xf32>
      %267 = vector.extract_strided_slice %257 {offsets = [0, 128], sizes = [8, 128], strides = [1, 1]} : vector<8x384xf32> to vector<8x128xf32>
      %268 = arith.addf %266, %267 : vector<8x128xf32>
      %269 = arith.negf %268 : vector<8x128xf32>
      %270 = math.exp %269 : vector<8x128xf32>
      %cst_78 = arith.constant 1.000000e+00 : f32
      %271 = vector.broadcast %cst_78 : f32 to vector<8x128xf32>
      %272 = arith.addf %271, %270 : vector<8x128xf32>
      %273 = arith.divf %271, %272 : vector<8x128xf32>
      %274 = vector.extract_strided_slice %255 {offsets = [0, 256], sizes = [8, 128], strides = [1, 1]} : vector<8x384xf32> to vector<8x128xf32>
      %275 = vector.extract_strided_slice %257 {offsets = [0, 256], sizes = [8, 128], strides = [1, 1]} : vector<8x384xf32> to vector<8x128xf32>
      %276 = arith.addf %275, %8 : vector<8x128xf32>
      %277 = arith.mulf %265, %276 : vector<8x128xf32>
      %278 = arith.addf %274, %277 : vector<8x128xf32>
      %279 = math.tanh %278 : vector<8x128xf32>
      %cst_79 = arith.constant 1.000000e+00 : f32
      %280 = vector.broadcast %cst_79 : f32 to vector<8x128xf32>
      %281 = arith.subf %280, %273 : vector<8x128xf32>
      %282 = arith.mulf %281, %279 : vector<8x128xf32>
      %283 = arith.mulf %273, %250 : vector<8x128xf32>
      %284 = arith.addf %282, %283 : vector<8x128xf32>
      %c0_80 = arith.constant 0 : index
      %c0_81 = arith.constant 0 : index
      %c0_82 = arith.constant 0 : index
      %285 = vector.load %arg5[%c0_80, %c0_81, %c0_82] : memref<8x8x128xf32, #tpu.memory_space<vmem>>, vector<1x8x128xf32>
      %286 = vector.shape_cast %285 : vector<1x8x128xf32> to vector<8x128xf32>
      %287 = vector.shape_cast %284 : vector<8x128xf32> to vector<1x8x128xf32>
      tpu.vector_store %arg5[%c0_80, %c0_81, %c0_82], %287 {strides = array<i32>} : memref<8x8x128xf32, #tpu.memory_space<vmem>>, vector<1x8x128xf32>,
      %c0_83 = arith.constant 0 : index
      %c0_84 = arith.constant 0 : index
      %288 = vector.load %arg6[%c0_83, %c0_84] : memref<8x128xf32, #tpu.memory_space<vmem>>, vector<8x128xf32>
      tpu.vector_store %arg6[%c0_83, %c0_84], %284 {strides = array<i32>} : memref<8x128xf32, #tpu.memory_space<vmem>>, vector<8x128xf32>,
    } else {
    }
    return
  }
  func.func @transform_0(%arg0: i32, %arg1: i32) -> (i32, i32, i32) {
    %c2_i32 = arith.constant 2 : i32
    %0 = arith.muli %c2_i32, %arg1 : i32
    %c0_i32 = arith.constant 0 : i32
    %1 = arith.subi %c0_i32, %0 : i32
    %2 = arith.muli %arg0, %1 : i32
    %3 = arith.addi %arg1, %2 : i32
    %c0_i32_0 = arith.constant 0 : i32
    %c0_i32_1 = arith.constant 0 : i32
    return %3, %c0_i32_0, %arg0 : i32, i32, i32
  }
  func.func @transform_1(%arg0: i32, %arg1: i32) -> (i32, i32, i32) {
    %c0_i32 = arith.constant 0 : i32
    %c0_i32_0 = arith.constant 0 : i32
    %c0_i32_1 = arith.constant 0 : i32
    return %arg0, %c0_i32, %c0_i32_0 : i32, i32, i32
  }
  func.func @transform_2(%arg0: i32, %arg1: i32) -> (i32, i32, i32) {
    %c0_i32 = arith.constant 0 : i32
    %c0_i32_0 = arith.constant 0 : i32
    %c0_i32_1 = arith.constant 0 : i32
    return %arg0, %c0_i32, %c0_i32_0 : i32, i32, i32
  }
  func.func @transform_3(%arg0: i32, %arg1: i32) -> (i32, i32, i32) {
    %c2_i32 = arith.constant 2 : i32
    %0 = arith.muli %c2_i32, %arg1 : i32
    %c0_i32 = arith.constant 0 : i32
    %1 = arith.subi %c0_i32, %0 : i32
    %2 = arith.muli %arg0, %1 : i32
    %3 = arith.addi %arg1, %2 : i32
    %c0_i32_0 = arith.constant 0 : i32
    %c0_i32_1 = arith.constant 0 : i32
    return %3, %c0_i32_0, %arg0 : i32, i32, i32
  }
}

</mosaic_0001>

<llo_original>
// kernel: encoder_forward_pallas.1
$region0: #{encoder_forward_pallas.1}
  #allocation0 [shape = 'u32[]', space=smem, size = 0x4, offset = 0x4, fixed_abs, tag = 'smem constant byte address 0x4 - core index']
  #allocation1 [shape = 'u32[144,128]{1,0:T(1,128)}', space=vmem, size = 0x12000, scoped, tag = 'internal scratch']
  #allocation2 [shape = 'f32[8,128]{1,0:T(8,128)}', space=vmem, size = 0x1000, scoped, tag = 'scratch operand']
  %s0 = inlined_call_operand.vmem [shape: f32[8,8,768], index: 0, kind: input, shape index: {}]
  %s1 = inlined_call_operand.vmem [shape: bf16[2,128,384], index: 1, kind: input, shape index: {}]
  %s2 = inlined_call_operand.vmem [shape: f32[2,1,128], index: 2, kind: input, shape index: {}]
  %s3 = inlined_call_operand.vmem [shape: f32[8,8,256], index: 3, kind: output, shape index: {}]
  %s4 = sld [smem:[#allocation0]]
  $region114: #{encoder_forward_pallas.1} parent=0
    _
  %s6 = ssub.s32 1, %s4
  %s7 = scalar_select 0, %s6, %s4
  $region1: #{encoder_forward_pallas.1} parent=0
    #allocation3 [shape = 'u8[196608]{0}', space=vmem, size = 0x30000, scoped, tag = 'input window, operand 0']
    #allocation4 [shape = 'u8[65536]{0}', space=vmem, size = 0x10000, scoped, tag = 'output window, operand 0']
    loop: start=0, step=1, limit=4
    $region2: #{encoder_forward_pallas.1} parent=1 // loop_pre_header
      _
    $region3: #{encoder_forward_pallas.1} parent=1 // loop_header
      %s9 = sphi 0, %s13
      %p10 = scmp.ge.s32.totalorder %s9, 4
      %s16 = sphi 0, %s28
      %s17 = sphi 0, %s24
      %s18 = sphi 0, %s16
      %s19 = sphi 0, %s17
      %s20 = sphi 0, %s18
      %s21 = sphi 0, %s19
      %s41 = sphi 0, %s43
      %s44 = sphi 0, %s41
      %s45 = sphi 0, %s44
      %s61 = sphi 0, %s45
      %s67 = sphi 0, %s69
      %s70 = sphi 0, %s67
      %s71 = sphi 0, %s70
      %s87 = sphi 0, %s71
      %s93 = sphi 0, %s95
      %s96 = sphi 0, %s93
      %s97 = sphi 0, %s96
      %s113 = sphi 0, %s97
      %s129 = sphi 0, %s131
      %s132 = sphi 0, %s129
      %s133 = sphi 0, %s132
      %s149 = sphi 0, %s133
    $region4: #{encoder_forward_pallas.1} parent=1 // loop_header_branch
      %12 = sbr.rel (%p10) target = $region8
    $region5: #{encoder_forward_pallas.1} parent=1 // loop_body
      %s14 = ssub.s32 %s9, 1
      %s15 = ssub.s32 %s9, 2
      %s22 = sadd.s32 1, %s17
      %p23 = scmp.ge.s32.totalorder %s22, 1
      %s24 = scalar_select %p23, 0, %s22
      %s25 = sadd.s32 1, %s16
      %s26 = scalar_select %p23, %s25, %s16
      %p27 = scmp.ge.s32.totalorder %s26, 2
      %s28 = scalar_select %p27, 0, %s26
      %s29 = smul.u32 %s17, 2
      %s30 = ssub.s32 0, %s29
      %s31 = smul.u32 %s16, %s30
      %s32 = sadd.s32 %s17, %s31
      %s33 = smul.u32 %s24, 2
      %s34 = ssub.s32 0, %s33
      %s35 = smul.u32 %s28, %s34
      %s36 = sadd.s32 %s24, %s35
      %s37 = ssub.s32 %s32, %s36
      %s38 = ssub.s32 %s16, %s28
      %s39 = sor.u32 %s37, %s38
      %p40 = scmp.eq.s32.totalorder %s39, 0
      %s42 = sadd.s32 %s41, 1
      %s43 = scalar_select %p40, %s41, %s42
      %p46 = pneg %p40
      %p47 = scmp.eq.s32.totalorder %s9, 1
      %p48 = por %p46, %p47
      %p49 = scmp.ne.s32.totalorder %s41, %s44
      %p50 = scmp.eq.s32.totalorder %s9, 0
      %p51 = por %p49, %p50
      %p52 = scmp.ne.s32.totalorder %s41, %s44
      %p53 = scmp.eq.s32.totalorder %s14, 1
      %p54 = por %p52, %p53
      %p55 = scmp.ne.s32.totalorder %s44, %s45
      %p56 = scmp.eq.s32.totalorder %s14, 0
      %p57 = por %p55, %p56
      %p58 = scmp.ne.s32.totalorder %s44, %s45
      %p59 = scmp.eq.s32.totalorder %s15, 1
      %p60 = por %p58, %p59
      %p62 = scmp.ne.s32.totalorder %s45, %s61
      %p63 = scmp.eq.s32.totalorder %s15, 0
      %p64 = por %p62, %p63
      %s65 = ssub.s32 %s16, %s28
      %p66 = scmp.eq.s32.totalorder %s65, 0
      %s68 = sadd.s32 %s67, 1
      %s69 = scalar_select %p66, %s67, %s68
      %p72 = pneg %p66
      %p73 = scmp.eq.s32.totalorder %s9, 1
      %p74 = por %p72, %p73
      %p75 = scmp.ne.s32.totalorder %s67, %s70
      %p76 = scmp.eq.s32.totalorder %s9, 0
      %p77 = por %p75, %p76
      %p78 = scmp.ne.s32.totalorder %s67, %s70
      %p79 = scmp.eq.s32.totalorder %s14, 1
      %p80 = por %p78, %p79
      %p81 = scmp.ne.s32.totalorder %s70, %s71
      %p82 = scmp.eq.s32.totalorder %s14, 0
      %p83 = por %p81, %p82
      %p84 = scmp.ne.s32.totalorder %s70, %s71
      %p85 = scmp.eq.s32.totalorder %s15, 1
      %p86 = por %p84, %p85
      %p88 = scmp.ne.s32.totalorder %s71, %s87
      %p89 = scmp.eq.s32.totalorder %s15, 0
      %p90 = por %p88, %p89
      %s91 = ssub.s32 %s16, %s28
      %p92 = scmp.eq.s32.totalorder %s91, 0
      %s94 = sadd.s32 %s93, 1
      %s95 = scalar_select %p92, %s93, %s94
      %p98 = pneg %p92
      %p99 = scmp.eq.s32.totalorder %s9, 1
      %p100 = por %p98, %p99
      %p101 = scmp.ne.s32.totalorder %s93, %s96
      %p102 = scmp.eq.s32.totalorder %s9, 0
      %p103 = por %p101, %p102
      %p104 = scmp.ne.s32.totalorder %s93, %s96
      %p105 = scmp.eq.s32.totalorder %s14, 1
      %p106 = por %p104, %p105
      %p107 = scmp.ne.s32.totalorder %s96, %s97
      %p108 = scmp.eq.s32.totalorder %s14, 0
      %p109 = por %p107, %p108
      %p110 = scmp.ne.s32.totalorder %s96, %s97
      %p111 = scmp.eq.s32.totalorder %s15, 1
      %p112 = por %p110, %p111
      %p114 = scmp.ne.s32.totalorder %s97, %s113
      %p115 = scmp.eq.s32.totalorder %s15, 0
      %p116 = por %p114, %p115
      %s117 = smul.u32 %s17, 2
      %s118 = ssub.s32 0, %s117
      %s119 = smul.u32 %s16, %s118
      %s120 = sadd.s32 %s17, %s119
      %s121 = smul.u32 %s24, 2
      %s122 = ssub.s32 0, %s121
      %s123 = smul.u32 %s28, %s122
      %s124 = sadd.s32 %s24, %s123
      %s125 = ssub.s32 %s120, %s124
      %s126 = ssub.s32 %s16, %s28
      %s127 = sor.u32 %s125, %s126
      %p128 = scmp.eq.s32.totalorder %s127, 0
      %s130 = sadd.s32 %s129, 1
      %s131 = scalar_select %p128, %s129, %s130
      %p134 = pneg %p128
      %p135 = scmp.eq.s32.totalorder %s9, 1
      %p136 = por %p134, %p135
      %p137 = scmp.ne.s32.totalorder %s129, %s132
      %p138 = scmp.eq.s32.totalorder %s9, 0
      %p139 = por %p137, %p138
      %p140 = scmp.ne.s32.totalorder %s129, %s132
      %p141 = scmp.eq.s32.totalorder %s14, 1
      %p142 = por %p140, %p141
      %p143 = scmp.ne.s32.totalorder %s132, %s133
      %p144 = scmp.eq.s32.totalorder %s14, 0
      %p145 = por %p143, %p144
      %p146 = scmp.ne.s32.totalorder %s132, %s133
      %p147 = scmp.eq.s32.totalorder %s15, 1
      %p148 = por %p146, %p147
      %p150 = scmp.ne.s32.totalorder %s133, %s149
      %p151 = scmp.eq.s32.totalorder %s15, 0
      %p152 = por %p150, %p151
      %p153 = scmp.le.s32.totalorder 1, %s9
      %p154 = scmp.lt.s32.totalorder %s9, 3
      %p155 = pnand %p153, %p154
      %p156 = pneg %p155
      // Predicated region
      $region9: #{encoder_forward_pallas.1} parent=5 // pred_check
        _
      $region10: #{encoder_forward_pallas.1} parent=5 // pred_check_branch
        %158 = sbr.rel (%p155) target = $region12
      $region11: #{encoder_forward_pallas.1} parent=5 // pred_region
        %s159 = ssub.s32 %s9, 1
      $region12: #{encoder_forward_pallas.1} parent=5 // pred_fallthru
        _
      %p160 = scmp.lt.s32.totalorder %s9, 2
      // Predicated region
      $region13: #{encoder_forward_pallas.1} parent=5 // pred_check
        %p161 = pneg %p160
      $region14: #{encoder_forward_pallas.1} parent=5 // pred_check_branch
        %163 = sbr.rel (%p161) target = $region16
      $region15: #{encoder_forward_pallas.1} parent=5 // pred_region
        // Predicated region
        $region17: #{encoder_forward_pallas.1} parent=15 // pred_check
          %p164 = pneg %p51
        $region18: #{encoder_forward_pallas.1} parent=15 // pred_check_branch
          %166 = sbr.rel (%p164) target = $region20
        $region19: #{encoder_forward_pallas.1} parent=15 // pred_region
          %s167 = sand.u32 %s41, 1
          %s168 = sand.u32 %s41, 1
          %s169 = smul.addr %s168, 192
          %s170 = scalar_lea.vmem [#allocation3], %s169
          %s171 = smul.u32 %s17, 2
          %s172 = ssub.s32 0, %s171
          %s173 = smul.u32 %s16, %s172
          %s174 = sadd.s32 %s17, %s173
          %s175 = smul.u32 8, %s174
          %s176 = smul.u32 3, %s16
          %s177 = smul.addr %s175, 6
          %s178 = sadd.s32 %s176, %s177
          %s179 = smul.addr %s178, 8
          %s180 = scalar_lea.vmem %s0, %s179
          // Predicated region
          $region21: #{encoder_forward_pallas.1} parent=19 // pred_check
            _
          $region22: #{encoder_forward_pallas.1} parent=19 // pred_check_branch
            %182 = sbr.rel (0) target = $region24
          $region23: #{encoder_forward_pallas.1} parent=19 // pred_region
            // Predicated region
            $region25: #{encoder_forward_pallas.1} parent=23 // pred_check
              _
            $region26: #{encoder_forward_pallas.1} parent=23 // pred_check_branch
              %184 = sbr.rel (0) target = $region28
            $region27: #{encoder_forward_pallas.1} parent=23 // pred_region
              loop: start=0, step=1, limit=1
              $region29: #{encoder_forward_pallas.1} parent=27 // loop_pre_header
                _
              $region30: #{encoder_forward_pallas.1} parent=27 // loop_header
                %s186 = sphi 0, %s190
                %p187 = scmp.ge.s32.totalorder %s186, 1
                %s191 = sphi %s180, %s180
                %s192 = sphi %s170, %s170
              $region31: #{encoder_forward_pallas.1} parent=27 // loop_header_branch
                %189 = sbr.rel (%p187) target = $region35
              $region32: #{encoder_forward_pallas.1} parent=27 // loop_body
                %v193 = vld [vmem:[%s191] sm:$0xff]
                %194 = vst [vmem:[%s192] sm:$0xff] %v193
                %v195 = vld [vmem:[%s191 + $0x8] sm:$0xff]
                %196 = vst [vmem:[%s192 + $0x8] sm:$0xff] %v195
                %v197 = vld [vmem:[%s191 + $0x10] sm:$0xff]
                %198 = vst [vmem:[%s192 + $0x10] sm:$0xff] %v197
                %v199 = vld [vmem:[%s191 + $0x30] sm:$0xff]
                %200 = vst [vmem:[%s192 + $0x18] sm:$0xff] %v199
                %v201 = vld [vmem:[%s191 + $0x38] sm:$0xff]
                %202 = vst [vmem:[%s192 + $0x20] sm:$0xff] %v201
                %v203 = vld [vmem:[%s191 + $0x40] sm:$0xff]
                %204 = vst [vmem:[%s192 + $0x28] sm:$0xff] %v203
                %v205 = vld [vmem:[%s191 + $0x60] sm:$0xff]
                %206 = vst [vmem:[%s192 + $0x30] sm:$0xff] %v205
                %v207 = vld [vmem:[%s191 + $0x68] sm:$0xff]
                %208 = vst [vmem:[%s192 + $0x38] sm:$0xff] %v207
                %v209 = vld [vmem:[%s191 + $0x70] sm:$0xff]
                %210 = vst [vmem:[%s192 + $0x40] sm:$0xff] %v209
                %v211 = vld [vmem:[%s191 + $0x90] sm:$0xff]
                %212 = vst [vmem:[%s192 + $0x48] sm:$0xff] %v211
                %v213 = vld [vmem:[%s191 + $0x98] sm:$0xff]
                %214 = vst [vmem:[%s192 + $0x50] sm:$0xff] %v213
                %v215 = vld [vmem:[%s191 + $0xa0] sm:$0xff]
                %216 = vst [vmem:[%s192 + $0x58] sm:$0xff] %v215
                %v217 = vld [vmem:[%s191 + $0xc0] sm:$0xff]
                %218 = vst [vmem:[%s192 + $0x60] sm:$0xff] %v217
                %v219 = vld [vmem:[%s191 + $0xc8] sm:$0xff]
                %220 = vst [vmem:[%s192 + $0x68] sm:$0xff] %v219
                %v221 = vld [vmem:[%s191 + $0xd0] sm:$0xff]
                %222 = vst [vmem:[%s192 + $0x70] sm:$0xff] %v221
                %v223 = vld [vmem:[%s191 + $0xf0] sm:$0xff]
                %224 = vst [vmem:[%s192 + $0x78] sm:$0xff] %v223
                %v225 = vld [vmem:[%s191 + $0xf8] sm:$0xff]
                %226 = vst [vmem:[%s192 + $0x80] sm:$0xff] %v225
                %v227 = vld [vmem:[%s191 + $0x100] sm:$0xff]
                %228 = vst [vmem:[%s192 + $0x88] sm:$0xff] %v227
                %v229 = vld [vmem:[%s191 + $0x120] sm:$0xff]
                %230 = vst [vmem:[%s192 + $0x90] sm:$0xff] %v229
                %v231 = vld [vmem:[%s191 + $0x128] sm:$0xff]
                %232 = vst [vmem:[%s192 + $0x98] sm:$0xff] %v231
                %v233 = vld [vmem:[%s191 + $0x130] sm:$0xff]
                %234 = vst [vmem:[%s192 + $0xa0] sm:$0xff] %v233
                %v235 = vld [vmem:[%s191 + $0x150] sm:$0xff]
                %236 = vst [vmem:[%s192 + $0xa8] sm:$0xff] %v235
                %v237 = vld [vmem:[%s191 + $0x158] sm:$0xff]
                %238 = vst [vmem:[%s192 + $0xb0] sm:$0xff] %v237
                %v239 = vld [vmem:[%s191 + $0x160] sm:$0xff]
                %240 = vst [vmem:[%s192 + $0xb8] sm:$0xff] %v239
              $region33: #{encoder_forward_pallas.1} parent=27 // loop_footer
                %s190 = sadd.s32 1, %s186
              $region34: #{encoder_forward_pallas.1} parent=27 // loop_footer_branch
                %185 = sbr.rel target = $region30
              $region35: #{encoder_forward_pallas.1} parent=27 // loop_exit
                _
            $region28: #{encoder_forward_pallas.1} parent=23 // pred_fallthru
              _
            // Predicated region
            $region36: #{encoder_forward_pallas.1} parent=23 // pred_check
              _
            $region37: #{encoder_forward_pallas.1} parent=23 // pred_check_branch
              %242 = sbr.rel target = $region39
            $region38: #{encoder_forward_pallas.1} parent=23 // pred_region
              _
            $region39: #{encoder_forward_pallas.1} parent=23 // pred_fallthru
              _
          $region24: #{encoder_forward_pallas.1} parent=19 // pred_fallthru
            _
          %243 = vnop
        $region20: #{encoder_forward_pallas.1} parent=15 // pred_fallthru
          _
        // Predicated region
        $region40: #{encoder_forward_pallas.1} parent=15 // pred_check
          %p244 = pneg %p77
        $region41: #{encoder_forward_pallas.1} parent=15 // pred_check_branch
          %246 = sbr.rel (%p244) target = $region43
        $region42: #{encoder_forward_pallas.1} parent=15 // pred_region
          %p247 = scmp.lt.s32.totalorder %s16, 1
          %s248 = scalar_select %p247, %s16, 1
          %s249 = smul.addr %s248, 48
          %s250 = smul.addr %s249, 4
          %s251 = scalar_lea.vmem %s1, %s250
        $region43: #{encoder_forward_pallas.1} parent=15 // pred_fallthru
          _
        // Predicated region
        $region44: #{encoder_forward_pallas.1} parent=15 // pred_check
          %p252 = pneg %p103
        $region45: #{encoder_forward_pallas.1} parent=15 // pred_check_branch
          %254 = sbr.rel (%p252) target = $region47
        $region46: #{encoder_forward_pallas.1} parent=15 // pred_region
          %p255 = scmp.lt.s32.totalorder %s16, 1
          %s256 = scalar_select %p255, %s16, 1
          %s257 = scalar_lea.vmem %s2, %s256
        $region47: #{encoder_forward_pallas.1} parent=15 // pred_fallthru
          _
      $region16: #{encoder_forward_pallas.1} parent=5 // pred_fallthru
        _
      %p258 = scmp.le.s32.totalorder 1, %s9
      %p259 = scmp.lt.s32.totalorder %s9, 3
      %p260 = pnand %p258, %p259
      %p261 = pneg %p260
      // Predicated region
      $region48: #{encoder_forward_pallas.1} parent=5 // pred_check
        _
      $region49: #{encoder_forward_pallas.1} parent=5 // pred_check_branch
        %263 = sbr.rel (%p260) target = $region51
      $region50: #{encoder_forward_pallas.1} parent=5 // pred_region
        %s264 = ssub.s32 %s9, 1
        %s265 = sand.u32 %s44, 1
        %s266 = sand.u32 %s44, 1
        %s267 = smul.addr %s266, 192
        %s268 = scalar_lea.vmem [#allocation3], %s267
        // Predicated region
        $region52: #{encoder_forward_pallas.1} parent=50 // pred_check
          %p269 = pneg %p57
        $region53: #{encoder_forward_pallas.1} parent=50 // pred_check_branch
          %271 = sbr.rel (%p269) target = $region55
        $region54: #{encoder_forward_pallas.1} parent=50 // pred_region
          _
        $region55: #{encoder_forward_pallas.1} parent=50 // pred_fallthru
          _
        %s272 = sand.u32 %s44, 1
        %s273 = sand.u32 %s44, 1
        %s274 = smul.addr %s273, 192
        %s275 = scalar_lea.vmem [#allocation3], %s274
        %p276 = pneg %p57
        %p277 = pneg %p54
        %p278 = scmp.lt.s32.totalorder %s18, 1
        %s279 = scalar_select %p278, %s18, 1
        %s280 = smul.addr %s279, 48
        %s281 = smul.addr %s280, 4
        %s282 = scalar_lea.vmem %s1, %s281
        %p283 = pneg %p83
        %p284 = pneg %p80
        %p285 = scmp.lt.s32.totalorder %s18, 1
        %s286 = scalar_select %p285, %s18, 1
        %s287 = scalar_lea.vmem %s2, %s286
        %p288 = pneg %p109
        %p289 = pneg %p106
        %p290 = pneg %p145
        %p291 = pneg %p142
        %s292 = sand.u32 %s132, 1
        %s293 = sand.u32 %s132, 1
        %s294 = smul.addr %s293, 64
        %s295 = scalar_lea.vmem [#allocation4], %s294
        %s296 = smul.u32 %s19, 2
        %s297 = ssub.s32 0, %s296
        %s298 = smul.u32 %s18, %s297
        %s299 = sadd.s32 %s19, %s298
        %s300 = smul.u32 8, %s299
        %s301 = smul.u32 3, %s18
        %p302 = scmp.lt.s32.totalorder %s18, 1
        %s303 = scalar_select %p302, %s18, 1
        %s304 = smul.addr %s303, 48
        %s305 = smul.addr %s304, 4
        %s306 = scalar_lea.vmem %s1, %s305
        %p307 = scmp.lt.s32.totalorder %s18, 1
        %s308 = scalar_select %p307, %s18, 1
        %s309 = scalar_lea.vmem %s2, %s308
        %s310 = smul.u32 %s19, 2
        %s311 = ssub.s32 0, %s310
        %s312 = smul.u32 %s18, %s311
        %s313 = sadd.s32 %s19, %s312
        %s314 = smul.u32 8, %s313
        %p316 = scmp.eq.s32.totalorder %s19, 0
        // Predicated region
        $region56: #{encoder_forward_pallas.1} parent=50 // pred_check
          %p317 = pneg %p316
        $region57: #{encoder_forward_pallas.1} parent=50 // pred_check_branch
          %319 = sbr.rel (%p317) target = $region59
        $region58: #{encoder_forward_pallas.1} parent=50 // pred_region
          %320 = vst [vmem:[#allocation2] sm:$0xff] 0.0
        $region59: #{encoder_forward_pallas.1} parent=50 // pred_fallthru
          _
        %v321 = vld [vmem:[%s306] sm:$0xff]
        %v322 = vld [vmem:[%s306 + $0x8] sm:$0xf]
        %v323 = vld [vmem:[%s306 + $0xc] sm:$0xff]
        %v324 = vld [vmem:[%s306 + $0x14] sm:$0xf]
        %v325 = vld [vmem:[%s306 + $0x18] sm:$0xff]
        %v326 = vld [vmem:[%s306 + $0x20] sm:$0xf]
        %v327 = vld [vmem:[%s306 + $0x24] sm:$0xff]
        %v328 = vld [vmem:[%s306 + $0x2c] sm:$0xf]
        %v329 = vld [vmem:[%s306 + $0x30] sm:$0xff]
        %v330 = vld [vmem:[%s306 + $0x38] sm:$0xf]
        %v331 = vld [vmem:[%s306 + $0x3c] sm:$0xff]
        %v332 = vld [vmem:[%s306 + $0x44] sm:$0xf]
        %v333 = vld [vmem:[%s306 + $0x48] sm:$0xff]
        %v334 = vld [vmem:[%s306 + $0x50] sm:$0xf]
        %v335 = vld [vmem:[%s306 + $0x54] sm:$0xff]
        %v336 = vld [vmem:[%s306 + $0x5c] sm:$0xf]
        %v337 = vld [vmem:[%s306 + $0x60] sm:$0xff]
        %v338 = vld [vmem:[%s306 + $0x68] sm:$0xf]
        %v339 = vld [vmem:[%s306 + $0x6c] sm:$0xff]
        %v340 = vld [vmem:[%s306 + $0x74] sm:$0xf]
        %v341 = vld [vmem:[%s306 + $0x78] sm:$0xff]
        %v342 = vld [vmem:[%s306 + $0x80] sm:$0xf]
        %v343 = vld [vmem:[%s306 + $0x84] sm:$0xff]
        %v344 = vld [vmem:[%s306 + $0x8c] sm:$0xf]
        %v345 = vld [vmem:[%s306 + $0x90] sm:$0xff]
        %v346 = vld [vmem:[%s306 + $0x98] sm:$0xf]
        %v347 = vld [vmem:[%s306 + $0x9c] sm:$0xff]
        %v348 = vld [vmem:[%s306 + $0xa4] sm:$0xf]
        %v349 = vld [vmem:[%s306 + $0xa8] sm:$0xff]
        %v350 = vld [vmem:[%s306 + $0xb0] sm:$0xf]
        %v351 = vld [vmem:[%s306 + $0xb4] sm:$0xff]
        %v352 = vld [vmem:[%s306 + $0xbc] sm:$0xf]
        %v353 = vld [vmem:[%s309] sm:$0x1]
        %v355 = vlaneseq
        %v356 = vshrl.u32 %v355, 7
        %v357 = vsub.s32 0, %v356
        %v358 = vrot.slane %v353, %v357
        %p360 = scmp.eq.s32.totalorder %s18, 0
        // Predicated region
        $region60: #{encoder_forward_pallas.1} parent=50 // pred_check
          %p361 = pneg %p360
        $region61: #{encoder_forward_pallas.1} parent=50 // pred_check_branch
          %363 = sbr.rel (%p361) target = $region63
        $region62: #{encoder_forward_pallas.1} parent=50 // pred_region
          %v364 = vld [vmem:[#allocation2] sm:$0xff]
          %v365 = vld [vmem:[%s268] sm:$0xff]
          %v366 = vld [vmem:[%s268 + $0x8] sm:$0xff]
          %v367 = vld [vmem:[%s268 + $0x10] sm:$0xff]
          %v368 = vpack.c.bf16 %v364, %v364
          %v401 = vunpack.c.l.b16 %v321
          %v402 = vunpack.c.h.b16 %v321
          %v403 = vunpack.c.l.b16 %v322
          %v404 = vunpack.c.l.b16 %v323
          %v405 = vunpack.c.h.b16 %v323
          %v406 = vunpack.c.l.b16 %v324
          %v407 = vunpack.c.l.b16 %v325
          %v408 = vunpack.c.h.b16 %v325
          %v409 = vunpack.c.l.b16 %v326
          %v410 = vunpack.c.l.b16 %v327
          %v411 = vunpack.c.h.b16 %v327
          %v412 = vunpack.c.l.b16 %v328
          %v413 = vunpack.c.l.b16 %v329
          %v414 = vunpack.c.h.b16 %v329
          %v415 = vunpack.c.l.b16 %v330
          %v416 = vunpack.c.l.b16 %v331
          %v417 = vunpack.c.h.b16 %v331
          %v418 = vunpack.c.l.b16 %v332
          %v419 = vunpack.c.l.b16 %v333
          %v420 = vunpack.c.h.b16 %v333
          %v421 = vunpack.c.l.b16 %v334
          %v422 = vunpack.c.l.b16 %v335
          %v423 = vunpack.c.h.b16 %v335
          %v424 = vunpack.c.l.b16 %v336
          %v425 = vunpack.c.l.b16 %v337
          %v426 = vunpack.c.h.b16 %v337
          %v427 = vunpack.c.l.b16 %v338
          %v428 = vunpack.c.l.b16 %v339
          %v429 = vunpack.c.h.b16 %v339
          %v430 = vunpack.c.l.b16 %v340
          %v431 = vunpack.c.l.b16 %v341
          %v432 = vunpack.c.h.b16 %v341
          %v433 = vunpack.c.l.b16 %v342
          %v434 = vunpack.c.l.b16 %v343
          %v435 = vunpack.c.h.b16 %v343
          %v436 = vunpack.c.l.b16 %v344
          %v437 = vunpack.c.l.b16 %v345
          %v438 = vunpack.c.h.b16 %v345
          %v439 = vunpack.c.l.b16 %v346
          %v440 = vunpack.c.l.b16 %v347
          %v441 = vunpack.c.h.b16 %v347
          %v442 = vunpack.c.l.b16 %v348
          %v443 = vunpack.c.l.b16 %v349
          %v444 = vunpack.c.h.b16 %v349
          %v445 = vunpack.c.l.b16 %v350
          %v446 = vunpack.c.l.b16 %v351
          %v447 = vunpack.c.h.b16 %v351
          %v448 = vunpack.c.l.b16 %v352
          %v449 = vpack.c.b16 %v404, %v401
          %v450 = vpack.c.b16 %v405, %v402
          %v451 = vpack.c.b16 %v406, %v403
          %v452 = vpack.c.b16 %v410, %v407
          %v453 = vpack.c.b16 %v411, %v408
          %v454 = vpack.c.b16 %v412, %v409
          %v455 = vpack.c.b16 %v416, %v413
          %v456 = vpack.c.b16 %v417, %v414
          %v457 = vpack.c.b16 %v418, %v415
          %v458 = vpack.c.b16 %v422, %v419
          %v459 = vpack.c.b16 %v423, %v420
          %v460 = vpack.c.b16 %v424, %v421
          %v461 = vpack.c.b16 %v428, %v425
          %v462 = vpack.c.b16 %v429, %v426
          %v463 = vpack.c.b16 %v430, %v427
          %v464 = vpack.c.b16 %v434, %v431
          %v465 = vpack.c.b16 %v435, %v432
          %v466 = vpack.c.b16 %v436, %v433
          %v467 = vpack.c.b16 %v440, %v437
          %v468 = vpack.c.b16 %v441, %v438
          %v469 = vpack.c.b16 %v442, %v439
          %v470 = vpack.c.b16 %v446, %v443
          %v471 = vpack.c.b16 %v447, %v444
          %v472 = vpack.c.b16 %v448, %v445
          %497 = vmatprep.subr.bf16.mxu0 %v471
          %498 = vmatpush1.bf16.msra.mxu0 %v470
          %499 = vmatprep.subr.bf16.mxu0 %v468
          %500 = vmatpush1.bf16.msra.mxu0 %v467
          %501 = vmatprep.subr.bf16.mxu0 %v465
          %502 = vmatpush1.bf16.msra.mxu0 %v464
          %503 = vmatprep.subr.bf16.mxu0 %v462
          %504 = vmatpush1.bf16.msra.mxu0 %v461
          %505 = vmatprep.subr.bf16.mxu0 %v459
          %506 = vmatpush1.bf16.msra.mxu0 %v458
          %507 = vmatprep.subr.bf16.mxu0 %v456
          %508 = vmatpush1.bf16.msra.mxu0 %v455
          %509 = vmatprep.subr.bf16.mxu0 %v453
          %510 = vmatpush1.bf16.msra.mxu0 %v452
          %511 = vmatprep.subr.bf16.mxu0 %v450
          %512 = vmatpush1.bf16.msra.mxu0 %v449
          %513 = vmatprep.subr.bf16.mxu0 0
          %514 = vmatpush2.bf16.msra.mxu0 0
          %515 = vmatprep.subr.bf16.mxu0 0
          %516 = vmatpush2.bf16.msra.mxu0 0
          %517 = vmatprep.subr.bf16.mxu0 0
          %518 = vmatpush2.bf16.msra.mxu0 0
          %519 = vmatprep.subr.bf16.mxu0 0
          %520 = vmatpush2.bf16.msra.mxu0 0
          %521 = vmatprep.subr.bf16.mxu0 0
          %522 = vmatpush2.bf16.msra.mxu0 0
          %523 = vmatprep.subr.bf16.mxu0 0
          %524 = vmatpush2.bf16.msra.mxu0 0
          %525 = vmatprep.subr.bf16.mxu0 0
          %526 = vmatpush2.bf16.msra.mxu0 0
          %527 = vmatprep.subr.bf16.mxu0 0
          %528 = vmatpush2.bf16.msra.mxu0 0
          %529 = vmatprep.mubr.bf16.mxu0 0
          %530 = vmatmul.mubr.bf16.gmra.mxu0 %v368
          %v531 = vpop.f32.mrf.mxu0
          %v532 = vadd.f32 0.0, %v531
          %v533 = vpop.f32.mrf.mxu0
          %v534 = vadd.f32 0.0, %v533
          %v535 = vpop.f32.mrf.mxu0
          %v536 = vpop.f32.mrf.mxu0
          %537 = vdwg.mxu0
          %538 = vmatprep.subr.bf16.mxu0 0
          %539 = vmatpush1.bf16.msra.mxu0 %v472
          %540 = vmatprep.subr.bf16.mxu0 0
          %541 = vmatpush1.bf16.msra.mxu0 %v469
          %542 = vmatprep.subr.bf16.mxu0 0
          %543 = vmatpush1.bf16.msra.mxu0 %v466
          %544 = vmatprep.subr.bf16.mxu0 0
          %545 = vmatpush1.bf16.msra.mxu0 %v463
          %546 = vmatprep.subr.bf16.mxu0 0
          %547 = vmatpush1.bf16.msra.mxu0 %v460
          %548 = vmatprep.subr.bf16.mxu0 0
          %549 = vmatpush1.bf16.msra.mxu0 %v457
          %550 = vmatprep.subr.bf16.mxu0 0
          %551 = vmatpush1.bf16.msra.mxu0 %v454
          %552 = vmatprep.subr.bf16.mxu0 0
          %553 = vmatpush1.bf16.msra.mxu0 %v451
          %554 = vmatprep.subr.bf16.mxu0 0
          %555 = vmatpush2.bf16.msra.mxu0 0
          %556 = vmatprep.subr.bf16.mxu0 0
          %557 = vmatpush2.bf16.msra.mxu0 0
          %558 = vmatprep.subr.bf16.mxu0 0
          %559 = vmatpush2.bf16.msra.mxu0 0
          %560 = vmatprep.subr.bf16.mxu0 0
          %561 = vmatpush2.bf16.msra.mxu0 0
          %562 = vmatprep.subr.bf16.mxu0 0
          %563 = vmatpush2.bf16.msra.mxu0 0
          %564 = vmatprep.subr.bf16.mxu0 0
          %565 = vmatpush2.bf16.msra.mxu0 0
          %566 = vmatprep.subr.bf16.mxu0 0
          %567 = vmatpush2.bf16.msra.mxu0 0
          %568 = vmatprep.subr.bf16.mxu0 0
          %569 = vmatpush2.bf16.msra.mxu0 0
          %570 = vmatprep.mubr.bf16.mxu0 0
          %571 = vmatmul.mubr.bf16.gmra.mxu0 %v368
          %v572 = vpop.f32.mrf.mxu0
          %v573 = vadd.f32 0.0, %v572
          %v574 = vpop.f32.mrf.mxu0
          %v575 = vpop.f32.mrf.mxu0
          %v576 = vpop.f32.mrf.mxu0
          %577 = vdwg.mxu0
          %v578 = vadd.f32 %v365, %v532
          %v579 = vxor.u32 %v578, 2147483648
          %v580 = vmul.f32 %v579, 1.442695
          %v581 = vpow.pop %v580
          %v582 = vadd.f32 %v581, 1.0
          %v583 = vrcp.pop %v582
          %v584 = vmul.f32 1.0, %v583
          %v585 = vadd.f32 %v366, %v534
          %v586 = vxor.u32 %v585, 2147483648
          %v587 = vmul.f32 %v586, 1.442695
          %v588 = vpow.pop %v587
          %v589 = vadd.f32 %v588, 1.0
          %v590 = vrcp.pop %v589
          %v591 = vmul.f32 1.0, %v590
          %v592 = vadd.f32 %v573, %v358
          %v593 = vmul.f32 %v584, %v592
          %v594 = vadd.f32 %v367, %v593
          %v595 = vtanh.pop %v594
          %v596 = vsub.f32 1.0, %v591
          %v597 = vmul.f32 %v596, %v595
          %v598 = vmul.f32 %v591, %v364
          %v599 = vadd.f32 %v597, %v598
          %600 = vst [vmem:[%s295] sm:$0xff] %v599
          %s601 = scalar_lea.vmem %s268, 24 [#allocation3]
          %v602 = vld [vmem:[%s601] sm:$0xff]
          %v603 = vld [vmem:[%s601 + $0x8] sm:$0xff]
          %v604 = vld [vmem:[%s601 + $0x10] sm:$0xff]
          %v605 = vpack.c.bf16 %v599, %v599
          %606 = vmatprep.subr.bf16.mxu0 %v471
          %607 = vmatpush1.bf16.msra.mxu0 %v470
          %608 = vmatprep.subr.bf16.mxu0 %v468
          %609 = vmatpush1.bf16.msra.mxu0 %v467
          %610 = vmatprep.subr.bf16.mxu0 %v465
          %611 = vmatpush1.bf16.msra.mxu0 %v464
          %612 = vmatprep.subr.bf16.mxu0 %v462
          %613 = vmatpush1.bf16.msra.mxu0 %v461
          %614 = vmatprep.subr.bf16.mxu0 %v459
          %615 = vmatpush1.bf16.msra.mxu0 %v458
          %616 = vmatprep.subr.bf16.mxu0 %v456
          %617 = vmatpush1.bf16.msra.mxu0 %v455
          %618 = vmatprep.subr.bf16.mxu0 %v453
          %619 = vmatpush1.bf16.msra.mxu0 %v452
          %620 = vmatprep.subr.bf16.mxu0 %v450
          %621 = vmatpush1.bf16.msra.mxu0 %v449
          %622 = vmatprep.subr.bf16.mxu0 0
          %623 = vmatpush2.bf16.msra.mxu0 0
          %624 = vmatprep.subr.bf16.mxu0 0
          %625 = vmatpush2.bf16.msra.mxu0 0
          %626 = vmatprep.subr.bf16.mxu0 0
          %627 = vmatpush2.bf16.msra.mxu0 0
          %628 = vmatprep.subr.bf16.mxu0 0
          %629 = vmatpush2.bf16.msra.mxu0 0
          %630 = vmatprep.subr.bf16.mxu0 0
          %631 = vmatpush2.bf16.msra.mxu0 0
          %632 = vmatprep.subr.bf16.mxu0 0
          %633 = vmatpush2.bf16.msra.mxu0 0
          %634 = vmatprep.subr.bf16.mxu0 0
          %635 = vmatpush2.bf16.msra.mxu0 0
          %636 = vmatprep.subr.bf16.mxu0 0
          %637 = vmatpush2.bf16.msra.mxu0 0
          %638 = vmatprep.mubr.bf16.mxu0 0
          %639 = vmatmul.mubr.bf16.gmra.mxu0 %v605
          %v640 = vpop.f32.mrf.mxu0
          %v641 = vadd.f32 0.0, %v640
          %v642 = vpop.f32.mrf.mxu0
          %v643 = vadd.f32 0.0, %v642
          %v644 = vpop.f32.mrf.mxu0
          %v645 = vpop.f32.mrf.mxu0
          %646 = vdwg.mxu0
          %647 = vmatprep.subr.bf16.mxu0 0
          %648 = vmatpush1.bf16.msra.mxu0 %v472
          %649 = vmatprep.subr.bf16.mxu0 0
          %650 = vmatpush1.bf16.msra.mxu0 %v469
          %651 = vmatprep.subr.bf16.mxu0 0
          %652 = vmatpush1.bf16.msra.mxu0 %v466
          %653 = vmatprep.subr.bf16.mxu0 0
          %654 = vmatpush1.bf16.msra.mxu0 %v463
          %655 = vmatprep.subr.bf16.mxu0 0
          %656 = vmatpush1.bf16.msra.mxu0 %v460
          %657 = vmatprep.subr.bf16.mxu0 0
          %658 = vmatpush1.bf16.msra.mxu0 %v457
          %659 = vmatprep.subr.bf16.mxu0 0
          %660 = vmatpush1.bf16.msra.mxu0 %v454
          %661 = vmatprep.subr.bf16.mxu0 0
          %662 = vmatpush1.bf16.msra.mxu0 %v451
          %663 = vmatprep.subr.bf16.mxu0 0
          %664 = vmatpush2.bf16.msra.mxu0 0
          %665 = vmatprep.subr.bf16.mxu0 0
          %666 = vmatpush2.bf16.msra.mxu0 0
          %667 = vmatprep.subr.bf16.mxu0 0
          %668 = vmatpush2.bf16.msra.mxu0 0
          %669 = vmatprep.subr.bf16.mxu0 0
          %670 = vmatpush2.bf16.msra.mxu0 0
          %671 = vmatprep.subr.bf16.mxu0 0
          %672 = vmatpush2.bf16.msra.mxu0 0
          %673 = vmatprep.subr.bf16.mxu0 0
          %674 = vmatpush2.bf16.msra.mxu0 0
          %675 = vmatprep.subr.bf16.mxu0 0
          %676 = vmatpush2.bf16.msra.mxu0 0
          %677 = vmatprep.subr.bf16.mxu0 0
          %678 = vmatpush2.bf16.msra.mxu0 0
          %679 = vmatprep.mubr.bf16.mxu0 0
          %680 = vmatmul.mubr.bf16.gmra.mxu0 %v605
          %v681 = vpop.f32.mrf.mxu0
          %v682 = vadd.f32 0.0, %v681
          %v683 = vpop.f32.mrf.mxu0
          %v684 = vpop.f32.mrf.mxu0
          %v685 = vpop.f32.mrf.mxu0
          %686 = vdwg.mxu0
          %v687 = vadd.f32 %v602, %v641
          %v688 = vxor.u32 %v687, 2147483648
          %v689 = vmul.f32 %v688, 1.442695
          %v690 = vpow.pop %v689
          %v691 = vadd.f32 %v690, 1.0
          %v692 = vrcp.pop %v691
          %v693 = vmul.f32 1.0, %v692
          %v694 = vadd.f32 %v603, %v643
          %v695 = vxor.u32 %v694, 2147483648
          %v696 = vmul.f32 %v695, 1.442695
          %v697 = vpow.pop %v696
          %v698 = vadd.f32 %v697, 1.0
          %v699 = vrcp.pop %v698
          %v700 = vmul.f32 1.0, %v699
          %v701 = vadd.f32 %v682, %v358
          %v702 = vmul.f32 %v693, %v701
          %v703 = vadd.f32 %v604, %v702
          %v704 = vtanh.pop %v703
          %v705 = vsub.f32 1.0, %v700
          %v706 = vmul.f32 %v705, %v704
          %v707 = vmul.f32 %v700, %v599
          %v708 = vadd.f32 %v706, %v707
          %s709 = scalar_lea.vmem %s295, 8 [#allocation4]
          %710 = vst [vmem:[%s709] sm:$0xff] %v708
          %s711 = scalar_lea.vmem %s268, 48 [#allocation3]
          %v712 = vld [vmem:[%s711] sm:$0xff]
          %v713 = vld [vmem:[%s711 + $0x8] sm:$0xff]
          %v714 = vld [vmem:[%s711 + $0x10] sm:$0xff]
          %v715 = vpack.c.bf16 %v708, %v708
          %716 = vmatprep.subr.bf16.mxu0 %v471
          %717 = vmatpush1.bf16.msra.mxu0 %v470
          %718 = vmatprep.subr.bf16.mxu0 %v468
          %719 = vmatpush1.bf16.msra.mxu0 %v467
          %720 = vmatprep.subr.bf16.mxu0 %v465
          %721 = vmatpush1.bf16.msra.mxu0 %v464
          %722 = vmatprep.subr.bf16.mxu0 %v462
          %723 = vmatpush1.bf16.msra.mxu0 %v461
          %724 = vmatprep.subr.bf16.mxu0 %v459
          %725 = vmatpush1.bf16.msra.mxu0 %v458
          %726 = vmatprep.subr.bf16.mxu0 %v456
          %727 = vmatpush1.bf16.msra.mxu0 %v455
          %728 = vmatprep.subr.bf16.mxu0 %v453
          %729 = vmatpush1.bf16.msra.mxu0 %v452
          %730 = vmatprep.subr.bf16.mxu0 %v450
          %731 = vmatpush1.bf16.msra.mxu0 %v449
          %732 = vmatprep.subr.bf16.mxu0 0
          %733 = vmatpush2.bf16.msra.mxu0 0
          %734 = vmatprep.subr.bf16.mxu0 0
          %735 = vmatpush2.bf16.msra.mxu0 0
          %736 = vmatprep.subr.bf16.mxu0 0
          %737 = vmatpush2.bf16.msra.mxu0 0
          %738 = vmatprep.subr.bf16.mxu0 0
          %739 = vmatpush2.bf16.msra.mxu0 0
          %740 = vmatprep.subr.bf16.mxu0 0
          %741 = vmatpush2.bf16.msra.mxu0 0
          %742 = vmatprep.subr.bf16.mxu0 0
          %743 = vmatpush2.bf16.msra.mxu0 0
          %744 = vmatprep.subr.bf16.mxu0 0
          %745 = vmatpush2.bf16.msra.mxu0 0
          %746 = vmatprep.subr.bf16.mxu0 0
          %747 = vmatpush2.bf16.msra.mxu0 0
          %748 = vmatprep.mubr.bf16.mxu0 0
          %749 = vmatmul.mubr.bf16.gmra.mxu0 %v715
          %v750 = vpop.f32.mrf.mxu0
          %v751 = vadd.f32 0.0, %v750
          %v752 = vpop.f32.mrf.mxu0
          %v753 = vadd.f32 0.0, %v752
          %v754 = vpop.f32.mrf.mxu0
          %v755 = vpop.f32.mrf.mxu0
          %756 = vdwg.mxu0
          %757 = vmatprep.subr.bf16.mxu0 0
          %758 = vmatpush1.bf16.msra.mxu0 %v472
          %759 = vmatprep.subr.bf16.mxu0 0
          %760 = vmatpush1.bf16.msra.mxu0 %v469
          %761 = vmatprep.subr.bf16.mxu0 0
          %762 = vmatpush1.bf16.msra.mxu0 %v466
          %763 = vmatprep.subr.bf16.mxu0 0
          %764 = vmatpush1.bf16.msra.mxu0 %v463
          %765 = vmatprep.subr.bf16.mxu0 0
          %766 = vmatpush1.bf16.msra.mxu0 %v460
          %767 = vmatprep.subr.bf16.mxu0 0
          %768 = vmatpush1.bf16.msra.mxu0 %v457
          %769 = vmatprep.subr.bf16.mxu0 0
          %770 = vmatpush1.bf16.msra.mxu0 %v454
          %771 = vmatprep.subr.bf16.mxu0 0
          %772 = vmatpush1.bf16.msra.mxu0 %v451
          %773 = vmatprep.subr.bf16.mxu0 0
          %774 = vmatpush2.bf16.msra.mxu0 0
          %775 = vmatprep.subr.bf16.mxu0 0
          %776 = vmatpush2.bf16.msra.mxu0 0
          %777 = vmatprep.subr.bf16.mxu0 0
          %778 = vmatpush2.bf16.msra.mxu0 0
          %779 = vmatprep.subr.bf16.mxu0 0
          %780 = vmatpush2.bf16.msra.mxu0 0
          %781 = vmatprep.subr.bf16.mxu0 0
          %782 = vmatpush2.bf16.msra.mxu0 0
          %783 = vmatprep.subr.bf16.mxu0 0
          %784 = vmatpush2.bf16.msra.mxu0 0
          %785 = vmatprep.subr.bf16.mxu0 0
          %786 = vmatpush2.bf16.msra.mxu0 0
          %787 = vmatprep.subr.bf16.mxu0 0
          %788 = vmatpush2.bf16.msra.mxu0 0
          %789 = vmatprep.mubr.bf16.mxu0 0
          %790 = vmatmul.mubr.bf16.gmra.mxu0 %v715
          %v791 = vpop.f32.mrf.mxu0
          %v792 = vadd.f32 0.0, %v791
          %v793 = vpop.f32.mrf.mxu0
          %v794 = vpop.f32.mrf.mxu0
          %v795 = vpop.f32.mrf.mxu0
          %796 = vdwg.mxu0
          %v797 = vadd.f32 %v712, %v751
          %v798 = vxor.u32 %v797, 2147483648
          %v799 = vmul.f32 %v798, 1.442695
          %v800 = vpow.pop %v799
          %v801 = vadd.f32 %v800, 1.0
          %v802 = vrcp.pop %v801
          %v803 = vmul.f32 1.0, %v802
          %v804 = vadd.f32 %v713, %v753
          %v805 = vxor.u32 %v804, 2147483648
          %v806 = vmul.f32 %v805, 1.442695
          %v807 = vpow.pop %v806
          %v808 = vadd.f32 %v807, 1.0
          %v809 = vrcp.pop %v808
          %v810 = vmul.f32 1.0, %v809
          %v811 = vadd.f32 %v792, %v358
          %v812 = vmul.f32 %v803, %v811
          %v813 = vadd.f32 %v714, %v812
          %v814 = vtanh.pop %v813
          %v815 = vsub.f32 1.0, %v810
          %v816 = vmul.f32 %v815, %v814
          %v817 = vmul.f32 %v810, %v708
          %v818 = vadd.f32 %v816, %v817
          %s819 = scalar_lea.vmem %s295, 16 [#allocation4]
          %820 = vst [vmem:[%s819] sm:$0xff] %v818
          %s821 = scalar_lea.vmem %s268, 72 [#allocation3]
          %v822 = vld [vmem:[%s821] sm:$0xff]
          %v823 = vld [vmem:[%s821 + $0x8] sm:$0xff]
          %v824 = vld [vmem:[%s821 + $0x10] sm:$0xff]
          %v825 = vpack.c.bf16 %v818, %v818
          %826 = vmatprep.subr.bf16.mxu0 %v471
          %827 = vmatpush1.bf16.msra.mxu0 %v470
          %828 = vmatprep.subr.bf16.mxu0 %v468
          %829 = vmatpush1.bf16.msra.mxu0 %v467
          %830 = vmatprep.subr.bf16.mxu0 %v465
          %831 = vmatpush1.bf16.msra.mxu0 %v464
          %832 = vmatprep.subr.bf16.mxu0 %v462
          %833 = vmatpush1.bf16.msra.mxu0 %v461
          %834 = vmatprep.subr.bf16.mxu0 %v459
          %835 = vmatpush1.bf16.msra.mxu0 %v458
          %836 = vmatprep.subr.bf16.mxu0 %v456
          %837 = vmatpush1.bf16.msra.mxu0 %v455
          %838 = vmatprep.subr.bf16.mxu0 %v453
          %839 = vmatpush1.bf16.msra.mxu0 %v452
          %840 = vmatprep.subr.bf16.mxu0 %v450
          %841 = vmatpush1.bf16.msra.mxu0 %v449
          %842 = vmatprep.subr.bf16.mxu0 0
          %843 = vmatpush2.bf16.msra.mxu0 0
          %844 = vmatprep.subr.bf16.mxu0 0
          %845 = vmatpush2.bf16.msra.mxu0 0
          %846 = vmatprep.subr.bf16.mxu0 0
          %847 = vmatpush2.bf16.msra.mxu0 0
          %848 = vmatprep.subr.bf16.mxu0 0
          %849 = vmatpush2.bf16.msra.mxu0 0
          %850 = vmatprep.subr.bf16.mxu0 0
          %851 = vmatpush2.bf16.msra.mxu0 0
          %852 = vmatprep.subr.bf16.mxu0 0
          %853 = vmatpush2.bf16.msra.mxu0 0
          %854 = vmatprep.subr.bf16.mxu0 0
          %855 = vmatpush2.bf16.msra.mxu0 0
          %856 = vmatprep.subr.bf16.mxu0 0
          %857 = vmatpush2.bf16.msra.mxu0 0
          %858 = vmatprep.mubr.bf16.mxu0 0
          %859 = vmatmul.mubr.bf16.gmra.mxu0 %v825
          %v860 = vpop.f32.mrf.mxu0
          %v861 = vadd.f32 0.0, %v860
          %v862 = vpop.f32.mrf.mxu0
          %v863 = vadd.f32 0.0, %v862
          %v864 = vpop.f32.mrf.mxu0
          %v865 = vpop.f32.mrf.mxu0
          %866 = vdwg.mxu0
          %867 = vmatprep.subr.bf16.mxu0 0
          %868 = vmatpush1.bf16.msra.mxu0 %v472
          %869 = vmatprep.subr.bf16.mxu0 0
          %870 = vmatpush1.bf16.msra.mxu0 %v469
          %871 = vmatprep.subr.bf16.mxu0 0
          %872 = vmatpush1.bf16.msra.mxu0 %v466
          %873 = vmatprep.subr.bf16.mxu0 0
          %874 = vmatpush1.bf16.msra.mxu0 %v463
          %875 = vmatprep.subr.bf16.mxu0 0
          %876 = vmatpush1.bf16.msra.mxu0 %v460
          %877 = vmatprep.subr.bf16.mxu0 0
          %878 = vmatpush1.bf16.msra.mxu0 %v457
          %879 = vmatprep.subr.bf16.mxu0 0
          %880 = vmatpush1.bf16.msra.mxu0 %v454
          %881 = vmatprep.subr.bf16.mxu0 0
          %882 = vmatpush1.bf16.msra.mxu0 %v451
          %883 = vmatprep.subr.bf16.mxu0 0
          %884 = vmatpush2.bf16.msra.mxu0 0
          %885 = vmatprep.subr.bf16.mxu0 0
          %886 = vmatpush2.bf16.msra.mxu0 0
          %887 = vmatprep.subr.bf16.mxu0 0
          %888 = vmatpush2.bf16.msra.mxu0 0
          %889 = vmatprep.subr.bf16.mxu0 0
          %890 = vmatpush2.bf16.msra.mxu0 0
          %891 = vmatprep.subr.bf16.mxu0 0
          %892 = vmatpush2.bf16.msra.mxu0 0
          %893 = vmatprep.subr.bf16.mxu0 0
          %894 = vmatpush2.bf16.msra.mxu0 0
          %895 = vmatprep.subr.bf16.mxu0 0
          %896 = vmatpush2.bf16.msra.mxu0 0
          %897 = vmatprep.subr.bf16.mxu0 0
          %898 = vmatpush2.bf16.msra.mxu0 0
          %899 = vmatprep.mubr.bf16.mxu0 0
          %900 = vmatmul.mubr.bf16.gmra.mxu0 %v825
          %v901 = vpop.f32.mrf.mxu0
          %v902 = vadd.f32 0.0, %v901
          %v903 = vpop.f32.mrf.mxu0
          %v904 = vpop.f32.mrf.mxu0
          %v905 = vpop.f32.mrf.mxu0
          %906 = vdwg.mxu0
          %v907 = vadd.f32 %v822, %v861
          %v908 = vxor.u32 %v907, 2147483648
          %v909 = vmul.f32 %v908, 1.442695
          %v910 = vpow.pop %v909
          %v911 = vadd.f32 %v910, 1.0
          %v912 = vrcp.pop %v911
          %v913 = vmul.f32 1.0, %v912
          %v914 = vadd.f32 %v823, %v863
          %v915 = vxor.u32 %v914, 2147483648
          %v916 = vmul.f32 %v915, 1.442695
          %v917 = vpow.pop %v916
          %v918 = vadd.f32 %v917, 1.0
          %v919 = vrcp.pop %v918
          %v920 = vmul.f32 1.0, %v919
          %v921 = vadd.f32 %v902, %v358
          %v922 = vmul.f32 %v913, %v921
          %v923 = vadd.f32 %v824, %v922
          %v924 = vtanh.pop %v923
          %v925 = vsub.f32 1.0, %v920
          %v926 = vmul.f32 %v925, %v924
          %v927 = vmul.f32 %v920, %v818
          %v928 = vadd.f32 %v926, %v927
          %s929 = scalar_lea.vmem %s295, 24 [#allocation4]
          %930 = vst [vmem:[%s929] sm:$0xff] %v928
          %s931 = scalar_lea.vmem %s268, 96 [#allocation3]
          %v932 = vld [vmem:[%s931] sm:$0xff]
          %v933 = vld [vmem:[%s931 + $0x8] sm:$0xff]
          %v934 = vld [vmem:[%s931 + $0x10] sm:$0xff]
          %v935 = vpack.c.bf16 %v928, %v928
          %936 = vmatprep.subr.bf16.mxu0 %v471
          %937 = vmatpush1.bf16.msra.mxu0 %v470
          %938 = vmatprep.subr.bf16.mxu0 %v468
          %939 = vmatpush1.bf16.msra.mxu0 %v467
          %940 = vmatprep.subr.bf16.mxu0 %v465
          %941 = vmatpush1.bf16.msra.mxu0 %v464
          %942 = vmatprep.subr.bf16.mxu0 %v462
          %943 = vmatpush1.bf16.msra.mxu0 %v461
          %944 = vmatprep.subr.bf16.mxu0 %v459
          %945 = vmatpush1.bf16.msra.mxu0 %v458
          %946 = vmatprep.subr.bf16.mxu0 %v456
          %947 = vmatpush1.bf16.msra.mxu0 %v455
          %948 = vmatprep.subr.bf16.mxu0 %v453
          %949 = vmatpush1.bf16.msra.mxu0 %v452
          %950 = vmatprep.subr.bf16.mxu0 %v450
          %951 = vmatpush1.bf16.msra.mxu0 %v449
          %952 = vmatprep.subr.bf16.mxu0 0
          %953 = vmatpush2.bf16.msra.mxu0 0
          %954 = vmatprep.subr.bf16.mxu0 0
          %955 = vmatpush2.bf16.msra.mxu0 0
          %956 = vmatprep.subr.bf16.mxu0 0
          %957 = vmatpush2.bf16.msra.mxu0 0
          %958 = vmatprep.subr.bf16.mxu0 0
          %959 = vmatpush2.bf16.msra.mxu0 0
          %960 = vmatprep.subr.bf16.mxu0 0
          %961 = vmatpush2.bf16.msra.mxu0 0
          %962 = vmatprep.subr.bf16.mxu0 0
          %963 = vmatpush2.bf16.msra.mxu0 0
          %964 = vmatprep.subr.bf16.mxu0 0
          %965 = vmatpush2.bf16.msra.mxu0 0
          %966 = vmatprep.subr.bf16.mxu0 0
          %967 = vmatpush2.bf16.msra.mxu0 0
          %968 = vmatprep.mubr.bf16.mxu0 0
          %969 = vmatmul.mubr.bf16.gmra.mxu0 %v935
          %v970 = vpop.f32.mrf.mxu0
          %v971 = vadd.f32 0.0, %v970
          %v972 = vpop.f32.mrf.mxu0
          %v973 = vadd.f32 0.0, %v972
          %v974 = vpop.f32.mrf.mxu0
          %v975 = vpop.f32.mrf.mxu0
          %976 = vdwg.mxu0
          %977 = vmatprep.subr.bf16.mxu0 0
          %978 = vmatpush1.bf16.msra.mxu0 %v472
          %979 = vmatprep.subr.bf16.mxu0 0
          %980 = vmatpush1.bf16.msra.mxu0 %v469
          %981 = vmatprep.subr.bf16.mxu0 0
          %982 = vmatpush1.bf16.msra.mxu0 %v466
          %983 = vmatprep.subr.bf16.mxu0 0
          %984 = vmatpush1.bf16.msra.mxu0 %v463
          %985 = vmatprep.subr.bf16.mxu0 0
          %986 = vmatpush1.bf16.msra.mxu0 %v460
          %987 = vmatprep.subr.bf16.mxu0 0
          %988 = vmatpush1.bf16.msra.mxu0 %v457
          %989 = vmatprep.subr.bf16.mxu0 0
          %990 = vmatpush1.bf16.msra.mxu0 %v454
          %991 = vmatprep.subr.bf16.mxu0 0
          %992 = vmatpush1.bf16.msra.mxu0 %v451
          %993 = vmatprep.subr.bf16.mxu0 0
          %994 = vmatpush2.bf16.msra.mxu0 0
          %995 = vmatprep.subr.bf16.mxu0 0
          %996 = vmatpush2.bf16.msra.mxu0 0
          %997 = vmatprep.subr.bf16.mxu0 0
          %998 = vmatpush2.bf16.msra.mxu0 0
          %999 = vmatprep.subr.bf16.mxu0 0
          %1000 = vmatpush2.bf16.msra.mxu0 0
          %1001 = vmatprep.subr.bf16.mxu0 0
          %1002 = vmatpush2.bf16.msra.mxu0 0
          %1003 = vmatprep.subr.bf16.mxu0 0
          %1004 = vmatpush2.bf16.msra.mxu0 0
          %1005 = vmatprep.subr.bf16.mxu0 0
          %1006 = vmatpush2.bf16.msra.mxu0 0
          %1007 = vmatprep.subr.bf16.mxu0 0
          %1008 = vmatpush2.bf16.msra.mxu0 0
          %1009 = vmatprep.mubr.bf16.mxu0 0
          %1010 = vmatmul.mubr.bf16.gmra.mxu0 %v935
          %v1011 = vpop.f32.mrf.mxu0
          %v1012 = vadd.f32 0.0, %v1011
          %v1013 = vpop.f32.mrf.mxu0
          %v1014 = vpop.f32.mrf.mxu0
          %v1015 = vpop.f32.mrf.mxu0
          %1016 = vdwg.mxu0
          %v1017 = vadd.f32 %v932, %v971
          %v1018 = vxor.u32 %v1017, 2147483648
          %v1019 = vmul.f32 %v1018, 1.442695
          %v1020 = vpow.pop %v1019
          %v1021 = vadd.f32 %v1020, 1.0
          %v1022 = vrcp.pop %v1021
          %v1023 = vmul.f32 1.0, %v1022
          %v1024 = vadd.f32 %v933, %v973
          %v1025 = vxor.u32 %v1024, 2147483648
          %v1026 = vmul.f32 %v1025, 1.442695
          %v1027 = vpow.pop %v1026
          %v1028 = vadd.f32 %v1027, 1.0
          %v1029 = vrcp.pop %v1028
          %v1030 = vmul.f32 1.0, %v1029
          %v1031 = vadd.f32 %v1012, %v358
          %v1032 = vmul.f32 %v1023, %v1031
          %v1033 = vadd.f32 %v934, %v1032
          %v1034 = vtanh.pop %v1033
          %v1035 = vsub.f32 1.0, %v1030
          %v1036 = vmul.f32 %v1035, %v1034
          %v1037 = vmul.f32 %v1030, %v928
          %v1038 = vadd.f32 %v1036, %v1037
          %s1039 = scalar_lea.vmem %s295, 32 [#allocation4]
          %1040 = vst [vmem:[%s1039] sm:$0xff] %v1038
          %s1041 = scalar_lea.vmem %s268, 120 [#allocation3]
          %v1042 = vld [vmem:[%s1041] sm:$0xff]
          %v1043 = vld [vmem:[%s1041 + $0x8] sm:$0xff]
          %v1044 = vld [vmem:[%s1041 + $0x10] sm:$0xff]
          %v1045 = vpack.c.bf16 %v1038, %v1038
          %1046 = vmatprep.subr.bf16.mxu0 %v471
          %1047 = vmatpush1.bf16.msra.mxu0 %v470
          %1048 = vmatprep.subr.bf16.mxu0 %v468
          %1049 = vmatpush1.bf16.msra.mxu0 %v467
          %1050 = vmatprep.subr.bf16.mxu0 %v465
          %1051 = vmatpush1.bf16.msra.mxu0 %v464
          %1052 = vmatprep.subr.bf16.mxu0 %v462
          %1053 = vmatpush1.bf16.msra.mxu0 %v461
          %1054 = vmatprep.subr.bf16.mxu0 %v459
          %1055 = vmatpush1.bf16.msra.mxu0 %v458
          %1056 = vmatprep.subr.bf16.mxu0 %v456
          %1057 = vmatpush1.bf16.msra.mxu0 %v455
          %1058 = vmatprep.subr.bf16.mxu0 %v453
          %1059 = vmatpush1.bf16.msra.mxu0 %v452
          %1060 = vmatprep.subr.bf16.mxu0 %v450
          %1061 = vmatpush1.bf16.msra.mxu0 %v449
          %1062 = vmatprep.subr.bf16.mxu0 0
          %1063 = vmatpush2.bf16.msra.mxu0 0
          %1064 = vmatprep.subr.bf16.mxu0 0
          %1065 = vmatpush2.bf16.msra.mxu0 0
          %1066 = vmatprep.subr.bf16.mxu0 0
          %1067 = vmatpush2.bf16.msra.mxu0 0
          %1068 = vmatprep.subr.bf16.mxu0 0
          %1069 = vmatpush2.bf16.msra.mxu0 0
          %1070 = vmatprep.subr.bf16.mxu0 0
          %1071 = vmatpush2.bf16.msra.mxu0 0
          %1072 = vmatprep.subr.bf16.mxu0 0
          %1073 = vmatpush2.bf16.msra.mxu0 0
          %1074 = vmatprep.subr.bf16.mxu0 0
          %1075 = vmatpush2.bf16.msra.mxu0 0
          %1076 = vmatprep.subr.bf16.mxu0 0
          %1077 = vmatpush2.bf16.msra.mxu0 0
          %1078 = vmatprep.mubr.bf16.mxu0 0
          %1079 = vmatmul.mubr.bf16.gmra.mxu0 %v1045
          %v1080 = vpop.f32.mrf.mxu0
          %v1081 = vadd.f32 0.0, %v1080
          %v1082 = vpop.f32.mrf.mxu0
          %v1083 = vadd.f32 0.0, %v1082
          %v1084 = vpop.f32.mrf.mxu0
          %v1085 = vpop.f32.mrf.mxu0
          %1086 = vdwg.mxu0
          %1087 = vmatprep.subr.bf16.mxu0 0
          %1088 = vmatpush1.bf16.msra.mxu0 %v472
          %1089 = vmatprep.subr.bf16.mxu0 0
          %1090 = vmatpush1.bf16.msra.mxu0 %v469
          %1091 = vmatprep.subr.bf16.mxu0 0
          %1092 = vmatpush1.bf16.msra.mxu0 %v466
          %1093 = vmatprep.subr.bf16.mxu0 0
          %1094 = vmatpush1.bf16.msra.mxu0 %v463
          %1095 = vmatprep.subr.bf16.mxu0 0
          %1096 = vmatpush1.bf16.msra.mxu0 %v460
          %1097 = vmatprep.subr.bf16.mxu0 0
          %1098 = vmatpush1.bf16.msra.mxu0 %v457
          %1099 = vmatprep.subr.bf16.mxu0 0
          %1100 = vmatpush1.bf16.msra.mxu0 %v454
          %1101 = vmatprep.subr.bf16.mxu0 0
          %1102 = vmatpush1.bf16.msra.mxu0 %v451
          %1103 = vmatprep.subr.bf16.mxu0 0
          %1104 = vmatpush2.bf16.msra.mxu0 0
          %1105 = vmatprep.subr.bf16.mxu0 0
          %1106 = vmatpush2.bf16.msra.mxu0 0
          %1107 = vmatprep.subr.bf16.mxu0 0
          %1108 = vmatpush2.bf16.msra.mxu0 0
          %1109 = vmatprep.subr.bf16.mxu0 0
          %1110 = vmatpush2.bf16.msra.mxu0 0
          %1111 = vmatprep.subr.bf16.mxu0 0
          %1112 = vmatpush2.bf16.msra.mxu0 0
          %1113 = vmatprep.subr.bf16.mxu0 0
          %1114 = vmatpush2.bf16.msra.mxu0 0
          %1115 = vmatprep.subr.bf16.mxu0 0
          %1116 = vmatpush2.bf16.msra.mxu0 0
          %1117 = vmatprep.subr.bf16.mxu0 0
          %1118 = vmatpush2.bf16.msra.mxu0 0
          %1119 = vmatprep.mubr.bf16.mxu0 0
          %1120 = vmatmul.mubr.bf16.gmra.mxu0 %v1045
          %v1121 = vpop.f32.mrf.mxu0
          %v1122 = vadd.f32 0.0, %v1121
          %v1123 = vpop.f32.mrf.mxu0
          %v1124 = vpop.f32.mrf.mxu0
          %v1125 = vpop.f32.mrf.mxu0
          %1126 = vdwg.mxu0
          %v1127 = vadd.f32 %v1042, %v1081
          %v1128 = vxor.u32 %v1127, 2147483648
          %v1129 = vmul.f32 %v1128, 1.442695
          %v1130 = vpow.pop %v1129
          %v1131 = vadd.f32 %v1130, 1.0
          %v1132 = vrcp.pop %v1131
          %v1133 = vmul.f32 1.0, %v1132
          %v1134 = vadd.f32 %v1043, %v1083
          %v1135 = vxor.u32 %v1134, 2147483648
          %v1136 = vmul.f32 %v1135, 1.442695
          %v1137 = vpow.pop %v1136
          %v1138 = vadd.f32 %v1137, 1.0
          %v1139 = vrcp.pop %v1138
          %v1140 = vmul.f32 1.0, %v1139
          %v1141 = vadd.f32 %v1122, %v358
          %v1142 = vmul.f32 %v1133, %v1141
          %v1143 = vadd.f32 %v1044, %v1142
          %v1144 = vtanh.pop %v1143
          %v1145 = vsub.f32 1.0, %v1140
          %v1146 = vmul.f32 %v1145, %v1144
          %v1147 = vmul.f32 %v1140, %v1038
          %v1148 = vadd.f32 %v1146, %v1147
          %s1149 = scalar_lea.vmem %s295, 40 [#allocation4]
          %1150 = vst [vmem:[%s1149] sm:$0xff] %v1148
          %s1151 = scalar_lea.vmem %s268, 144 [#allocation3]
          %v1152 = vld [vmem:[%s1151] sm:$0xff]
          %v1153 = vld [vmem:[%s1151 + $0x8] sm:$0xff]
          %v1154 = vld [vmem:[%s1151 + $0x10] sm:$0xff]
          %v1155 = vpack.c.bf16 %v1148, %v1148
          %1156 = vmatprep.subr.bf16.mxu0 %v471
          %1157 = vmatpush1.bf16.msra.mxu0 %v470
          %1158 = vmatprep.subr.bf16.mxu0 %v468
          %1159 = vmatpush1.bf16.msra.mxu0 %v467
          %1160 = vmatprep.subr.bf16.mxu0 %v465
          %1161 = vmatpush1.bf16.msra.mxu0 %v464
          %1162 = vmatprep.subr.bf16.mxu0 %v462
          %1163 = vmatpush1.bf16.msra.mxu0 %v461
          %1164 = vmatprep.subr.bf16.mxu0 %v459
          %1165 = vmatpush1.bf16.msra.mxu0 %v458
          %1166 = vmatprep.subr.bf16.mxu0 %v456
          %1167 = vmatpush1.bf16.msra.mxu0 %v455
          %1168 = vmatprep.subr.bf16.mxu0 %v453
          %1169 = vmatpush1.bf16.msra.mxu0 %v452
          %1170 = vmatprep.subr.bf16.mxu0 %v450
          %1171 = vmatpush1.bf16.msra.mxu0 %v449
          %1172 = vmatprep.subr.bf16.mxu0 0
          %1173 = vmatpush2.bf16.msra.mxu0 0
          %1174 = vmatprep.subr.bf16.mxu0 0
          %1175 = vmatpush2.bf16.msra.mxu0 0
          %1176 = vmatprep.subr.bf16.mxu0 0
          %1177 = vmatpush2.bf16.msra.mxu0 0
          %1178 = vmatprep.subr.bf16.mxu0 0
          %1179 = vmatpush2.bf16.msra.mxu0 0
          %1180 = vmatprep.subr.bf16.mxu0 0
          %1181 = vmatpush2.bf16.msra.mxu0 0
          %1182 = vmatprep.subr.bf16.mxu0 0
          %1183 = vmatpush2.bf16.msra.mxu0 0
          %1184 = vmatprep.subr.bf16.mxu0 0
          %1185 = vmatpush2.bf16.msra.mxu0 0
          %1186 = vmatprep.subr.bf16.mxu0 0
          %1187 = vmatpush2.bf16.msra.mxu0 0
          %1188 = vmatprep.mubr.bf16.mxu0 0
          %1189 = vmatmul.mubr.bf16.gmra.mxu0 %v1155
          %v1190 = vpop.f32.mrf.mxu0
          %v1191 = vadd.f32 0.0, %v1190
          %v1192 = vpop.f32.mrf.mxu0
          %v1193 = vadd.f32 0.0, %v1192
          %v1194 = vpop.f32.mrf.mxu0
          %v1195 = vpop.f32.mrf.mxu0
          %1196 = vdwg.mxu0
          %1197 = vmatprep.subr.bf16.mxu0 0
          %1198 = vmatpush1.bf16.msra.mxu0 %v472
          %1199 = vmatprep.subr.bf16.mxu0 0
          %1200 = vmatpush1.bf16.msra.mxu0 %v469
          %1201 = vmatprep.subr.bf16.mxu0 0
          %1202 = vmatpush1.bf16.msra.mxu0 %v466
          %1203 = vmatprep.subr.bf16.mxu0 0
          %1204 = vmatpush1.bf16.msra.mxu0 %v463
          %1205 = vmatprep.subr.bf16.mxu0 0
          %1206 = vmatpush1.bf16.msra.mxu0 %v460
          %1207 = vmatprep.subr.bf16.mxu0 0
          %1208 = vmatpush1.bf16.msra.mxu0 %v457
          %1209 = vmatprep.subr.bf16.mxu0 0
          %1210 = vmatpush1.bf16.msra.mxu0 %v454
          %1211 = vmatprep.subr.bf16.mxu0 0
          %1212 = vmatpush1.bf16.msra.mxu0 %v451
          %1213 = vmatprep.subr.bf16.mxu0 0
          %1214 = vmatpush2.bf16.msra.mxu0 0
          %1215 = vmatprep.subr.bf16.mxu0 0
          %1216 = vmatpush2.bf16.msra.mxu0 0
          %1217 = vmatprep.subr.bf16.mxu0 0
          %1218 = vmatpush2.bf16.msra.mxu0 0
          %1219 = vmatprep.subr.bf16.mxu0 0
          %1220 = vmatpush2.bf16.msra.mxu0 0
          %1221 = vmatprep.subr.bf16.mxu0 0
          %1222 = vmatpush2.bf16.msra.mxu0 0
          %1223 = vmatprep.subr.bf16.mxu0 0
          %1224 = vmatpush2.bf16.msra.mxu0 0
          %1225 = vmatprep.subr.bf16.mxu0 0
          %1226 = vmatpush2.bf16.msra.mxu0 0
          %1227 = vmatprep.subr.bf16.mxu0 0
          %1228 = vmatpush2.bf16.msra.mxu0 0
          %1229 = vmatprep.mubr.bf16.mxu0 0
          %1230 = vmatmul.mubr.bf16.gmra.mxu0 %v1155
          %v1231 = vpop.f32.mrf.mxu0
          %v1232 = vadd.f32 0.0, %v1231
          %v1233 = vpop.f32.mrf.mxu0
          %v1234 = vpop.f32.mrf.mxu0
          %v1235 = vpop.f32.mrf.mxu0
          %1236 = vdwg.mxu0
          %v1237 = vadd.f32 %v1152, %v1191
          %v1238 = vxor.u32 %v1237, 2147483648
          %v1239 = vmul.f32 %v1238, 1.442695
          %v1240 = vpow.pop %v1239
          %v1241 = vadd.f32 %v1240, 1.0
          %v1242 = vrcp.pop %v1241
          %v1243 = vmul.f32 1.0, %v1242
          %v1244 = vadd.f32 %v1153, %v1193
          %v1245 = vxor.u32 %v1244, 2147483648
          %v1246 = vmul.f32 %v1245, 1.442695
          %v1247 = vpow.pop %v1246
          %v1248 = vadd.f32 %v1247, 1.0
          %v1249 = vrcp.pop %v1248
          %v1250 = vmul.f32 1.0, %v1249
          %v1251 = vadd.f32 %v1232, %v358
          %v1252 = vmul.f32 %v1243, %v1251
          %v1253 = vadd.f32 %v1154, %v1252
          %v1254 = vtanh.pop %v1253
          %v1255 = vsub.f32 1.0, %v1250
          %v1256 = vmul.f32 %v1255, %v1254
          %v1257 = vmul.f32 %v1250, %v1148
          %v1258 = vadd.f32 %v1256, %v1257
          %s1259 = scalar_lea.vmem %s295, 48 [#allocation4]
          %1260 = vst [vmem:[%s1259] sm:$0xff] %v1258
          %s1261 = scalar_lea.vmem %s268, 168 [#allocation3]
          %v1262 = vld [vmem:[%s1261] sm:$0xff]
          %v1263 = vld [vmem:[%s1261 + $0x8] sm:$0xff]
          %v1264 = vld [vmem:[%s1261 + $0x10] sm:$0xff]
          %v1265 = vpack.c.bf16 %v1258, %v1258
          %1266 = vmatprep.subr.bf16.mxu0 %v471
          %1267 = vmatpush1.bf16.msra.mxu0 %v470
          %1268 = vmatprep.subr.bf16.mxu0 %v468
          %1269 = vmatpush1.bf16.msra.mxu0 %v467
          %1270 = vmatprep.subr.bf16.mxu0 %v465
          %1271 = vmatpush1.bf16.msra.mxu0 %v464
          %1272 = vmatprep.subr.bf16.mxu0 %v462
          %1273 = vmatpush1.bf16.msra.mxu0 %v461
          %1274 = vmatprep.subr.bf16.mxu0 %v459
          %1275 = vmatpush1.bf16.msra.mxu0 %v458
          %1276 = vmatprep.subr.bf16.mxu0 %v456
          %1277 = vmatpush1.bf16.msra.mxu0 %v455
          %1278 = vmatprep.subr.bf16.mxu0 %v453
          %1279 = vmatpush1.bf16.msra.mxu0 %v452
          %1280 = vmatprep.subr.bf16.mxu0 %v450
          %1281 = vmatpush1.bf16.msra.mxu0 %v449
          %1282 = vmatprep.subr.bf16.mxu0 0
          %1283 = vmatpush2.bf16.msra.mxu0 0
          %1284 = vmatprep.subr.bf16.mxu0 0
          %1285 = vmatpush2.bf16.msra.mxu0 0
          %1286 = vmatprep.subr.bf16.mxu0 0
          %1287 = vmatpush2.bf16.msra.mxu0 0
          %1288 = vmatprep.subr.bf16.mxu0 0
          %1289 = vmatpush2.bf16.msra.mxu0 0
          %1290 = vmatprep.subr.bf16.mxu0 0
          %1291 = vmatpush2.bf16.msra.mxu0 0
          %1292 = vmatprep.subr.bf16.mxu0 0
          %1293 = vmatpush2.bf16.msra.mxu0 0
          %1294 = vmatprep.subr.bf16.mxu0 0
          %1295 = vmatpush2.bf16.msra.mxu0 0
          %1296 = vmatprep.subr.bf16.mxu0 0
          %1297 = vmatpush2.bf16.msra.mxu0 0
          %1298 = vmatprep.mubr.bf16.mxu0 0
          %1299 = vmatmul.mubr.bf16.gmra.mxu0 %v1265
          %v1300 = vpop.f32.mrf.mxu0
          %v1301 = vadd.f32 0.0, %v1300
          %v1302 = vpop.f32.mrf.mxu0
          %v1303 = vadd.f32 0.0, %v1302
          %v1304 = vpop.f32.mrf.mxu0
          %v1305 = vpop.f32.mrf.mxu0
          %1306 = vdwg.mxu0
          %1307 = vmatprep.subr.bf16.mxu0 0
          %1308 = vmatpush1.bf16.msra.mxu0 %v472
          %1309 = vmatprep.subr.bf16.mxu0 0
          %1310 = vmatpush1.bf16.msra.mxu0 %v469
          %1311 = vmatprep.subr.bf16.mxu0 0
          %1312 = vmatpush1.bf16.msra.mxu0 %v466
          %1313 = vmatprep.subr.bf16.mxu0 0
          %1314 = vmatpush1.bf16.msra.mxu0 %v463
          %1315 = vmatprep.subr.bf16.mxu0 0
          %1316 = vmatpush1.bf16.msra.mxu0 %v460
          %1317 = vmatprep.subr.bf16.mxu0 0
          %1318 = vmatpush1.bf16.msra.mxu0 %v457
          %1319 = vmatprep.subr.bf16.mxu0 0
          %1320 = vmatpush1.bf16.msra.mxu0 %v454
          %1321 = vmatprep.subr.bf16.mxu0 0
          %1322 = vmatpush1.bf16.msra.mxu0 %v451
          %1323 = vmatprep.subr.bf16.mxu0 0
          %1324 = vmatpush2.bf16.msra.mxu0 0
          %1325 = vmatprep.subr.bf16.mxu0 0
          %1326 = vmatpush2.bf16.msra.mxu0 0
          %1327 = vmatprep.subr.bf16.mxu0 0
          %1328 = vmatpush2.bf16.msra.mxu0 0
          %1329 = vmatprep.subr.bf16.mxu0 0
          %1330 = vmatpush2.bf16.msra.mxu0 0
          %1331 = vmatprep.subr.bf16.mxu0 0
          %1332 = vmatpush2.bf16.msra.mxu0 0
          %1333 = vmatprep.subr.bf16.mxu0 0
          %1334 = vmatpush2.bf16.msra.mxu0 0
          %1335 = vmatprep.subr.bf16.mxu0 0
          %1336 = vmatpush2.bf16.msra.mxu0 0
          %1337 = vmatprep.subr.bf16.mxu0 0
          %1338 = vmatpush2.bf16.msra.mxu0 0
          %1339 = vmatprep.mubr.bf16.mxu0 0
          %1340 = vmatmul.mubr.bf16.gmra.mxu0 %v1265
          %v1341 = vpop.f32.mrf.mxu0
          %v1342 = vadd.f32 0.0, %v1341
          %v1343 = vpop.f32.mrf.mxu0
          %v1344 = vpop.f32.mrf.mxu0
          %v1345 = vpop.f32.mrf.mxu0
          %1346 = vdwg.mxu0
          %v1347 = vadd.f32 %v1262, %v1301
          %v1348 = vxor.u32 %v1347, 2147483648
          %v1349 = vmul.f32 %v1348, 1.442695
          %v1350 = vpow.pop %v1349
          %v1351 = vadd.f32 %v1350, 1.0
          %v1352 = vrcp.pop %v1351
          %v1353 = vmul.f32 1.0, %v1352
          %v1354 = vadd.f32 %v1263, %v1303
          %v1355 = vxor.u32 %v1354, 2147483648
          %v1356 = vmul.f32 %v1355, 1.442695
          %v1357 = vpow.pop %v1356
          %v1358 = vadd.f32 %v1357, 1.0
          %v1359 = vrcp.pop %v1358
          %v1360 = vmul.f32 1.0, %v1359
          %v1361 = vadd.f32 %v1342, %v358
          %v1362 = vmul.f32 %v1353, %v1361
          %v1363 = vadd.f32 %v1264, %v1362
          %v1364 = vtanh.pop %v1363
          %v1365 = vsub.f32 1.0, %v1360
          %v1366 = vmul.f32 %v1365, %v1364
          %v1367 = vmul.f32 %v1360, %v1258
          %v1368 = vadd.f32 %v1366, %v1367
          %s1369 = scalar_lea.vmem %s295, 56 [#allocation4]
          %1370 = vst [vmem:[%s1369] sm:$0xff] %v1368
          %1371 = vst [vmem:[#allocation2] sm:$0xff] %v1368
        $region63: #{encoder_forward_pallas.1} parent=50 // pred_fallthru
          _
        %p1372 = scmp.eq.s32.totalorder %s18, 1
        // Predicated region
        $region64: #{encoder_forward_pallas.1} parent=50 // pred_check
          %p1373 = pneg %p1372
        $region65: #{encoder_forward_pallas.1} parent=50 // pred_check_branch
          %1375 = sbr.rel (%p1373) target = $region67
        $region66: #{encoder_forward_pallas.1} parent=50 // pred_region
          %v1376 = vld [vmem:[#allocation2] sm:$0xff]
          %s1377 = scalar_lea.vmem %s268, 168 [#allocation3]
          %v1378 = vld [vmem:[%s1377] sm:$0xff]
          %v1379 = vld [vmem:[%s1377 + $0x8] sm:$0xff]
          %v1380 = vld [vmem:[%s1377 + $0x10] sm:$0xff]
          %v1381 = vpack.c.bf16 %v1376, %v1376
          %v1414 = vunpack.c.l.b16 %v321
          %v1415 = vunpack.c.h.b16 %v321
          %v1416 = vunpack.c.l.b16 %v322
          %v1417 = vunpack.c.l.b16 %v323
          %v1418 = vunpack.c.h.b16 %v323
          %v1419 = vunpack.c.l.b16 %v324
          %v1420 = vunpack.c.l.b16 %v325
          %v1421 = vunpack.c.h.b16 %v325
          %v1422 = vunpack.c.l.b16 %v326
          %v1423 = vunpack.c.l.b16 %v327
          %v1424 = vunpack.c.h.b16 %v327
          %v1425 = vunpack.c.l.b16 %v328
          %v1426 = vunpack.c.l.b16 %v329
          %v1427 = vunpack.c.h.b16 %v329
          %v1428 = vunpack.c.l.b16 %v330
          %v1429 = vunpack.c.l.b16 %v331
          %v1430 = vunpack.c.h.b16 %v331
          %v1431 = vunpack.c.l.b16 %v332
          %v1432 = vunpack.c.l.b16 %v333
          %v1433 = vunpack.c.h.b16 %v333
          %v1434 = vunpack.c.l.b16 %v334
          %v1435 = vunpack.c.l.b16 %v335
          %v1436 = vunpack.c.h.b16 %v335
          %v1437 = vunpack.c.l.b16 %v336
          %v1438 = vunpack.c.l.b16 %v337
          %v1439 = vunpack.c.h.b16 %v337
          %v1440 = vunpack.c.l.b16 %v338
          %v1441 = vunpack.c.l.b16 %v339
          %v1442 = vunpack.c.h.b16 %v339
          %v1443 = vunpack.c.l.b16 %v340
          %v1444 = vunpack.c.l.b16 %v341
          %v1445 = vunpack.c.h.b16 %v341
          %v1446 = vunpack.c.l.b16 %v342
          %v1447 = vunpack.c.l.b16 %v343
          %v1448 = vunpack.c.h.b16 %v343
          %v1449 = vunpack.c.l.b16 %v344
          %v1450 = vunpack.c.l.b16 %v345
          %v1451 = vunpack.c.h.b16 %v345
          %v1452 = vunpack.c.l.b16 %v346
          %v1453 = vunpack.c.l.b16 %v347
          %v1454 = vunpack.c.h.b16 %v347
          %v1455 = vunpack.c.l.b16 %v348
          %v1456 = vunpack.c.l.b16 %v349
          %v1457 = vunpack.c.h.b16 %v349
          %v1458 = vunpack.c.l.b16 %v350
          %v1459 = vunpack.c.l.b16 %v351
          %v1460 = vunpack.c.h.b16 %v351
          %v1461 = vunpack.c.l.b16 %v352
          %v1462 = vpack.c.b16 %v1417, %v1414
          %v1463 = vpack.c.b16 %v1418, %v1415
          %v1464 = vpack.c.b16 %v1419, %v1416
          %v1465 = vpack.c.b16 %v1423, %v1420
          %v1466 = vpack.c.b16 %v1424, %v1421
          %v1467 = vpack.c.b16 %v1425, %v1422
          %v1468 = vpack.c.b16 %v1429, %v1426
          %v1469 = vpack.c.b16 %v1430, %v1427
          %v1470 = vpack.c.b16 %v1431, %v1428
          %v1471 = vpack.c.b16 %v1435, %v1432
          %v1472 = vpack.c.b16 %v1436, %v1433
          %v1473 = vpack.c.b16 %v1437, %v1434
          %v1474 = vpack.c.b16 %v1441, %v1438
          %v1475 = vpack.c.b16 %v1442, %v1439
          %v1476 = vpack.c.b16 %v1443, %v1440
          %v1477 = vpack.c.b16 %v1447, %v1444
          %v1478 = vpack.c.b16 %v1448, %v1445
          %v1479 = vpack.c.b16 %v1449, %v1446
          %v1480 = vpack.c.b16 %v1453, %v1450
          %v1481 = vpack.c.b16 %v1454, %v1451
          %v1482 = vpack.c.b16 %v1455, %v1452
          %v1483 = vpack.c.b16 %v1459, %v1456
          %v1484 = vpack.c.b16 %v1460, %v1457
          %v1485 = vpack.c.b16 %v1461, %v1458
          %1510 = vmatprep.subr.bf16.mxu0 %v1484
          %1511 = vmatpush1.bf16.msra.mxu0 %v1483
          %1512 = vmatprep.subr.bf16.mxu0 %v1481
          %1513 = vmatpush1.bf16.msra.mxu0 %v1480
          %1514 = vmatprep.subr.bf16.mxu0 %v1478
          %1515 = vmatpush1.bf16.msra.mxu0 %v1477
          %1516 = vmatprep.subr.bf16.mxu0 %v1475
          %1517 = vmatpush1.bf16.msra.mxu0 %v1474
          %1518 = vmatprep.subr.bf16.mxu0 %v1472
          %1519 = vmatpush1.bf16.msra.mxu0 %v1471
          %1520 = vmatprep.subr.bf16.mxu0 %v1469
          %1521 = vmatpush1.bf16.msra.mxu0 %v1468
          %1522 = vmatprep.subr.bf16.mxu0 %v1466
          %1523 = vmatpush1.bf16.msra.mxu0 %v1465
          %1524 = vmatprep.subr.bf16.mxu0 %v1463
          %1525 = vmatpush1.bf16.msra.mxu0 %v1462
          %1526 = vmatprep.subr.bf16.mxu0 0
          %1527 = vmatpush2.bf16.msra.mxu0 0
          %1528 = vmatprep.subr.bf16.mxu0 0
          %1529 = vmatpush2.bf16.msra.mxu0 0
          %1530 = vmatprep.subr.bf16.mxu0 0
          %1531 = vmatpush2.bf16.msra.mxu0 0
          %1532 = vmatprep.subr.bf16.mxu0 0
          %1533 = vmatpush2.bf16.msra.mxu0 0
          %1534 = vmatprep.subr.bf16.mxu0 0
          %1535 = vmatpush2.bf16.msra.mxu0 0
          %1536 = vmatprep.subr.bf16.mxu0 0
          %1537 = vmatpush2.bf16.msra.mxu0 0
          %1538 = vmatprep.subr.bf16.mxu0 0
          %1539 = vmatpush2.bf16.msra.mxu0 0
          %1540 = vmatprep.subr.bf16.mxu0 0
          %1541 = vmatpush2.bf16.msra.mxu0 0
          %1542 = vmatprep.mubr.bf16.mxu0 0
          %1543 = vmatmul.mubr.bf16.gmra.mxu0 %v1381
          %v1544 = vpop.f32.mrf.mxu0
          %v1545 = vadd.f32 0.0, %v1544
          %v1546 = vpop.f32.mrf.mxu0
          %v1547 = vadd.f32 0.0, %v1546
          %v1548 = vpop.f32.mrf.mxu0
          %v1549 = vpop.f32.mrf.mxu0
          %1550 = vdwg.mxu0
          %1551 = vmatprep.subr.bf16.mxu0 0
          %1552 = vmatpush1.bf16.msra.mxu0 %v1485
          %1553 = vmatprep.subr.bf16.mxu0 0
          %1554 = vmatpush1.bf16.msra.mxu0 %v1482
          %1555 = vmatprep.subr.bf16.mxu0 0
          %1556 = vmatpush1.bf16.msra.mxu0 %v1479
          %1557 = vmatprep.subr.bf16.mxu0 0
          %1558 = vmatpush1.bf16.msra.mxu0 %v1476
          %1559 = vmatprep.subr.bf16.mxu0 0
          %1560 = vmatpush1.bf16.msra.mxu0 %v1473
          %1561 = vmatprep.subr.bf16.mxu0 0
          %1562 = vmatpush1.bf16.msra.mxu0 %v1470
          %1563 = vmatprep.subr.bf16.mxu0 0
          %1564 = vmatpush1.bf16.msra.mxu0 %v1467
          %1565 = vmatprep.subr.bf16.mxu0 0
          %1566 = vmatpush1.bf16.msra.mxu0 %v1464
          %1567 = vmatprep.subr.bf16.mxu0 0
          %1568 = vmatpush2.bf16.msra.mxu0 0
          %1569 = vmatprep.subr.bf16.mxu0 0
          %1570 = vmatpush2.bf16.msra.mxu0 0
          %1571 = vmatprep.subr.bf16.mxu0 0
          %1572 = vmatpush2.bf16.msra.mxu0 0
          %1573 = vmatprep.subr.bf16.mxu0 0
          %1574 = vmatpush2.bf16.msra.mxu0 0
          %1575 = vmatprep.subr.bf16.mxu0 0
          %1576 = vmatpush2.bf16.msra.mxu0 0
          %1577 = vmatprep.subr.bf16.mxu0 0
          %1578 = vmatpush2.bf16.msra.mxu0 0
          %1579 = vmatprep.subr.bf16.mxu0 0
          %1580 = vmatpush2.bf16.msra.mxu0 0
          %1581 = vmatprep.subr.bf16.mxu0 0
          %1582 = vmatpush2.bf16.msra.mxu0 0
          %1583 = vmatprep.mubr.bf16.mxu0 0
          %1584 = vmatmul.mubr.bf16.gmra.mxu0 %v1381
          %v1585 = vpop.f32.mrf.mxu0
          %v1586 = vadd.f32 0.0, %v1585
          %v1587 = vpop.f32.mrf.mxu0
          %v1588 = vpop.f32.mrf.mxu0
          %v1589 = vpop.f32.mrf.mxu0
          %1590 = vdwg.mxu0
          %v1591 = vadd.f32 %v1378, %v1545
          %v1592 = vxor.u32 %v1591, 2147483648
          %v1593 = vmul.f32 %v1592, 1.442695
          %v1594 = vpow.pop %v1593
          %v1595 = vadd.f32 %v1594, 1.0
          %v1596 = vrcp.pop %v1595
          %v1597 = vmul.f32 1.0, %v1596
          %v1598 = vadd.f32 %v1379, %v1547
          %v1599 = vxor.u32 %v1598, 2147483648
          %v1600 = vmul.f32 %v1599, 1.442695
          %v1601 = vpow.pop %v1600
          %v1602 = vadd.f32 %v1601, 1.0
          %v1603 = vrcp.pop %v1602
          %v1604 = vmul.f32 1.0, %v1603
          %v1605 = vadd.f32 %v1586, %v358
          %v1606 = vmul.f32 %v1597, %v1605
          %v1607 = vadd.f32 %v1380, %v1606
          %v1608 = vtanh.pop %v1607
          %v1609 = vsub.f32 1.0, %v1604
          %v1610 = vmul.f32 %v1609, %v1608
          %v1611 = vmul.f32 %v1604, %v1376
          %v1612 = vadd.f32 %v1610, %v1611
          %s1613 = scalar_lea.vmem %s295, 56 [#allocation4]
          %1614 = vst [vmem:[%s1613] sm:$0xff] %v1612
          %s1615 = scalar_lea.vmem %s268, 144 [#allocation3]
          %v1616 = vld [vmem:[%s1615] sm:$0xff]
          %v1617 = vld [vmem:[%s1615 + $0x8] sm:$0xff]
          %v1618 = vld [vmem:[%s1615 + $0x10] sm:$0xff]
          %v1619 = vpack.c.bf16 %v1612, %v1612
          %1620 = vmatprep.subr.bf16.mxu0 %v1484
          %1621 = vmatpush1.bf16.msra.mxu0 %v1483
          %1622 = vmatprep.subr.bf16.mxu0 %v1481
          %1623 = vmatpush1.bf16.msra.mxu0 %v1480
          %1624 = vmatprep.subr.bf16.mxu0 %v1478
          %1625 = vmatpush1.bf16.msra.mxu0 %v1477
          %1626 = vmatprep.subr.bf16.mxu0 %v1475
          %1627 = vmatpush1.bf16.msra.mxu0 %v1474
          %1628 = vmatprep.subr.bf16.mxu0 %v1472
          %1629 = vmatpush1.bf16.msra.mxu0 %v1471
          %1630 = vmatprep.subr.bf16.mxu0 %v1469
          %1631 = vmatpush1.bf16.msra.mxu0 %v1468
          %1632 = vmatprep.subr.bf16.mxu0 %v1466
          %1633 = vmatpush1.bf16.msra.mxu0 %v1465
          %1634 = vmatprep.subr.bf16.mxu0 %v1463
          %1635 = vmatpush1.bf16.msra.mxu0 %v1462
          %1636 = vmatprep.subr.bf16.mxu0 0
          %1637 = vmatpush2.bf16.msra.mxu0 0
          %1638 = vmatprep.subr.bf16.mxu0 0
          %1639 = vmatpush2.bf16.msra.mxu0 0
          %1640 = vmatprep.subr.bf16.mxu0 0
          %1641 = vmatpush2.bf16.msra.mxu0 0
          %1642 = vmatprep.subr.bf16.mxu0 0
          %1643 = vmatpush2.bf16.msra.mxu0 0
          %1644 = vmatprep.subr.bf16.mxu0 0
          %1645 = vmatpush2.bf16.msra.mxu0 0
          %1646 = vmatprep.subr.bf16.mxu0 0
          %1647 = vmatpush2.bf16.msra.mxu0 0
          %1648 = vmatprep.subr.bf16.mxu0 0
          %1649 = vmatpush2.bf16.msra.mxu0 0
          %1650 = vmatprep.subr.bf16.mxu0 0
          %1651 = vmatpush2.bf16.msra.mxu0 0
          %1652 = vmatprep.mubr.bf16.mxu0 0
          %1653 = vmatmul.mubr.bf16.gmra.mxu0 %v1619
          %v1654 = vpop.f32.mrf.mxu0
          %v1655 = vadd.f32 0.0, %v1654
          %v1656 = vpop.f32.mrf.mxu0
          %v1657 = vadd.f32 0.0, %v1656
          %v1658 = vpop.f32.mrf.mxu0
          %v1659 = vpop.f32.mrf.mxu0
          %1660 = vdwg.mxu0
          %1661 = vmatprep.subr.bf16.mxu0 0
          %1662 = vmatpush1.bf16.msra.mxu0 %v1485
          %1663 = vmatprep.subr.bf16.mxu0 0
          %1664 = vmatpush1.bf16.msra.mxu0 %v1482
          %1665 = vmatprep.subr.bf16.mxu0 0
          %1666 = vmatpush1.bf16.msra.mxu0 %v1479
          %1667 = vmatprep.subr.bf16.mxu0 0
          %1668 = vmatpush1.bf16.msra.mxu0 %v1476
          %1669 = vmatprep.subr.bf16.mxu0 0
          %1670 = vmatpush1.bf16.msra.mxu0 %v1473
          %1671 = vmatprep.subr.bf16.mxu0 0
          %1672 = vmatpush1.bf16.msra.mxu0 %v1470
          %1673 = vmatprep.subr.bf16.mxu0 0
          %1674 = vmatpush1.bf16.msra.mxu0 %v1467
          %1675 = vmatprep.subr.bf16.mxu0 0
          %1676 = vmatpush1.bf16.msra.mxu0 %v1464
          %1677 = vmatprep.subr.bf16.mxu0 0
          %1678 = vmatpush2.bf16.msra.mxu0 0
          %1679 = vmatprep.subr.bf16.mxu0 0
          %1680 = vmatpush2.bf16.msra.mxu0 0
          %1681 = vmatprep.subr.bf16.mxu0 0
          %1682 = vmatpush2.bf16.msra.mxu0 0
          %1683 = vmatprep.subr.bf16.mxu0 0
          %1684 = vmatpush2.bf16.msra.mxu0 0
          %1685 = vmatprep.subr.bf16.mxu0 0
          %1686 = vmatpush2.bf16.msra.mxu0 0
          %1687 = vmatprep.subr.bf16.mxu0 0
          %1688 = vmatpush2.bf16.msra.mxu0 0
          %1689 = vmatprep.subr.bf16.mxu0 0
          %1690 = vmatpush2.bf16.msra.mxu0 0
          %1691 = vmatprep.subr.bf16.mxu0 0
          %1692 = vmatpush2.bf16.msra.mxu0 0
          %1693 = vmatprep.mubr.bf16.mxu0 0
          %1694 = vmatmul.mubr.bf16.gmra.mxu0 %v1619
          %v1695 = vpop.f32.mrf.mxu0
          %v1696 = vadd.f32 0.0, %v1695
          %v1697 = vpop.f32.mrf.mxu0
          %v1698 = vpop.f32.mrf.mxu0
          %v1699 = vpop.f32.mrf.mxu0
          %1700 = vdwg.mxu0
          %v1701 = vadd.f32 %v1616, %v1655
          %v1702 = vxor.u32 %v1701, 2147483648
          %v1703 = vmul.f32 %v1702, 1.442695
          %v1704 = vpow.pop %v1703
          %v1705 = vadd.f32 %v1704, 1.0
          %v1706 = vrcp.pop %v1705
          %v1707 = vmul.f32 1.0, %v1706
          %v1708 = vadd.f32 %v1617, %v1657
          %v1709 = vxor.u32 %v1708, 2147483648
          %v1710 = vmul.f32 %v1709, 1.442695
          %v1711 = vpow.pop %v1710
          %v1712 = vadd.f32 %v1711, 1.0
          %v1713 = vrcp.pop %v1712
          %v1714 = vmul.f32 1.0, %v1713
          %v1715 = vadd.f32 %v1696, %v358
          %v1716 = vmul.f32 %v1707, %v1715
          %v1717 = vadd.f32 %v1618, %v1716
          %v1718 = vtanh.pop %v1717
          %v1719 = vsub.f32 1.0, %v1714
          %v1720 = vmul.f32 %v1719, %v1718
          %v1721 = vmul.f32 %v1714, %v1612
          %v1722 = vadd.f32 %v1720, %v1721
          %s1723 = scalar_lea.vmem %s295, 48 [#allocation4]
          %1724 = vst [vmem:[%s1723] sm:$0xff] %v1722
          %s1725 = scalar_lea.vmem %s268, 120 [#allocation3]
          %v1726 = vld [vmem:[%s1725] sm:$0xff]
          %v1727 = vld [vmem:[%s1725 + $0x8] sm:$0xff]
          %v1728 = vld [vmem:[%s1725 + $0x10] sm:$0xff]
          %v1729 = vpack.c.bf16 %v1722, %v1722
          %1730 = vmatprep.subr.bf16.mxu0 %v1484
          %1731 = vmatpush1.bf16.msra.mxu0 %v1483
          %1732 = vmatprep.subr.bf16.mxu0 %v1481
          %1733 = vmatpush1.bf16.msra.mxu0 %v1480
          %1734 = vmatprep.subr.bf16.mxu0 %v1478
          %1735 = vmatpush1.bf16.msra.mxu0 %v1477
          %1736 = vmatprep.subr.bf16.mxu0 %v1475
          %1737 = vmatpush1.bf16.msra.mxu0 %v1474
          %1738 = vmatprep.subr.bf16.mxu0 %v1472
          %1739 = vmatpush1.bf16.msra.mxu0 %v1471
          %1740 = vmatprep.subr.bf16.mxu0 %v1469
          %1741 = vmatpush1.bf16.msra.mxu0 %v1468
          %1742 = vmatprep.subr.bf16.mxu0 %v1466
          %1743 = vmatpush1.bf16.msra.mxu0 %v1465
          %1744 = vmatprep.subr.bf16.mxu0 %v1463
          %1745 = vmatpush1.bf16.msra.mxu0 %v1462
          %1746 = vmatprep.subr.bf16.mxu0 0
          %1747 = vmatpush2.bf16.msra.mxu0 0
          %1748 = vmatprep.subr.bf16.mxu0 0
          %1749 = vmatpush2.bf16.msra.mxu0 0
          %1750 = vmatprep.subr.bf16.mxu0 0
          %1751 = vmatpush2.bf16.msra.mxu0 0
          %1752 = vmatprep.subr.bf16.mxu0 0
          %1753 = vmatpush2.bf16.msra.mxu0 0
          %1754 = vmatprep.subr.bf16.mxu0 0
          %1755 = vmatpush2.bf16.msra.mxu0 0
          %1756 = vmatprep.subr.bf16.mxu0 0
          %1757 = vmatpush2.bf16.msra.mxu0 0
          %1758 = vmatprep.subr.bf16.mxu0 0
          %1759 = vmatpush2.bf16.msra.mxu0 0
          %1760 = vmatprep.subr.bf16.mxu0 0
          %1761 = vmatpush2.bf16.msra.mxu0 0
          %1762 = vmatprep.mubr.bf16.mxu0 0
          %1763 = vmatmul.mubr.bf16.gmra.mxu0 %v1729
          %v1764 = vpop.f32.mrf.mxu0
          %v1765 = vadd.f32 0.0, %v1764
          %v1766 = vpop.f32.mrf.mxu0
          %v1767 = vadd.f32 0.0, %v1766
          %v1768 = vpop.f32.mrf.mxu0
          %v1769 = vpop.f32.mrf.mxu0
          %1770 = vdwg.mxu0
          %1771 = vmatprep.subr.bf16.mxu0 0
          %1772 = vmatpush1.bf16.msra.mxu0 %v1485
          %1773 = vmatprep.subr.bf16.mxu0 0
          %1774 = vmatpush1.bf16.msra.mxu0 %v1482
          %1775 = vmatprep.subr.bf16.mxu0 0
          %1776 = vmatpush1.bf16.msra.mxu0 %v1479
          %1777 = vmatprep.subr.bf16.mxu0 0
          %1778 = vmatpush1.bf16.msra.mxu0 %v1476
          %1779 = vmatprep.subr.bf16.mxu0 0
          %1780 = vmatpush1.bf16.msra.mxu0 %v1473
          %1781 = vmatprep.subr.bf16.mxu0 0
          %1782 = vmatpush1.bf16.msra.mxu0 %v1470
          %1783 = vmatprep.subr.bf16.mxu0 0
          %1784 = vmatpush1.bf16.msra.mxu0 %v1467
          %1785 = vmatprep.subr.bf16.mxu0 0
          %1786 = vmatpush1.bf16.msra.mxu0 %v1464
          %1787 = vmatprep.subr.bf16.mxu0 0
          %1788 = vmatpush2.bf16.msra.mxu0 0
          %1789 = vmatprep.subr.bf16.mxu0 0
          %1790 = vmatpush2.bf16.msra.mxu0 0
          %1791 = vmatprep.subr.bf16.mxu0 0
          %1792 = vmatpush2.bf16.msra.mxu0 0
          %1793 = vmatprep.subr.bf16.mxu0 0
          %1794 = vmatpush2.bf16.msra.mxu0 0
          %1795 = vmatprep.subr.bf16.mxu0 0
          %1796 = vmatpush2.bf16.msra.mxu0 0
          %1797 = vmatprep.subr.bf16.mxu0 0
          %1798 = vmatpush2.bf16.msra.mxu0 0
          %1799 = vmatprep.subr.bf16.mxu0 0
          %1800 = vmatpush2.bf16.msra.mxu0 0
          %1801 = vmatprep.subr.bf16.mxu0 0
          %1802 = vmatpush2.bf16.msra.mxu0 0
          %1803 = vmatprep.mubr.bf16.mxu0 0
          %1804 = vmatmul.mubr.bf16.gmra.mxu0 %v1729
          %v1805 = vpop.f32.mrf.mxu0
          %v1806 = vadd.f32 0.0, %v1805
          %v1807 = vpop.f32.mrf.mxu0
          %v1808 = vpop.f32.mrf.mxu0
          %v1809 = vpop.f32.mrf.mxu0
          %1810 = vdwg.mxu0
          %v1811 = vadd.f32 %v1726, %v1765
          %v1812 = vxor.u32 %v1811, 2147483648
          %v1813 = vmul.f32 %v1812, 1.442695
          %v1814 = vpow.pop %v1813
          %v1815 = vadd.f32 %v1814, 1.0
          %v1816 = vrcp.pop %v1815
          %v1817 = vmul.f32 1.0, %v1816
          %v1818 = vadd.f32 %v1727, %v1767
          %v1819 = vxor.u32 %v1818, 2147483648
          %v1820 = vmul.f32 %v1819, 1.442695
          %v1821 = vpow.pop %v1820
          %v1822 = vadd.f32 %v1821, 1.0
          %v1823 = vrcp.pop %v1822
          %v1824 = vmul.f32 1.0, %v1823
          %v1825 = vadd.f32 %v1806, %v358
          %v1826 = vmul.f32 %v1817, %v1825
          %v1827 = vadd.f32 %v1728, %v1826
          %v1828 = vtanh.pop %v1827
          %v1829 = vsub.f32 1.0, %v1824
          %v1830 = vmul.f32 %v1829, %v1828
          %v1831 = vmul.f32 %v1824, %v1722
          %v1832 = vadd.f32 %v1830, %v1831
          %s1833 = scalar_lea.vmem %s295, 40 [#allocation4]
          %1834 = vst [vmem:[%s1833] sm:$0xff] %v1832
          %s1835 = scalar_lea.vmem %s268, 96 [#allocation3]
          %v1836 = vld [vmem:[%s1835] sm:$0xff]
          %v1837 = vld [vmem:[%s1835 + $0x8] sm:$0xff]
          %v1838 = vld [vmem:[%s1835 + $0x10] sm:$0xff]
          %v1839 = vpack.c.bf16 %v1832, %v1832
          %1840 = vmatprep.subr.bf16.mxu0 %v1484
          %1841 = vmatpush1.bf16.msra.mxu0 %v1483
          %1842 = vmatprep.subr.bf16.mxu0 %v1481
          %1843 = vmatpush1.bf16.msra.mxu0 %v1480
          %1844 = vmatprep.subr.bf16.mxu0 %v1478
          %1845 = vmatpush1.bf16.msra.mxu0 %v1477
          %1846 = vmatprep.subr.bf16.mxu0 %v1475
          %1847 = vmatpush1.bf16.msra.mxu0 %v1474
          %1848 = vmatprep.subr.bf16.mxu0 %v1472
          %1849 = vmatpush1.bf16.msra.mxu0 %v1471
          %1850 = vmatprep.subr.bf16.mxu0 %v1469
          %1851 = vmatpush1.bf16.msra.mxu0 %v1468
          %1852 = vmatprep.subr.bf16.mxu0 %v1466
          %1853 = vmatpush1.bf16.msra.mxu0 %v1465
          %1854 = vmatprep.subr.bf16.mxu0 %v1463
          %1855 = vmatpush1.bf16.msra.mxu0 %v1462
          %1856 = vmatprep.subr.bf16.mxu0 0
          %1857 = vmatpush2.bf16.msra.mxu0 0
          %1858 = vmatprep.subr.bf16.mxu0 0
          %1859 = vmatpush2.bf16.msra.mxu0 0
          %1860 = vmatprep.subr.bf16.mxu0 0
          %1861 = vmatpush2.bf16.msra.mxu0 0
          %1862 = vmatprep.subr.bf16.mxu0 0
          %1863 = vmatpush2.bf16.msra.mxu0 0
          %1864 = vmatprep.subr.bf16.mxu0 0
          %1865 = vmatpush2.bf16.msra.mxu0 0
          %1866 = vmatprep.subr.bf16.mxu0 0
          %1867 = vmatpush2.bf16.msra.mxu0 0
          %1868 = vmatprep.subr.bf16.mxu0 0
          %1869 = vmatpush2.bf16.msra.mxu0 0
          %1870 = vmatprep.subr.bf16.mxu0 0
          %1871 = vmatpush2.bf16.msra.mxu0 0
          %1872 = vmatprep.mubr.bf16.mxu0 0
          %1873 = vmatmul.mubr.bf16.gmra.mxu0 %v1839
          %v1874 = vpop.f32.mrf.mxu0
          %v1875 = vadd.f32 0.0, %v1874
          %v1876 = vpop.f32.mrf.mxu0
          %v1877 = vadd.f32 0.0, %v1876
          %v1878 = vpop.f32.mrf.mxu0
          %v1879 = vpop.f32.mrf.mxu0
          %1880 = vdwg.mxu0
          %1881 = vmatprep.subr.bf16.mxu0 0
          %1882 = vmatpush1.bf16.msra.mxu0 %v1485
          %1883 = vmatprep.subr.bf16.mxu0 0
          %1884 = vmatpush1.bf16.msra.mxu0 %v1482
          %1885 = vmatprep.subr.bf16.mxu0 0
          %1886 = vmatpush1.bf16.msra.mxu0 %v1479
          %1887 = vmatprep.subr.bf16.mxu0 0
          %1888 = vmatpush1.bf16.msra.mxu0 %v1476
          %1889 = vmatprep.subr.bf16.mxu0 0
          %1890 = vmatpush1.bf16.msra.mxu0 %v1473
          %1891 = vmatprep.subr.bf16.mxu0 0
          %1892 = vmatpush1.bf16.msra.mxu0 %v1470
          %1893 = vmatprep.subr.bf16.mxu0 0
          %1894 = vmatpush1.bf16.msra.mxu0 %v1467
          %1895 = vmatprep.subr.bf16.mxu0 0
          %1896 = vmatpush1.bf16.msra.mxu0 %v1464
          %1897 = vmatprep.subr.bf16.mxu0 0
          %1898 = vmatpush2.bf16.msra.mxu0 0
          %1899 = vmatprep.subr.bf16.mxu0 0
          %1900 = vmatpush2.bf16.msra.mxu0 0
          %1901 = vmatprep.subr.bf16.mxu0 0
          %1902 = vmatpush2.bf16.msra.mxu0 0
          %1903 = vmatprep.subr.bf16.mxu0 0
          %1904 = vmatpush2.bf16.msra.mxu0 0
          %1905 = vmatprep.subr.bf16.mxu0 0
          %1906 = vmatpush2.bf16.msra.mxu0 0
          %1907 = vmatprep.subr.bf16.mxu0 0
          %1908 = vmatpush2.bf16.msra.mxu0 0
          %1909 = vmatprep.subr.bf16.mxu0 0
          %1910 = vmatpush2.bf16.msra.mxu0 0
          %1911 = vmatprep.subr.bf16.mxu0 0
          %1912 = vmatpush2.bf16.msra.mxu0 0
          %1913 = vmatprep.mubr.bf16.mxu0 0
          %1914 = vmatmul.mubr.bf16.gmra.mxu0 %v1839
          %v1915 = vpop.f32.mrf.mxu0
          %v1916 = vadd.f32 0.0, %v1915
          %v1917 = vpop.f32.mrf.mxu0
          %v1918 = vpop.f32.mrf.mxu0
          %v1919 = vpop.f32.mrf.mxu0
          %1920 = vdwg.mxu0
          %v1921 = vadd.f32 %v1836, %v1875
          %v1922 = vxor.u32 %v1921, 2147483648
          %v1923 = vmul.f32 %v1922, 1.442695
          %v1924 = vpow.pop %v1923
          %v1925 = vadd.f32 %v1924, 1.0
          %v1926 = vrcp.pop %v1925
          %v1927 = vmul.f32 1.0, %v1926
          %v1928 = vadd.f32 %v1837, %v1877
          %v1929 = vxor.u32 %v1928, 2147483648
          %v1930 = vmul.f32 %v1929, 1.442695
          %v1931 = vpow.pop %v1930
          %v1932 = vadd.f32 %v1931, 1.0
          %v1933 = vrcp.pop %v1932
          %v1934 = vmul.f32 1.0, %v1933
          %v1935 = vadd.f32 %v1916, %v358
          %v1936 = vmul.f32 %v1927, %v1935
          %v1937 = vadd.f32 %v1838, %v1936
          %v1938 = vtanh.pop %v1937
          %v1939 = vsub.f32 1.0, %v1934
          %v1940 = vmul.f32 %v1939, %v1938
          %v1941 = vmul.f32 %v1934, %v1832
          %v1942 = vadd.f32 %v1940, %v1941
          %s1943 = scalar_lea.vmem %s295, 32 [#allocation4]
          %1944 = vst [vmem:[%s1943] sm:$0xff] %v1942
          %s1945 = scalar_lea.vmem %s268, 72 [#allocation3]
          %v1946 = vld [vmem:[%s1945] sm:$0xff]
          %v1947 = vld [vmem:[%s1945 + $0x8] sm:$0xff]
          %v1948 = vld [vmem:[%s1945 + $0x10] sm:$0xff]
          %v1949 = vpack.c.bf16 %v1942, %v1942
          %1950 = vmatprep.subr.bf16.mxu0 %v1484
          %1951 = vmatpush1.bf16.msra.mxu0 %v1483
          %1952 = vmatprep.subr.bf16.mxu0 %v1481
          %1953 = vmatpush1.bf16.msra.mxu0 %v1480
          %1954 = vmatprep.subr.bf16.mxu0 %v1478
          %1955 = vmatpush1.bf16.msra.mxu0 %v1477
          %1956 = vmatprep.subr.bf16.mxu0 %v1475
          %1957 = vmatpush1.bf16.msra.mxu0 %v1474
          %1958 = vmatprep.subr.bf16.mxu0 %v1472
          %1959 = vmatpush1.bf16.msra.mxu0 %v1471
          %1960 = vmatprep.subr.bf16.mxu0 %v1469
          %1961 = vmatpush1.bf16.msra.mxu0 %v1468
          %1962 = vmatprep.subr.bf16.mxu0 %v1466
          %1963 = vmatpush1.bf16.msra.mxu0 %v1465
          %1964 = vmatprep.subr.bf16.mxu0 %v1463
          %1965 = vmatpush1.bf16.msra.mxu0 %v1462
          %1966 = vmatprep.subr.bf16.mxu0 0
          %1967 = vmatpush2.bf16.msra.mxu0 0
          %1968 = vmatprep.subr.bf16.mxu0 0
          %1969 = vmatpush2.bf16.msra.mxu0 0
          %1970 = vmatprep.subr.bf16.mxu0 0
          %1971 = vmatpush2.bf16.msra.mxu0 0
          %1972 = vmatprep.subr.bf16.mxu0 0
          %1973 = vmatpush2.bf16.msra.mxu0 0
          %1974 = vmatprep.subr.bf16.mxu0 0
          %1975 = vmatpush2.bf16.msra.mxu0 0
          %1976 = vmatprep.subr.bf16.mxu0 0
          %1977 = vmatpush2.bf16.msra.mxu0 0
          %1978 = vmatprep.subr.bf16.mxu0 0
          %1979 = vmatpush2.bf16.msra.mxu0 0
          %1980 = vmatprep.subr.bf16.mxu0 0
          %1981 = vmatpush2.bf16.msra.mxu0 0
          %1982 = vmatprep.mubr.bf16.mxu0 0
          %1983 = vmatmul.mubr.bf16.gmra.mxu0 %v1949
          %v1984 = vpop.f32.mrf.mxu0
          %v1985 = vadd.f32 0.0, %v1984
          %v1986 = vpop.f32.mrf.mxu0
          %v1987 = vadd.f32 0.0, %v1986
          %v1988 = vpop.f32.mrf.mxu0
          %v1989 = vpop.f32.mrf.mxu0
          %1990 = vdwg.mxu0
          %1991 = vmatprep.subr.bf16.mxu0 0
          %1992 = vmatpush1.bf16.msra.mxu0 %v1485
          %1993 = vmatprep.subr.bf16.mxu0 0
          %1994 = vmatpush1.bf16.msra.mxu0 %v1482
          %1995 = vmatprep.subr.bf16.mxu0 0
          %1996 = vmatpush1.bf16.msra.mxu0 %v1479
          %1997 = vmatprep.subr.bf16.mxu0 0
          %1998 = vmatpush1.bf16.msra.mxu0 %v1476
          %1999 = vmatprep.subr.bf16.mxu0 0
          %2000 = vmatpush1.bf16.msra.mxu0 %v1473
          %2001 = vmatprep.subr.bf16.mxu0 0
          %2002 = vmatpush1.bf16.msra.mxu0 %v1470
          %2003 = vmatprep.subr.bf16.mxu0 0
          %2004 = vmatpush1.bf16.msra.mxu0 %v1467
          %2005 = vmatprep.subr.bf16.mxu0 0
          %2006 = vmatpush1.bf16.msra.mxu0 %v1464
          %2007 = vmatprep.subr.bf16.mxu0 0
          %2008 = vmatpush2.bf16.msra.mxu0 0
          %2009 = vmatprep.subr.bf16.mxu0 0
          %2010 = vmatpush2.bf16.msra.mxu0 0
          %2011 = vmatprep.subr.bf16.mxu0 0
          %2012 = vmatpush2.bf16.msra.mxu0 0
          %2013 = vmatprep.subr.bf16.mxu0 0
          %2014 = vmatpush2.bf16.msra.mxu0 0
          %2015 = vmatprep.subr.bf16.mxu0 0
          %2016 = vmatpush2.bf16.msra.mxu0 0
          %2017 = vmatprep.subr.bf16.mxu0 0
          %2018 = vmatpush2.bf16.msra.mxu0 0
          %2019 = vmatprep.subr.bf16.mxu0 0
          %2020 = vmatpush2.bf16.msra.mxu0 0
          %2021 = vmatprep.subr.bf16.mxu0 0
          %2022 = vmatpush2.bf16.msra.mxu0 0
          %2023 = vmatprep.mubr.bf16.mxu0 0
          %2024 = vmatmul.mubr.bf16.gmra.mxu0 %v1949
          %v2025 = vpop.f32.mrf.mxu0
          %v2026 = vadd.f32 0.0, %v2025
          %v2027 = vpop.f32.mrf.mxu0
          %v2028 = vpop.f32.mrf.mxu0
          %v2029 = vpop.f32.mrf.mxu0
          %2030 = vdwg.mxu0
          %v2031 = vadd.f32 %v1946, %v1985
          %v2032 = vxor.u32 %v2031, 2147483648
          %v2033 = vmul.f32 %v2032, 1.442695
          %v2034 = vpow.pop %v2033
          %v2035 = vadd.f32 %v2034, 1.0
          %v2036 = vrcp.pop %v2035
          %v2037 = vmul.f32 1.0, %v2036
          %v2038 = vadd.f32 %v1947, %v1987
          %v2039 = vxor.u32 %v2038, 2147483648
          %v2040 = vmul.f32 %v2039, 1.442695
          %v2041 = vpow.pop %v2040
          %v2042 = vadd.f32 %v2041, 1.0
          %v2043 = vrcp.pop %v2042
          %v2044 = vmul.f32 1.0, %v2043
          %v2045 = vadd.f32 %v2026, %v358
          %v2046 = vmul.f32 %v2037, %v2045
          %v2047 = vadd.f32 %v1948, %v2046
          %v2048 = vtanh.pop %v2047
          %v2049 = vsub.f32 1.0, %v2044
          %v2050 = vmul.f32 %v2049, %v2048
          %v2051 = vmul.f32 %v2044, %v1942
          %v2052 = vadd.f32 %v2050, %v2051
          %s2053 = scalar_lea.vmem %s295, 24 [#allocation4]
          %2054 = vst [vmem:[%s2053] sm:$0xff] %v2052
          %s2055 = scalar_lea.vmem %s268, 48 [#allocation3]
          %v2056 = vld [vmem:[%s2055] sm:$0xff]
          %v2057 = vld [vmem:[%s2055 + $0x8] sm:$0xff]
          %v2058 = vld [vmem:[%s2055 + $0x10] sm:$0xff]
          %v2059 = vpack.c.bf16 %v2052, %v2052
          %2060 = vmatprep.subr.bf16.mxu0 %v1484
          %2061 = vmatpush1.bf16.msra.mxu0 %v1483
          %2062 = vmatprep.subr.bf16.mxu0 %v1481
          %2063 = vmatpush1.bf16.msra.mxu0 %v1480
          %2064 = vmatprep.subr.bf16.mxu0 %v1478
          %2065 = vmatpush1.bf16.msra.mxu0 %v1477
          %2066 = vmatprep.subr.bf16.mxu0 %v1475
          %2067 = vmatpush1.bf16.msra.mxu0 %v1474
          %2068 = vmatprep.subr.bf16.mxu0 %v1472
          %2069 = vmatpush1.bf16.msra.mxu0 %v1471
          %2070 = vmatprep.subr.bf16.mxu0 %v1469
          %2071 = vmatpush1.bf16.msra.mxu0 %v1468
          %2072 = vmatprep.subr.bf16.mxu0 %v1466
          %2073 = vmatpush1.bf16.msra.mxu0 %v1465
          %2074 = vmatprep.subr.bf16.mxu0 %v1463
          %2075 = vmatpush1.bf16.msra.mxu0 %v1462
          %2076 = vmatprep.subr.bf16.mxu0 0
          %2077 = vmatpush2.bf16.msra.mxu0 0
          %2078 = vmatprep.subr.bf16.mxu0 0
          %2079 = vmatpush2.bf16.msra.mxu0 0
          %2080 = vmatprep.subr.bf16.mxu0 0
          %2081 = vmatpush2.bf16.msra.mxu0 0
          %2082 = vmatprep.subr.bf16.mxu0 0
          %2083 = vmatpush2.bf16.msra.mxu0 0
          %2084 = vmatprep.subr.bf16.mxu0 0
          %2085 = vmatpush2.bf16.msra.mxu0 0
          %2086 = vmatprep.subr.bf16.mxu0 0
          %2087 = vmatpush2.bf16.msra.mxu0 0
          %2088 = vmatprep.subr.bf16.mxu0 0
          %2089 = vmatpush2.bf16.msra.mxu0 0
          %2090 = vmatprep.subr.bf16.mxu0 0
          %2091 = vmatpush2.bf16.msra.mxu0 0
          %2092 = vmatprep.mubr.bf16.mxu0 0
          %2093 = vmatmul.mubr.bf16.gmra.mxu0 %v2059
          %v2094 = vpop.f32.mrf.mxu0
          %v2095 = vadd.f32 0.0, %v2094
          %v2096 = vpop.f32.mrf.mxu0
          %v2097 = vadd.f32 0.0, %v2096
          %v2098 = vpop.f32.mrf.mxu0
          %v2099 = vpop.f32.mrf.mxu0
          %2100 = vdwg.mxu0
          %2101 = vmatprep.subr.bf16.mxu0 0
          %2102 = vmatpush1.bf16.msra.mxu0 %v1485
          %2103 = vmatprep.subr.bf16.mxu0 0
          %2104 = vmatpush1.bf16.msra.mxu0 %v1482
          %2105 = vmatprep.subr.bf16.mxu0 0
          %2106 = vmatpush1.bf16.msra.mxu0 %v1479
          %2107 = vmatprep.subr.bf16.mxu0 0
          %2108 = vmatpush1.bf16.msra.mxu0 %v1476
          %2109 = vmatprep.subr.bf16.mxu0 0
          %2110 = vmatpush1.bf16.msra.mxu0 %v1473
          %2111 = vmatprep.subr.bf16.mxu0 0
          %2112 = vmatpush1.bf16.msra.mxu0 %v1470
          %2113 = vmatprep.subr.bf16.mxu0 0
          %2114 = vmatpush1.bf16.msra.mxu0 %v1467
          %2115 = vmatprep.subr.bf16.mxu0 0
          %2116 = vmatpush1.bf16.msra.mxu0 %v1464
          %2117 = vmatprep.subr.bf16.mxu0 0
          %2118 = vmatpush2.bf16.msra.mxu0 0
          %2119 = vmatprep.subr.bf16.mxu0 0
          %2120 = vmatpush2.bf16.msra.mxu0 0
          %2121 = vmatprep.subr.bf16.mxu0 0
          %2122 = vmatpush2.bf16.msra.mxu0 0
          %2123 = vmatprep.subr.bf16.mxu0 0
          %2124 = vmatpush2.bf16.msra.mxu0 0
          %2125 = vmatprep.subr.bf16.mxu0 0
          %2126 = vmatpush2.bf16.msra.mxu0 0
          %2127 = vmatprep.subr.bf16.mxu0 0
          %2128 = vmatpush2.bf16.msra.mxu0 0
          %2129 = vmatprep.subr.bf16.mxu0 0
          %2130 = vmatpush2.bf16.msra.mxu0 0
          %2131 = vmatprep.subr.bf16.mxu0 0
          %2132 = vmatpush2.bf16.msra.mxu0 0
          %2133 = vmatprep.mubr.bf16.mxu0 0
          %2134 = vmatmul.mubr.bf16.gmra.mxu0 %v2059
          %v2135 = vpop.f32.mrf.mxu0
          %v2136 = vadd.f32 0.0, %v2135
          %v2137 = vpop.f32.mrf.mxu0
          %v2138 = vpop.f32.mrf.mxu0
          %v2139 = vpop.f32.mrf.mxu0
          %2140 = vdwg.mxu0
          %v2141 = vadd.f32 %v2056, %v2095
          %v2142 = vxor.u32 %v2141, 2147483648
          %v2143 = vmul.f32 %v2142, 1.442695
          %v2144 = vpow.pop %v2143
          %v2145 = vadd.f32 %v2144, 1.0
          %v2146 = vrcp.pop %v2145
          %v2147 = vmul.f32 1.0, %v2146
          %v2148 = vadd.f32 %v2057, %v2097
          %v2149 = vxor.u32 %v2148, 2147483648
          %v2150 = vmul.f32 %v2149, 1.442695
          %v2151 = vpow.pop %v2150
          %v2152 = vadd.f32 %v2151, 1.0
          %v2153 = vrcp.pop %v2152
          %v2154 = vmul.f32 1.0, %v2153
          %v2155 = vadd.f32 %v2136, %v358
          %v2156 = vmul.f32 %v2147, %v2155
          %v2157 = vadd.f32 %v2058, %v2156
          %v2158 = vtanh.pop %v2157
          %v2159 = vsub.f32 1.0, %v2154
          %v2160 = vmul.f32 %v2159, %v2158
          %v2161 = vmul.f32 %v2154, %v2052
          %v2162 = vadd.f32 %v2160, %v2161
          %s2163 = scalar_lea.vmem %s295, 16 [#allocation4]
          %2164 = vst [vmem:[%s2163] sm:$0xff] %v2162
          %s2165 = scalar_lea.vmem %s268, 24 [#allocation3]
          %v2166 = vld [vmem:[%s2165] sm:$0xff]
          %v2167 = vld [vmem:[%s2165 + $0x8] sm:$0xff]
          %v2168 = vld [vmem:[%s2165 + $0x10] sm:$0xff]
          %v2169 = vpack.c.bf16 %v2162, %v2162
          %2170 = vmatprep.subr.bf16.mxu0 %v1484
          %2171 = vmatpush1.bf16.msra.mxu0 %v1483
          %2172 = vmatprep.subr.bf16.mxu0 %v1481
          %2173 = vmatpush1.bf16.msra.mxu0 %v1480
          %2174 = vmatprep.subr.bf16.mxu0 %v1478
          %2175 = vmatpush1.bf16.msra.mxu0 %v1477
          %2176 = vmatprep.subr.bf16.mxu0 %v1475
          %2177 = vmatpush1.bf16.msra.mxu0 %v1474
          %2178 = vmatprep.subr.bf16.mxu0 %v1472
          %2179 = vmatpush1.bf16.msra.mxu0 %v1471
          %2180 = vmatprep.subr.bf16.mxu0 %v1469
          %2181 = vmatpush1.bf16.msra.mxu0 %v1468
          %2182 = vmatprep.subr.bf16.mxu0 %v1466
          %2183 = vmatpush1.bf16.msra.mxu0 %v1465
          %2184 = vmatprep.subr.bf16.mxu0 %v1463
          %2185 = vmatpush1.bf16.msra.mxu0 %v1462
          %2186 = vmatprep.subr.bf16.mxu0 0
          %2187 = vmatpush2.bf16.msra.mxu0 0
          %2188 = vmatprep.subr.bf16.mxu0 0
          %2189 = vmatpush2.bf16.msra.mxu0 0
          %2190 = vmatprep.subr.bf16.mxu0 0
          %2191 = vmatpush2.bf16.msra.mxu0 0
          %2192 = vmatprep.subr.bf16.mxu0 0
          %2193 = vmatpush2.bf16.msra.mxu0 0
          %2194 = vmatprep.subr.bf16.mxu0 0
          %2195 = vmatpush2.bf16.msra.mxu0 0
          %2196 = vmatprep.subr.bf16.mxu0 0
          %2197 = vmatpush2.bf16.msra.mxu0 0
          %2198 = vmatprep.subr.bf16.mxu0 0
          %2199 = vmatpush2.bf16.msra.mxu0 0
          %2200 = vmatprep.subr.bf16.mxu0 0
          %2201 = vmatpush2.bf16.msra.mxu0 0
          %2202 = vmatprep.mubr.bf16.mxu0 0
          %2203 = vmatmul.mubr.bf16.gmra.mxu0 %v2169
          %v2204 = vpop.f32.mrf.mxu0
          %v2205 = vadd.f32 0.0, %v2204
          %v2206 = vpop.f32.mrf.mxu0
          %v2207 = vadd.f32 0.0, %v2206
          %v2208 = vpop.f32.mrf.mxu0
          %v2209 = vpop.f32.mrf.mxu0
          %2210 = vdwg.mxu0
          %2211 = vmatprep.subr.bf16.mxu0 0
          %2212 = vmatpush1.bf16.msra.mxu0 %v1485
          %2213 = vmatprep.subr.bf16.mxu0 0
          %2214 = vmatpush1.bf16.msra.mxu0 %v1482
          %2215 = vmatprep.subr.bf16.mxu0 0
          %2216 = vmatpush1.bf16.msra.mxu0 %v1479
          %2217 = vmatprep.subr.bf16.mxu0 0
          %2218 = vmatpush1.bf16.msra.mxu0 %v1476
          %2219 = vmatprep.subr.bf16.mxu0 0
          %2220 = vmatpush1.bf16.msra.mxu0 %v1473
          %2221 = vmatprep.subr.bf16.mxu0 0
          %2222 = vmatpush1.bf16.msra.mxu0 %v1470
          %2223 = vmatprep.subr.bf16.mxu0 0
          %2224 = vmatpush1.bf16.msra.mxu0 %v1467
          %2225 = vmatprep.subr.bf16.mxu0 0
          %2226 = vmatpush1.bf16.msra.mxu0 %v1464
          %2227 = vmatprep.subr.bf16.mxu0 0
          %2228 = vmatpush2.bf16.msra.mxu0 0
          %2229 = vmatprep.subr.bf16.mxu0 0
          %2230 = vmatpush2.bf16.msra.mxu0 0
          %2231 = vmatprep.subr.bf16.mxu0 0
          %2232 = vmatpush2.bf16.msra.mxu0 0
          %2233 = vmatprep.subr.bf16.mxu0 0
          %2234 = vmatpush2.bf16.msra.mxu0 0
          %2235 = vmatprep.subr.bf16.mxu0 0
          %2236 = vmatpush2.bf16.msra.mxu0 0
          %2237 = vmatprep.subr.bf16.mxu0 0
          %2238 = vmatpush2.bf16.msra.mxu0 0
          %2239 = vmatprep.subr.bf16.mxu0 0
          %2240 = vmatpush2.bf16.msra.mxu0 0
          %2241 = vmatprep.subr.bf16.mxu0 0
          %2242 = vmatpush2.bf16.msra.mxu0 0
          %2243 = vmatprep.mubr.bf16.mxu0 0
          %2244 = vmatmul.mubr.bf16.gmra.mxu0 %v2169
          %v2245 = vpop.f32.mrf.mxu0
          %v2246 = vadd.f32 0.0, %v2245
          %v2247 = vpop.f32.mrf.mxu0
          %v2248 = vpop.f32.mrf.mxu0
          %v2249 = vpop.f32.mrf.mxu0
          %2250 = vdwg.mxu0
          %v2251 = vadd.f32 %v2166, %v2205
          %v2252 = vxor.u32 %v2251, 2147483648
          %v2253 = vmul.f32 %v2252, 1.442695
          %v2254 = vpow.pop %v2253
          %v2255 = vadd.f32 %v2254, 1.0
          %v2256 = vrcp.pop %v2255
          %v2257 = vmul.f32 1.0, %v2256
          %v2258 = vadd.f32 %v2167, %v2207
          %v2259 = vxor.u32 %v2258, 2147483648
          %v2260 = vmul.f32 %v2259, 1.442695
          %v2261 = vpow.pop %v2260
          %v2262 = vadd.f32 %v2261, 1.0
          %v2263 = vrcp.pop %v2262
          %v2264 = vmul.f32 1.0, %v2263
          %v2265 = vadd.f32 %v2246, %v358
          %v2266 = vmul.f32 %v2257, %v2265
          %v2267 = vadd.f32 %v2168, %v2266
          %v2268 = vtanh.pop %v2267
          %v2269 = vsub.f32 1.0, %v2264
          %v2270 = vmul.f32 %v2269, %v2268
          %v2271 = vmul.f32 %v2264, %v2162
          %v2272 = vadd.f32 %v2270, %v2271
          %s2273 = scalar_lea.vmem %s295, 8 [#allocation4]
          %2274 = vst [vmem:[%s2273] sm:$0xff] %v2272
          %v2275 = vld [vmem:[%s268] sm:$0xff]
          %v2276 = vld [vmem:[%s268 + $0x8] sm:$0xff]
          %v2277 = vld [vmem:[%s268 + $0x10] sm:$0xff]
          %v2278 = vpack.c.bf16 %v2272, %v2272
          %2279 = vmatprep.subr.bf16.mxu0 %v1484
          %2280 = vmatpush1.bf16.msra.mxu0 %v1483
          %2281 = vmatprep.subr.bf16.mxu0 %v1481
          %2282 = vmatpush1.bf16.msra.mxu0 %v1480
          %2283 = vmatprep.subr.bf16.mxu0 %v1478
          %2284 = vmatpush1.bf16.msra.mxu0 %v1477
          %2285 = vmatprep.subr.bf16.mxu0 %v1475
          %2286 = vmatpush1.bf16.msra.mxu0 %v1474
          %2287 = vmatprep.subr.bf16.mxu0 %v1472
          %2288 = vmatpush1.bf16.msra.mxu0 %v1471
          %2289 = vmatprep.subr.bf16.mxu0 %v1469
          %2290 = vmatpush1.bf16.msra.mxu0 %v1468
          %2291 = vmatprep.subr.bf16.mxu0 %v1466
          %2292 = vmatpush1.bf16.msra.mxu0 %v1465
          %2293 = vmatprep.subr.bf16.mxu0 %v1463
          %2294 = vmatpush1.bf16.msra.mxu0 %v1462
          %2295 = vmatprep.subr.bf16.mxu0 0
          %2296 = vmatpush2.bf16.msra.mxu0 0
          %2297 = vmatprep.subr.bf16.mxu0 0
          %2298 = vmatpush2.bf16.msra.mxu0 0
          %2299 = vmatprep.subr.bf16.mxu0 0
          %2300 = vmatpush2.bf16.msra.mxu0 0
          %2301 = vmatprep.subr.bf16.mxu0 0
          %2302 = vmatpush2.bf16.msra.mxu0 0
          %2303 = vmatprep.subr.bf16.mxu0 0
          %2304 = vmatpush2.bf16.msra.mxu0 0
          %2305 = vmatprep.subr.bf16.mxu0 0
          %2306 = vmatpush2.bf16.msra.mxu0 0
          %2307 = vmatprep.subr.bf16.mxu0 0
          %2308 = vmatpush2.bf16.msra.mxu0 0
          %2309 = vmatprep.subr.bf16.mxu0 0
          %2310 = vmatpush2.bf16.msra.mxu0 0
          %2311 = vmatprep.mubr.bf16.mxu0 0
          %2312 = vmatmul.mubr.bf16.gmra.mxu0 %v2278
          %v2313 = vpop.f32.mrf.mxu0
          %v2314 = vadd.f32 0.0, %v2313
          %v2315 = vpop.f32.mrf.mxu0
          %v2316 = vadd.f32 0.0, %v2315
          %v2317 = vpop.f32.mrf.mxu0
          %v2318 = vpop.f32.mrf.mxu0
          %2319 = vdwg.mxu0
          %2320 = vmatprep.subr.bf16.mxu0 0
          %2321 = vmatpush1.bf16.msra.mxu0 %v1485
          %2322 = vmatprep.subr.bf16.mxu0 0
          %2323 = vmatpush1.bf16.msra.mxu0 %v1482
          %2324 = vmatprep.subr.bf16.mxu0 0
          %2325 = vmatpush1.bf16.msra.mxu0 %v1479
          %2326 = vmatprep.subr.bf16.mxu0 0
          %2327 = vmatpush1.bf16.msra.mxu0 %v1476
          %2328 = vmatprep.subr.bf16.mxu0 0
          %2329 = vmatpush1.bf16.msra.mxu0 %v1473
          %2330 = vmatprep.subr.bf16.mxu0 0
          %2331 = vmatpush1.bf16.msra.mxu0 %v1470
          %2332 = vmatprep.subr.bf16.mxu0 0
          %2333 = vmatpush1.bf16.msra.mxu0 %v1467
          %2334 = vmatprep.subr.bf16.mxu0 0
          %2335 = vmatpush1.bf16.msra.mxu0 %v1464
          %2336 = vmatprep.subr.bf16.mxu0 0
          %2337 = vmatpush2.bf16.msra.mxu0 0
          %2338 = vmatprep.subr.bf16.mxu0 0
          %2339 = vmatpush2.bf16.msra.mxu0 0
          %2340 = vmatprep.subr.bf16.mxu0 0
          %2341 = vmatpush2.bf16.msra.mxu0 0
          %2342 = vmatprep.subr.bf16.mxu0 0
          %2343 = vmatpush2.bf16.msra.mxu0 0
          %2344 = vmatprep.subr.bf16.mxu0 0
          %2345 = vmatpush2.bf16.msra.mxu0 0
          %2346 = vmatprep.subr.bf16.mxu0 0
          %2347 = vmatpush2.bf16.msra.mxu0 0
          %2348 = vmatprep.subr.bf16.mxu0 0
          %2349 = vmatpush2.bf16.msra.mxu0 0
          %2350 = vmatprep.subr.bf16.mxu0 0
          %2351 = vmatpush2.bf16.msra.mxu0 0
          %2352 = vmatprep.mubr.bf16.mxu0 0
          %2353 = vmatmul.mubr.bf16.gmra.mxu0 %v2278
          %v2354 = vpop.f32.mrf.mxu0
          %v2355 = vadd.f32 0.0, %v2354
          %v2356 = vpop.f32.mrf.mxu0
          %v2357 = vpop.f32.mrf.mxu0
          %v2358 = vpop.f32.mrf.mxu0
          %2359 = vdwg.mxu0
          %v2360 = vadd.f32 %v2275, %v2314
          %v2361 = vxor.u32 %v2360, 2147483648
          %v2362 = vmul.f32 %v2361, 1.442695
          %v2363 = vpow.pop %v2362
          %v2364 = vadd.f32 %v2363, 1.0
          %v2365 = vrcp.pop %v2364
          %v2366 = vmul.f32 1.0, %v2365
          %v2367 = vadd.f32 %v2276, %v2316
          %v2368 = vxor.u32 %v2367, 2147483648
          %v2369 = vmul.f32 %v2368, 1.442695
          %v2370 = vpow.pop %v2369
          %v2371 = vadd.f32 %v2370, 1.0
          %v2372 = vrcp.pop %v2371
          %v2373 = vmul.f32 1.0, %v2372
          %v2374 = vadd.f32 %v2355, %v358
          %v2375 = vmul.f32 %v2366, %v2374
          %v2376 = vadd.f32 %v2277, %v2375
          %v2377 = vtanh.pop %v2376
          %v2378 = vsub.f32 1.0, %v2373
          %v2379 = vmul.f32 %v2378, %v2377
          %v2380 = vmul.f32 %v2373, %v2272
          %v2381 = vadd.f32 %v2379, %v2380
          %2382 = vst [vmem:[%s295] sm:$0xff] %v2381
          %2383 = vst [vmem:[#allocation2] sm:$0xff] %v2381
        $region67: #{encoder_forward_pallas.1} parent=50 // pred_fallthru
          _
        %s2384 = sand.u32 %s132, 1
        %s2385 = sand.u32 %s132, 1
        %s2386 = smul.addr %s2385, 64
        %s2387 = scalar_lea.vmem [#allocation4], %s2386
        // Predicated region
        $region68: #{encoder_forward_pallas.1} parent=50 // pred_check
          %p2388 = pneg %p142
        $region69: #{encoder_forward_pallas.1} parent=50 // pred_check_branch
          %2390 = sbr.rel (%p2388) target = $region71
        $region70: #{encoder_forward_pallas.1} parent=50 // pred_region
          %s2391 = smul.u32 %s19, 2
          %s2392 = ssub.s32 0, %s2391
          %s2393 = smul.u32 %s18, %s2392
          %s2394 = sadd.s32 %s19, %s2393
          %s2395 = smul.u32 8, %s2394
          %s2396 = smul.addr %s2395, 2
          %s2397 = sadd.s32 %s18, %s2396
          %s2398 = smul.addr %s2397, 8
          %s2399 = scalar_lea.vmem %s3, %s2398
          // Predicated region
          $region72: #{encoder_forward_pallas.1} parent=70 // pred_check
            _
          $region73: #{encoder_forward_pallas.1} parent=70 // pred_check_branch
            %2401 = sbr.rel (0) target = $region75
          $region74: #{encoder_forward_pallas.1} parent=70 // pred_region
            // Predicated region
            $region76: #{encoder_forward_pallas.1} parent=74 // pred_check
              _
            $region77: #{encoder_forward_pallas.1} parent=74 // pred_check_branch
              %2403 = sbr.rel (0) target = $region79
            $region78: #{encoder_forward_pallas.1} parent=74 // pred_region
              // Predicated region
              $region91: #{encoder_forward_pallas.1} parent=78 // pred_check
                _
              $region92: #{encoder_forward_pallas.1} parent=78 // pred_check_branch
                %2433 = sbr.rel (0) target = $region94
              $region93: #{encoder_forward_pallas.1} parent=78 // pred_region
                loop: start=0, step=1, limit=1
                $region95: #{encoder_forward_pallas.1} parent=93 // loop_pre_header
                  _
                $region96: #{encoder_forward_pallas.1} parent=93 // loop_header
                  %s2435 = sphi 0, %s2439
                  %p2436 = scmp.ge.s32.totalorder %s2435, 1
                  %s2440 = sphi %s2387, %s2387
                  %s2441 = sphi %s2399, %s2399
                $region97: #{encoder_forward_pallas.1} parent=93 // loop_header_branch
                  %2438 = sbr.rel (%p2436) target = $region101
                $region98: #{encoder_forward_pallas.1} parent=93 // loop_body
                  %v2442 = vld [vmem:[%s2440] sm:$0xff]
                  %2443 = vst [vmem:[%s2441] sm:$0xff] %v2442
                  %v2444 = vld [vmem:[%s2440 + $0x8] sm:$0xff]
                  %2445 = vst [vmem:[%s2441 + $0x10] sm:$0xff] %v2444
                  %v2446 = vld [vmem:[%s2440 + $0x10] sm:$0xff]
                  %2447 = vst [vmem:[%s2441 + $0x20] sm:$0xff] %v2446
                  %v2448 = vld [vmem:[%s2440 + $0x18] sm:$0xff]
                  %2449 = vst [vmem:[%s2441 + $0x30] sm:$0xff] %v2448
                  %v2450 = vld [vmem:[%s2440 + $0x20] sm:$0xff]
                  %2451 = vst [vmem:[%s2441 + $0x40] sm:$0xff] %v2450
                  %v2452 = vld [vmem:[%s2440 + $0x28] sm:$0xff]
                  %2453 = vst [vmem:[%s2441 + $0x50] sm:$0xff] %v2452
                  %v2454 = vld [vmem:[%s2440 + $0x30] sm:$0xff]
                  %2455 = vst [vmem:[%s2441 + $0x60] sm:$0xff] %v2454
                  %v2456 = vld [vmem:[%s2440 + $0x38] sm:$0xff]
                  %2457 = vst [vmem:[%s2441 + $0x70] sm:$0xff] %v2456
                $region99: #{encoder_forward_pallas.1} parent=93 // loop_footer
                  %s2439 = sadd.s32 1, %s2435
                $region100: #{encoder_forward_pallas.1} parent=93 // loop_footer_branch
                  %2434 = sbr.rel target = $region96
                $region101: #{encoder_forward_pallas.1} parent=93 // loop_exit
                  _
              $region94: #{encoder_forward_pallas.1} parent=78 // pred_fallthru
                _
              // Predicated region
              $region102: #{encoder_forward_pallas.1} parent=78 // pred_check
                _
              $region103: #{encoder_forward_pallas.1} parent=78 // pred_check_branch
                %2459 = sbr.rel target = $region105
              $region104: #{encoder_forward_pallas.1} parent=78 // pred_region
                _
              $region105: #{encoder_forward_pallas.1} parent=78 // pred_fallthru
                _
            $region79: #{encoder_forward_pallas.1} parent=74 // pred_fallthru
              _
            // Predicated region
            $region80: #{encoder_forward_pallas.1} parent=74 // pred_check
              _
            $region81: #{encoder_forward_pallas.1} parent=74 // pred_check_branch
              %2405 = sbr.rel target = $region83
            $region82: #{encoder_forward_pallas.1} parent=74 // pred_region
              %s2407 = ssub.s32 256, 1
              loop: start=0, step=1, limit=1
              $region84: #{encoder_forward_pallas.1} parent=82 // loop_pre_header
                _
              $region85: #{encoder_forward_pallas.1} parent=82 // loop_header
                %s2409 = sphi 0, %s2413
                %p2410 = scmp.ge.s32.totalorder %s2409, 1
                %s2414 = sphi %s2387, %s2387
                %s2415 = sphi %s2399, %s2399
              $region86: #{encoder_forward_pallas.1} parent=82 // loop_header_branch
                %2412 = sbr.rel (%p2410) target = $region90
              $region87: #{encoder_forward_pallas.1} parent=82 // loop_body
                %v2416 = vld [vmem:[%s2414] sm:%s2407]
                %2417 = vst [vmem:[%s2415] sm:%s2407] %v2416
                %v2418 = vld [vmem:[%s2414 + $0x8] sm:%s2407]
                %2419 = vst [vmem:[%s2415 + $0x10] sm:%s2407] %v2418
                %v2420 = vld [vmem:[%s2414 + $0x10] sm:%s2407]
                %2421 = vst [vmem:[%s2415 + $0x20] sm:%s2407] %v2420
                %v2422 = vld [vmem:[%s2414 + $0x18] sm:%s2407]
                %2423 = vst [vmem:[%s2415 + $0x30] sm:%s2407] %v2422
                %v2424 = vld [vmem:[%s2414 + $0x20] sm:%s2407]
                %2425 = vst [vmem:[%s2415 + $0x40] sm:%s2407] %v2424
                %v2426 = vld [vmem:[%s2414 + $0x28] sm:%s2407]
                %2427 = vst [vmem:[%s2415 + $0x50] sm:%s2407] %v2426
                %v2428 = vld [vmem:[%s2414 + $0x30] sm:%s2407]
                %2429 = vst [vmem:[%s2415 + $0x60] sm:%s2407] %v2428
                %v2430 = vld [vmem:[%s2414 + $0x38] sm:%s2407]
                %2431 = vst [vmem:[%s2415 + $0x70] sm:%s2407] %v2430
              $region88: #{encoder_forward_pallas.1} parent=82 // loop_footer
                %s2413 = sadd.s32 1, %s2409
              $region89: #{encoder_forward_pallas.1} parent=82 // loop_footer_branch
                %2408 = sbr.rel target = $region85
              $region90: #{encoder_forward_pallas.1} parent=82 // loop_exit
                _
            $region83: #{encoder_forward_pallas.1} parent=74 // pred_fallthru
              _
          $region75: #{encoder_forward_pallas.1} parent=70 // pred_fallthru
            _
          %2460 = vnop
        $region71: #{encoder_forward_pallas.1} parent=50 // pred_fallthru
          _
      $region51: #{encoder_forward_pallas.1} parent=5 // pred_fallthru
        _
      %p2461 = scmp.le.s32.totalorder 2, %s9
      // Predicated region
      $region106: #{encoder_forward_pallas.1} parent=5 // pred_check
        %p2462 = pneg %p2461
      $region107: #{encoder_forward_pallas.1} parent=5 // pred_check_branch
        %2464 = sbr.rel (%p2462) target = $region109
      $region108: #{encoder_forward_pallas.1} parent=5 // pred_region
        %s2465 = ssub.s32 %s9, 2
        // Predicated region
        $region110: #{encoder_forward_pallas.1} parent=108 // pred_check
          %p2466 = pneg %p148
        $region111: #{encoder_forward_pallas.1} parent=108 // pred_check_branch
          %2468 = sbr.rel (%p2466) target = $region113
        $region112: #{encoder_forward_pallas.1} parent=108 // pred_region
          %s2469 = sand.u32 %s133, 1
          %s2470 = sand.u32 %s133, 1
          %s2471 = smul.addr %s2470, 64
          %s2472 = scalar_lea.vmem [#allocation4], %s2471
        $region113: #{encoder_forward_pallas.1} parent=108 // pred_fallthru
          _
      $region109: #{encoder_forward_pallas.1} parent=5 // pred_fallthru
        _
    $region6: #{encoder_forward_pallas.1} parent=1 // loop_footer
      %s13 = sadd.s32 1, %s9
    $region7: #{encoder_forward_pallas.1} parent=1 // loop_footer_branch
      %8 = sbr.rel target = $region3
    $region8: #{encoder_forward_pallas.1} parent=1 // loop_exit
      _

</llo_original>
